<compile_context>
chip_gen: v7x
topology: tpu7x:2x2x1
jax: 0.10.0
libtpu: 0.0.40
codegen_flags: <defaults>
</compile_context>

<pallas_src>
import functools
import math

import jax
import jax.numpy as jnp
from jax import lax
from jax.experimental import pallas as pl
from jax.experimental.pallas import tpu as pltpu

EPS = 1e-5  # nn.BatchNorm3d default eps


def _identity_block_kernel(C, D, inv_cnt, bn_shifts,
                           x_ref, wm_ref, dv1_ref, dv3_ref, b2_ref, b3_ref,
                           out_ref, z1_ref, y2_ref):
    """One grid step = one conv2 depth tap kd; conv1/BN1 at kd==0, epilogue at kd==2."""
    f32 = jnp.float32
    ND, L = x_ref.shape
    kd = pl.program_id(0)

    def lane_roll(v, s):
        # Static lane rotation (XLU); normalize to a non-negative shift.
        return pltpu.roll(v, s % L, axis=1)

    def bn(y):
        # Train-mode BatchNorm3d (gamma=1, beta=0): per-channel (= lane % C) biased
        # stats over all N*D*H*W elements.  Lane-axis reduction within a channel's
        # residue class is a log2 tree of lane rolls (shifts C, 2C, 4C, ...): every
        # lane ends up holding its channel's sum already broadcast -- no MXU dots.
        t = y
        for sh in bn_shifts:
            t = t + lane_roll(t, sh)
        mean = jnp.sum(t, axis=0, keepdims=True) * inv_cnt            # (1, L)
        d = y - mean
        u = d * d
        for sh in bn_shifts:
            u = u + lane_roll(u, sh)
        var = jnp.sum(u, axis=0, keepdims=True) * inv_cnt              # (1, L)
        return d * lax.rsqrt(var + EPS)

    def conv1x1(z, dv_ref):
        # 1x1x1 conv (CxC channel mix) on the lane-dense slab, decomposed into the
        # 2C-1 diagonals of the weight matrix: one lane roll + FMA per diagonal
        # against a precomputed (1, L) weight vector.  Replaces the block-diagonal
        # (L, L) MXU matmul and its (mostly zero) weight stream; exact f32.
        acc = dv_ref[C - 1:C, :] * z                                   # diagonal s = 0
        for s in range(1, C):
            acc = acc + dv_ref[C - 1 + s:C + s, :] * lane_roll(z, s)
            acc = acc + dv_ref[C - 1 - s:C - s, :] * lane_roll(z, -s)
        return acc

    # -------- kd == 0: conv3d1 (1x1x1, no bias) + BN1 + ReLU; init conv2 acc -----
    @pl.when(kd == 0)
    def _():
        x = x_ref[...].astype(f32)
        z1_ref[...] = jnp.maximum(bn(conv1x1(x, dv1_ref)), 0.0)
        y2_ref[...] = jnp.broadcast_to(b2_ref[...], (ND, L))           # conv2 bias

    # -------- every step: accumulate one depth tap of conv3d2 (3x3x3 'same') -----
    # Tap kd reads z1 at depth d + kd - 1: sublane roll of the (N*D, L) slab with
    # the wrapped rows masked at each sample's depth boundary.
    z1 = z1_ref[...]
    row_d = lax.broadcasted_iota(jnp.int32, (ND, L), 0) % D
    a_dn = jnp.where(row_d == 0, 0.0, pltpu.roll(z1, 1, axis=0))       # z1[n, d-1]
    a_up = jnp.where(row_d == D - 1, 0.0, pltpu.roll(z1, ND - 1, axis=0))  # z1[n, d+1]
    a = jnp.where(kd == 0, a_dn, jnp.where(kd == 1, z1, a_up))
    y2_ref[...] += jnp.dot(a.astype(jnp.bfloat16), wm_ref[0],
                           preferred_element_type=f32)

    # -------- kd == 2: BN2 + ReLU, conv3d3 (+bias), BN3 + residual + ReLU --------
    @pl.when(kd == 2)
    def _():
        x = x_ref[...].astype(f32)
        z2 = jnp.maximum(bn(y2_ref[...]), 0.0)
        y3 = conv1x1(z2, dv3_ref) + b3_ref[...]
        out_ref[...] = jnp.maximum(bn(y3) + x, 0.0).astype(out_ref.dtype)


def prepack_identity_block(params, C, H, W):
    """One-time, data-independent weight repacking (hoisted out of the forward path)."""
    f32 = jnp.float32
    HW = H * W
    L = HW * C
    assert L % 128 == 0, "lane axis must be a multiple of 128"
    assert HW & (HW - 1) == 0, "H*W must be a power of two for the log2 BN roll-reduce"

    co = jnp.arange(L) % C

    def diag_table(w_cc):
        # Row j <-> lane shift s = j-(C-1); value[l] = w[l%C, l%C - s], 0 outside band.
        rows = []
        for s in range(-(C - 1), C):
            ci = co - s
            valid = (ci >= 0) & (ci < C)
            rows.append(jnp.where(valid, w_cc[co, jnp.clip(ci, 0, C - 1)], 0.0))
        return jnp.stack(rows).astype(f32)                             # (2C-1, L)

    dv1 = diag_table(params["conv1_w"].reshape(C, C).astype(f32))
    dv3 = diag_table(params["conv3_w"].reshape(C, C).astype(f32))

    # 3x3x3 conv -> three (L, L) block-banded conv-as-matmul matrices (one per depth
    # tap kd), 'same' zero padding folded in; stored bf16 (halves the weight DMA).
    # wm[kd][(hi*W+wi)*C+ci, (ho*W+wo)*C+co] = w2[co, ci, kd, hi-ho+1, wi-wo+1].
    w2 = params["conv2_w"].astype(f32)                                 # (co, ci, kd, kh, kw)
    w2t = jnp.transpose(w2, (2, 3, 4, 1, 0))                           # (kd, kh, kw, ci, co)
    hi = jnp.arange(H)
    wi = jnp.arange(W)
    dh = hi[:, None, None, None] - hi[None, None, :, None] + 1         # (H, 1, H, 1)
    dw = wi[None, :, None, None] - wi[None, None, None, :] + 1         # (1, W, 1, W)
    valid = ((dh >= 0) & (dh < 3) & (dw >= 0) & (dw < 3)).astype(f32)  # (H, W, H, W)
    blk = w2t[:, jnp.clip(dh, 0, 2), jnp.clip(dw, 0, 2)]               # (3,hi,wi,ho,wo,ci,co)
    blk = blk * valid[None, :, :, :, :, None, None]
    wm = jnp.transpose(blk, (0, 1, 2, 5, 3, 4, 6)).reshape(3, L, L).astype(jnp.bfloat16)

    b2 = jnp.tile(params["conv2_b"].astype(f32), HW).reshape(1, L)
    b3 = jnp.tile(params["conv3_b"].astype(f32), HW).reshape(1, L)
    return dict(wm=wm, dv1=dv1, dv3=dv3, b2=b2, b3=b3)


@jax.jit
def identity_block_forward(x_ncdhw, packed):
    """NCDHW in / NCDHW out; the whole block runs in one Pallas kernel call."""
    N, C, D, H, W = x_ncdhw.shape
    ND, L = N * D, H * W * C            # lane-dense slab; L = 512 (multiple of 128)
    HW = H * W

    # Layout plumbing kept in the wrapper (16 KiB slab).
    x2d = jnp.transpose(x_ncdhw, (0, 2, 3, 4, 1)).reshape(ND, L)

    bn_shifts = tuple(C * (1 << i) for i in range(int(math.log2(HW))))
    kernel = functools.partial(_identity_block_kernel, C, D,
                               1.0 / (N * D * H * W), bn_shifts)

    out2d = pl.pallas_call(
        kernel,
        out_shape=jax.ShapeDtypeStruct((ND, L), x_ncdhw.dtype),
        grid=(3,),                                       # conv2 depth taps (weight stream)
        in_specs=[
            pl.BlockSpec((ND, L), lambda kd: (0, 0)),             # x slab (resident)
            pl.BlockSpec((1, L, L), lambda kd: (kd, 0, 0)),       # conv2 tap kd (bf16, pipelined)
            pl.BlockSpec((2 * C - 1, L), lambda kd: (0, 0)),      # conv1 diagonal table
            pl.BlockSpec((2 * C - 1, L), lambda kd: (0, 0)),      # conv3 diagonal table
            pl.BlockSpec((1, L), lambda kd: (0, 0)),              # conv2 bias (lane bcast)
            pl.BlockSpec((1, L), lambda kd: (0, 0)),              # conv3 bias
        ],
        out_specs=pl.BlockSpec((ND, L), lambda kd: (0, 0)),
        scratch_shapes=[pltpu.VMEM((ND, L), jnp.float32),         # z1 (post conv1/BN1/ReLU)
                        pltpu.VMEM((ND, L), jnp.float32)],        # conv2 accumulator
        input_output_aliases={0: 0},
        compiler_params=pltpu.CompilerParams(
            dimension_semantics=("arbitrary",)),
    )(x2d, packed["wm"], packed["dv1"], packed["dv3"], packed["b2"], packed["b3"])

    return out2d.reshape(N, D, H, W, C).transpose(0, 4, 1, 2, 3)


def identity_block_ref(x, params):
    """Pure-JAX (XLA) reference mirroring the PyTorch forward (train-mode BN)."""
    dn = ("NCDHW", "OIDHW", "NCDHW")

    def conv(y, w, padding):
        return lax.conv_general_dilated(y, w, (1, 1, 1), padding,
                                        dimension_numbers=dn)

    def bn(y):
        m = jnp.mean(y, axis=(0, 2, 3, 4), keepdims=True)
        v = jnp.mean((y - m) ** 2, axis=(0, 2, 3, 4), keepdims=True)
        return (y - m) * lax.rsqrt(v + EPS)

    r = x
    y = conv(x, params["conv1_w"], "VALID")
    y = jax.nn.relu(bn(y))
    y = conv(y, params["conv2_w"], "SAME") + params["conv2_b"].reshape(1, -1, 1, 1, 1)
    y = jax.nn.relu(bn(y))
    y = conv(y, params["conv3_w"], "VALID") + params["conv3_b"].reshape(1, -1, 1, 1, 1)
    y = bn(y) + r
    return jax.nn.relu(y)


if __name__ == "__main__":
    key = jax.random.PRNGKey(0)
    N, C, D, H, W = 2, 8, 4, 8, 8          # channels = (8, 8, 8, 8)
    ks = jax.random.split(key, 6)

    x = jax.random.normal(ks[0], (N, C, D, H, W), jnp.float32)
    params = {
        "conv1_w": jax.random.normal(ks[1], (C, C, 1, 1, 1), jnp.float32) * 0.2,
        "conv2_w": jax.random.normal(ks[2], (C, C, 3, 3, 3), jnp.float32) * 0.1,
        "conv2_b": jax.random.normal(ks[3], (C,), jnp.float32) * 0.1,
        "conv3_w": jax.random.normal(ks[4], (C, C, 1, 1, 1), jnp.float32) * 0.2,
        "conv3_b": jax.random.normal(ks[5], (C,), jnp.float32) * 0.1,
    }

    # One-time weight prepacking, hoisted out of the per-call forward path.
    packed = jax.tree_util.tree_map(jax.block_until_ready,
                                    prepack_identity_block(params, C, H, W))

    out = jax.block_until_ready(identity_block_forward(x, packed))
    ref = jax.block_until_ready(identity_block_ref(x, params))

    assert out.shape == x.shape, (out.shape, x.shape)
    max_err = float(jnp.max(jnp.abs(out - ref)))
    if max_err < 2e-2:   # bf16 MXU path for conv2 vs XLA conv; conv1/conv3/BN exact f32
        print("KERNEL_OK")
    else:
        raise SystemExit(f"mismatch: max_err={max_err}")
</pallas_src>

<mosaic_0001>
module attributes {stable_mosaic.version = 11 : i64} {
  func.func @_identity_block_kernel(%arg0: i32, %arg1: memref<8x512xf32, #tpu.memory_space<vmem>>, %arg2: memref<1x512x512xbf16, #tpu.memory_space<vmem>>, %arg3: memref<15x512xf32, #tpu.memory_space<vmem>>, %arg4: memref<15x512xf32, #tpu.memory_space<vmem>>, %arg5: memref<1x512xf32, #tpu.memory_space<vmem>>, %arg6: memref<1x512xf32, #tpu.memory_space<vmem>>, %arg7: memref<8x512xf32, #tpu.memory_space<vmem>>, %arg8: memref<8x512xf32, #tpu.memory_space<vmem>>, %arg9: memref<8x512xf32, #tpu.memory_space<vmem>>) attributes {dimension_semantics = [#tpu.dimension_semantics<arbitrary>], iteration_bounds = array<i64: 3>, scalar_prefetch = 0 : i64, scratch_operands = 2 : i64, tpu.core_type = #tpu.core_type<tc>, window_params = [{pipeline_mode = #tpu.pipeline_mode<synchronous>, transform_indices = @transform_0, window_bounds = array<i64: 8, 512>}, {transform_indices = @transform_1, window_bounds = array<i64: 1, 512, 512>}, {pipeline_mode = #tpu.pipeline_mode<synchronous>, transform_indices = @transform_2, window_bounds = array<i64: 15, 512>}, {pipeline_mode = #tpu.pipeline_mode<synchronous>, transform_indices = @transform_3, window_bounds = array<i64: 15, 512>}, {pipeline_mode = #tpu.pipeline_mode<synchronous>, transform_indices = @transform_4, window_bounds = array<i64: 1, 512>}, {pipeline_mode = #tpu.pipeline_mode<synchronous>, transform_indices = @transform_5, window_bounds = array<i64: 1, 512>}, {pipeline_mode = #tpu.pipeline_mode<synchronous>, transform_indices = @transform_6, window_bounds = array<i64: 8, 512>}]} {
    %c0_i32 = arith.constant 0 : i32
    %0 = arith.cmpi eq, %arg0, %c0_i32 : i32
    %1 = arith.extui %0 : i1 to i32
    %c0_i32_0 = arith.constant 0 : i32
    %2 = arith.cmpi ne, %1, %c0_i32_0 : i32
    scf.if %2 {
      %c0_20 = arith.constant 0 : index
      %c0_21 = arith.constant 0 : index
      %45 = vector.load %arg1[%c0_20, %c0_21] : memref<8x512xf32, #tpu.memory_space<vmem>>, vector<8x512xf32>
      %c7 = arith.constant 7 : index
      %c0_22 = arith.constant 0 : index
      %46 = vector.load %arg3[%c7, %c0_22] : memref<15x512xf32, #tpu.memory_space<vmem>>, vector<1x512xf32>
      %47 = vector.broadcast %46 : vector<1x512xf32> to vector<8x512xf32>
      %48 = arith.mulf %47, %45 : vector<8x512xf32>
      %c8 = arith.constant 8 : index
      %c0_23 = arith.constant 0 : index
      %49 = vector.load %arg3[%c8, %c0_23] : memref<15x512xf32, #tpu.memory_space<vmem>>, vector<1x512xf32>
      %c1_i32_24 = arith.constant 1 : i32
      %50 = tpu.dynamic_rotate %45 by %c1_i32_24 dim 1 : vector<8x512xf32>, i32 -> vector<8x512xf32>
      %51 = vector.broadcast %49 : vector<1x512xf32> to vector<8x512xf32>
      %52 = arith.mulf %51, %50 : vector<8x512xf32>
      %53 = arith.addf %48, %52 : vector<8x512xf32>
      %c6 = arith.constant 6 : index
      %c0_25 = arith.constant 0 : index
      %54 = vector.load %arg3[%c6, %c0_25] : memref<15x512xf32, #tpu.memory_space<vmem>>, vector<1x512xf32>
      %c511_i32 = arith.constant 511 : i32
      %55 = tpu.dynamic_rotate %45 by %c511_i32 dim 1 : vector<8x512xf32>, i32 -> vector<8x512xf32>
      %56 = vector.broadcast %54 : vector<1x512xf32> to vector<8x512xf32>
      %57 = arith.mulf %56, %55 : vector<8x512xf32>
      %58 = arith.addf %53, %57 : vector<8x512xf32>
      %c9 = arith.constant 9 : index
      %c0_26 = arith.constant 0 : index
      %59 = vector.load %arg3[%c9, %c0_26] : memref<15x512xf32, #tpu.memory_space<vmem>>, vector<1x512xf32>
      %c2_i32_27 = arith.constant 2 : i32
      %60 = tpu.dynamic_rotate %45 by %c2_i32_27 dim 1 : vector<8x512xf32>, i32 -> vector<8x512xf32>
      %61 = vector.broadcast %59 : vector<1x512xf32> to vector<8x512xf32>
      %62 = arith.mulf %61, %60 : vector<8x512xf32>
      %63 = arith.addf %58, %62 : vector<8x512xf32>
      %c5 = arith.constant 5 : index
      %c0_28 = arith.constant 0 : index
      %64 = vector.load %arg3[%c5, %c0_28] : memref<15x512xf32, #tpu.memory_space<vmem>>, vector<1x512xf32>
      %c510_i32 = arith.constant 510 : i32
      %65 = tpu.dynamic_rotate %45 by %c510_i32 dim 1 : vector<8x512xf32>, i32 -> vector<8x512xf32>
      %66 = vector.broadcast %64 : vector<1x512xf32> to vector<8x512xf32>
      %67 = arith.mulf %66, %65 : vector<8x512xf32>
      %68 = arith.addf %63, %67 : vector<8x512xf32>
      %c10 = arith.constant 10 : index
      %c0_29 = arith.constant 0 : index
      %69 = vector.load %arg3[%c10, %c0_29] : memref<15x512xf32, #tpu.memory_space<vmem>>, vector<1x512xf32>
      %c3_i32_30 = arith.constant 3 : i32
      %70 = tpu.dynamic_rotate %45 by %c3_i32_30 dim 1 : vector<8x512xf32>, i32 -> vector<8x512xf32>
      %71 = vector.broadcast %69 : vector<1x512xf32> to vector<8x512xf32>
      %72 = arith.mulf %71, %70 : vector<8x512xf32>
      %73 = arith.addf %68, %72 : vector<8x512xf32>
      %c4 = arith.constant 4 : index
      %c0_31 = arith.constant 0 : index
      %74 = vector.load %arg3[%c4, %c0_31] : memref<15x512xf32, #tpu.memory_space<vmem>>, vector<1x512xf32>
      %c509_i32 = arith.constant 509 : i32
      %75 = tpu.dynamic_rotate %45 by %c509_i32 dim 1 : vector<8x512xf32>, i32 -> vector<8x512xf32>
      %76 = vector.broadcast %74 : vector<1x512xf32> to vector<8x512xf32>
      %77 = arith.mulf %76, %75 : vector<8x512xf32>
      %78 = arith.addf %73, %77 : vector<8x512xf32>
      %c11 = arith.constant 11 : index
      %c0_32 = arith.constant 0 : index
      %79 = vector.load %arg3[%c11, %c0_32] : memref<15x512xf32, #tpu.memory_space<vmem>>, vector<1x512xf32>
      %c4_i32_33 = arith.constant 4 : i32
      %80 = tpu.dynamic_rotate %45 by %c4_i32_33 dim 1 : vector<8x512xf32>, i32 -> vector<8x512xf32>
      %81 = vector.broadcast %79 : vector<1x512xf32> to vector<8x512xf32>
      %82 = arith.mulf %81, %80 : vector<8x512xf32>
      %83 = arith.addf %78, %82 : vector<8x512xf32>
      %c3 = arith.constant 3 : index
      %c0_34 = arith.constant 0 : index
      %84 = vector.load %arg3[%c3, %c0_34] : memref<15x512xf32, #tpu.memory_space<vmem>>, vector<1x512xf32>
      %c508_i32 = arith.constant 508 : i32
      %85 = tpu.dynamic_rotate %45 by %c508_i32 dim 1 : vector<8x512xf32>, i32 -> vector<8x512xf32>
      %86 = vector.broadcast %84 : vector<1x512xf32> to vector<8x512xf32>
      %87 = arith.mulf %86, %85 : vector<8x512xf32>
      %88 = arith.addf %83, %87 : vector<8x512xf32>
      %c12 = arith.constant 12 : index
      %c0_35 = arith.constant 0 : index
      %89 = vector.load %arg3[%c12, %c0_35] : memref<15x512xf32, #tpu.memory_space<vmem>>, vector<1x512xf32>
      %c5_i32 = arith.constant 5 : i32
      %90 = tpu.dynamic_rotate %45 by %c5_i32 dim 1 : vector<8x512xf32>, i32 -> vector<8x512xf32>
      %91 = vector.broadcast %89 : vector<1x512xf32> to vector<8x512xf32>
      %92 = arith.mulf %91, %90 : vector<8x512xf32>
      %93 = arith.addf %88, %92 : vector<8x512xf32>
      %c2 = arith.constant 2 : index
      %c0_36 = arith.constant 0 : index
      %94 = vector.load %arg3[%c2, %c0_36] : memref<15x512xf32, #tpu.memory_space<vmem>>, vector<1x512xf32>
      %c507_i32 = arith.constant 507 : i32
      %95 = tpu.dynamic_rotate %45 by %c507_i32 dim 1 : vector<8x512xf32>, i32 -> vector<8x512xf32>
      %96 = vector.broadcast %94 : vector<1x512xf32> to vector<8x512xf32>
      %97 = arith.mulf %96, %95 : vector<8x512xf32>
      %98 = arith.addf %93, %97 : vector<8x512xf32>
      %c13 = arith.constant 13 : index
      %c0_37 = arith.constant 0 : index
      %99 = vector.load %arg3[%c13, %c0_37] : memref<15x512xf32, #tpu.memory_space<vmem>>, vector<1x512xf32>
      %c6_i32 = arith.constant 6 : i32
      %100 = tpu.dynamic_rotate %45 by %c6_i32 dim 1 : vector<8x512xf32>, i32 -> vector<8x512xf32>
      %101 = vector.broadcast %99 : vector<1x512xf32> to vector<8x512xf32>
      %102 = arith.mulf %101, %100 : vector<8x512xf32>
      %103 = arith.addf %98, %102 : vector<8x512xf32>
      %c1 = arith.constant 1 : index
      %c0_38 = arith.constant 0 : index
      %104 = vector.load %arg3[%c1, %c0_38] : memref<15x512xf32, #tpu.memory_space<vmem>>, vector<1x512xf32>
      %c506_i32 = arith.constant 506 : i32
      %105 = tpu.dynamic_rotate %45 by %c506_i32 dim 1 : vector<8x512xf32>, i32 -> vector<8x512xf32>
      %106 = vector.broadcast %104 : vector<1x512xf32> to vector<8x512xf32>
      %107 = arith.mulf %106, %105 : vector<8x512xf32>
      %108 = arith.addf %103, %107 : vector<8x512xf32>
      %c14 = arith.constant 14 : index
      %c0_39 = arith.constant 0 : index
      %109 = vector.load %arg3[%c14, %c0_39] : memref<15x512xf32, #tpu.memory_space<vmem>>, vector<1x512xf32>
      %c7_i32_40 = arith.constant 7 : i32
      %110 = tpu.dynamic_rotate %45 by %c7_i32_40 dim 1 : vector<8x512xf32>, i32 -> vector<8x512xf32>
      %111 = vector.broadcast %109 : vector<1x512xf32> to vector<8x512xf32>
      %112 = arith.mulf %111, %110 : vector<8x512xf32>
      %113 = arith.addf %108, %112 : vector<8x512xf32>
      %c0_41 = arith.constant 0 : index
      %c0_42 = arith.constant 0 : index
      %114 = vector.load %arg3[%c0_41, %c0_42] : memref<15x512xf32, #tpu.memory_space<vmem>>, vector<1x512xf32>
      %c505_i32 = arith.constant 505 : i32
      %115 = tpu.dynamic_rotate %45 by %c505_i32 dim 1 : vector<8x512xf32>, i32 -> vector<8x512xf32>
      %116 = vector.broadcast %114 : vector<1x512xf32> to vector<8x512xf32>
      %117 = arith.mulf %116, %115 : vector<8x512xf32>
      %118 = arith.addf %113, %117 : vector<8x512xf32>
      %c8_i32 = arith.constant 8 : i32
      %119 = tpu.dynamic_rotate %118 by %c8_i32 dim 1 : vector<8x512xf32>, i32 -> vector<8x512xf32>
      %120 = arith.addf %118, %119 : vector<8x512xf32>
      %c16_i32 = arith.constant 16 : i32
      %121 = tpu.dynamic_rotate %120 by %c16_i32 dim 1 : vector<8x512xf32>, i32 -> vector<8x512xf32>
      %122 = arith.addf %120, %121 : vector<8x512xf32>
      %c32_i32 = arith.constant 32 : i32
      %123 = tpu.dynamic_rotate %122 by %c32_i32 dim 1 : vector<8x512xf32>, i32 -> vector<8x512xf32>
      %124 = arith.addf %122, %123 : vector<8x512xf32>
      %c64_i32 = arith.constant 64 : i32
      %125 = tpu.dynamic_rotate %124 by %c64_i32 dim 1 : vector<8x512xf32>, i32 -> vector<8x512xf32>
      %126 = arith.addf %124, %125 : vector<8x512xf32>
      %c128_i32 = arith.constant 128 : i32
      %127 = tpu.dynamic_rotate %126 by %c128_i32 dim 1 : vector<8x512xf32>, i32 -> vector<8x512xf32>
      %128 = arith.addf %126, %127 : vector<8x512xf32>
      %c256_i32 = arith.constant 256 : i32
      %129 = tpu.dynamic_rotate %128 by %c256_i32 dim 1 : vector<8x512xf32>, i32 -> vector<8x512xf32>
      %130 = arith.addf %128, %129 : vector<8x512xf32>
      %cst_43 = arith.constant dense<0.000000e+00> : vector<512xf32>
      %131 = vector.multi_reduction <add>, %130, %cst_43 [0] : vector<8x512xf32> to vector<512xf32>
      %132 = vector.shape_cast %131 : vector<512xf32> to vector<1x512xf32>
      %cst_44 = arith.constant 0.001953125 : f32
      %133 = vector.broadcast %cst_44 : f32 to vector<1x512xf32>
      %134 = arith.mulf %132, %133 : vector<1x512xf32>
      %135 = vector.broadcast %134 : vector<1x512xf32> to vector<8x512xf32>
      %136 = arith.subf %118, %135 : vector<8x512xf32>
      %137 = arith.mulf %136, %136 : vector<8x512xf32>
      %c8_i32_45 = arith.constant 8 : i32
      %138 = tpu.dynamic_rotate %137 by %c8_i32_45 dim 1 : vector<8x512xf32>, i32 -> vector<8x512xf32>
      %139 = arith.addf %137, %138 : vector<8x512xf32>
      %c16_i32_46 = arith.constant 16 : i32
      %140 = tpu.dynamic_rotate %139 by %c16_i32_46 dim 1 : vector<8x512xf32>, i32 -> vector<8x512xf32>
      %141 = arith.addf %139, %140 : vector<8x512xf32>
      %c32_i32_47 = arith.constant 32 : i32
      %142 = tpu.dynamic_rotate %141 by %c32_i32_47 dim 1 : vector<8x512xf32>, i32 -> vector<8x512xf32>
      %143 = arith.addf %141, %142 : vector<8x512xf32>
      %c64_i32_48 = arith.constant 64 : i32
      %144 = tpu.dynamic_rotate %143 by %c64_i32_48 dim 1 : vector<8x512xf32>, i32 -> vector<8x512xf32>
      %145 = arith.addf %143, %144 : vector<8x512xf32>
      %c128_i32_49 = arith.constant 128 : i32
      %146 = tpu.dynamic_rotate %145 by %c128_i32_49 dim 1 : vector<8x512xf32>, i32 -> vector<8x512xf32>
      %147 = arith.addf %145, %146 : vector<8x512xf32>
      %c256_i32_50 = arith.constant 256 : i32
      %148 = tpu.dynamic_rotate %147 by %c256_i32_50 dim 1 : vector<8x512xf32>, i32 -> vector<8x512xf32>
      %149 = arith.addf %147, %148 : vector<8x512xf32>
      %cst_51 = arith.constant dense<0.000000e+00> : vector<512xf32>
      %150 = vector.multi_reduction <add>, %149, %cst_51 [0] : vector<8x512xf32> to vector<512xf32>
      %151 = vector.shape_cast %150 : vector<512xf32> to vector<1x512xf32>
      %cst_52 = arith.constant 0.001953125 : f32
      %152 = vector.broadcast %cst_52 : f32 to vector<1x512xf32>
      %153 = arith.mulf %151, %152 : vector<1x512xf32>
      %cst_53 = arith.constant 9.99999974E-6 : f32
      %154 = vector.broadcast %cst_53 : f32 to vector<1x512xf32>
      %155 = arith.addf %153, %154 : vector<1x512xf32>
      %156 = math.rsqrt %155 : vector<1x512xf32>
      %157 = vector.broadcast %156 : vector<1x512xf32> to vector<8x512xf32>
      %158 = arith.mulf %136, %157 : vector<8x512xf32>
      %cst_54 = arith.constant 0.000000e+00 : f32
      %159 = vector.broadcast %cst_54 : f32 to vector<8x512xf32>
      %160 = arith.maximumf %158, %159 : vector<8x512xf32>
      %c0_55 = arith.constant 0 : index
      %c0_56 = arith.constant 0 : index
      %161 = vector.load %arg8[%c0_55, %c0_56] : memref<8x512xf32, #tpu.memory_space<vmem>>, vector<8x512xf32>
      tpu.vector_store %arg8[%c0_55, %c0_56], %160 {strides = array<i32>} : memref<8x512xf32, #tpu.memory_space<vmem>>, vector<8x512xf32>,
      %c0_57 = arith.constant 0 : index
      %c0_58 = arith.constant 0 : index
      %162 = vector.load %arg5[%c0_57, %c0_58] : memref<1x512xf32, #tpu.memory_space<vmem>>, vector<1x512xf32>
      %163 = vector.shape_cast %162 : vector<1x512xf32> to vector<1x512xf32>
      %164 = vector.broadcast %163 : vector<1x512xf32> to vector<8x512xf32>
      %c0_59 = arith.constant 0 : index
      %c0_60 = arith.constant 0 : index
      %165 = vector.load %arg9[%c0_59, %c0_60] : memref<8x512xf32, #tpu.memory_space<vmem>>, vector<8x512xf32>
      tpu.vector_store %arg9[%c0_59, %c0_60], %164 {strides = array<i32>} : memref<8x512xf32, #tpu.memory_space<vmem>>, vector<8x512xf32>,
    } else {
    }
    %c0 = arith.constant 0 : index
    %c0_1 = arith.constant 0 : index
    %3 = vector.load %arg8[%c0, %c0_1] : memref<8x512xf32, #tpu.memory_space<vmem>>, vector<8x512xf32>
    %4 = tpu.iota {dimensions = array<i32: 0>} : vector<8x512xi32>
    %c4_i32 = arith.constant 4 : i32
    %c0_i32_2 = arith.constant 0 : i32
    %5 = arith.cmpi eq, %c4_i32, %c0_i32_2 : i32
    %c1_i32 = arith.constant 1 : i32
    %6 = arith.select %5, %c1_i32, %c4_i32 : i32
    %7 = vector.broadcast %6 : i32 to vector<8x512xi32>
    %8 = arith.remsi %4, %7 : vector<8x512xi32>
    %c0_i32_3 = arith.constant 0 : i32
    %9 = vector.broadcast %c0_i32_3 : i32 to vector<8x512xi32>
    %10 = arith.cmpi ne, %8, %9 : vector<8x512xi32>
    %c0_i32_4 = arith.constant 0 : i32
    %11 = vector.broadcast %c0_i32_4 : i32 to vector<8x512xi32>
    %12 = arith.cmpi slt, %8, %11 : vector<8x512xi32>
    %c0_i32_5 = arith.constant 0 : i32
    %13 = arith.cmpi slt, %6, %c0_i32_5 : i32
    %14 = vector.broadcast %13 : i1 to vector<8x512xi1>
    %15 = vector.broadcast %14 : vector<8x512xi1> to vector<8x512xi1>
    %16 = arith.xori %12, %15 : vector<8x512xi1>
    %17 = arith.andi %16, %10 : vector<8x512xi1>
    %18 = vector.broadcast %6 : i32 to vector<8x512xi32>
    %19 = arith.addi %8, %18 : vector<8x512xi32>
    %20 = arith.select %17, %19, %8 : vector<8x512xi1>, vector<8x512xi32>
    %c0_i32_6 = arith.constant 0 : i32
    %21 = vector.broadcast %c0_i32_6 : i32 to vector<8x512xi32>
    %22 = arith.cmpi eq, %20, %21 : vector<8x512xi32>
    %c1_i32_7 = arith.constant 1 : i32
    %23 = tpu.dynamic_rotate %3 by %c1_i32_7 dim 0 : vector<8x512xf32>, i32 -> vector<8x512xf32>
    %cst = arith.constant 0.000000e+00 : f32
    %24 = vector.broadcast %cst : f32 to vector<8x512xf32>
    %25 = arith.select %22, %24, %23 : vector<8x512xi1>, vector<8x512xf32>
    %c3_i32 = arith.constant 3 : i32
    %26 = vector.broadcast %c3_i32 : i32 to vector<8x512xi32>
    %27 = arith.cmpi eq, %20, %26 : vector<8x512xi32>
    %c7_i32 = arith.constant 7 : i32
    %28 = tpu.dynamic_rotate %3 by %c7_i32 dim 0 : vector<8x512xf32>, i32 -> vector<8x512xf32>
    %cst_8 = arith.constant 0.000000e+00 : f32
    %29 = vector.broadcast %cst_8 : f32 to vector<8x512xf32>
    %30 = arith.select %27, %29, %28 : vector<8x512xi1>, vector<8x512xf32>
    %c0_i32_9 = arith.constant 0 : i32
    %31 = arith.cmpi eq, %arg0, %c0_i32_9 : i32
    %c1_i32_10 = arith.constant 1 : i32
    %32 = arith.cmpi eq, %arg0, %c1_i32_10 : i32
    %33 = arith.select %32, %3, %30 : vector<8x512xf32>
    %34 = arith.select %31, %25, %33 : vector<8x512xf32>
    %c0_11 = arith.constant 0 : index
    %c0_12 = arith.constant 0 : index
    %35 = vector.load %arg9[%c0_11, %c0_12] : memref<8x512xf32, #tpu.memory_space<vmem>>, vector<8x512xf32>
    %36 = arith.truncf %34 : vector<8x512xf32> to vector<8x512xbf16>
    %c0_13 = arith.constant 0 : index
    %c0_14 = arith.constant 0 : index
    %c0_15 = arith.constant 0 : index
    %37 = vector.load %arg2[%c0_13, %c0_14, %c0_15] : memref<1x512x512xbf16, #tpu.memory_space<vmem>>, vector<1x512x512xbf16>
    %38 = vector.shape_cast %37 : vector<1x512x512xbf16> to vector<512x512xbf16>
    %cst_16 = arith.constant dense<0.000000e+00> : vector<8x512xf32>
    %39 = tpu.matmul %36, %38, %cst_16 {dimension_numbers = #tpu.dot_dimension_numbers<[1], [0], [0], [1], [0, 0, 1, 1], [], []>} : vector<8x512xbf16>, vector<512x512xbf16>, vector<8x512xf32> -> vector<8x512xf32>
    %40 = arith.addf %35, %39 : vector<8x512xf32>
    %c0_17 = arith.constant 0 : index
    %c0_18 = arith.constant 0 : index
    %41 = vector.load %arg9[%c0_17, %c0_18] : memref<8x512xf32, #tpu.memory_space<vmem>>, vector<8x512xf32>
    tpu.vector_store %arg9[%c0_17, %c0_18], %40 {strides = array<i32>} : memref<8x512xf32, #tpu.memory_space<vmem>>, vector<8x512xf32>,
    %c2_i32 = arith.constant 2 : i32
    %42 = arith.cmpi eq, %arg0, %c2_i32 : i32
    %43 = arith.extui %42 : i1 to i32
    %c0_i32_19 = arith.constant 0 : i32
    %44 = arith.cmpi ne, %43, %c0_i32_19 : i32
    scf.if %44 {
      %c0_20 = arith.constant 0 : index
      %c0_21 = arith.constant 0 : index
      %45 = vector.load %arg1[%c0_20, %c0_21] : memref<8x512xf32, #tpu.memory_space<vmem>>, vector<8x512xf32>
      %c0_22 = arith.constant 0 : index
      %c0_23 = arith.constant 0 : index
      %46 = vector.load %arg9[%c0_22, %c0_23] : memref<8x512xf32, #tpu.memory_space<vmem>>, vector<8x512xf32>
      %c8_i32 = arith.constant 8 : i32
      %47 = tpu.dynamic_rotate %46 by %c8_i32 dim 1 : vector<8x512xf32>, i32 -> vector<8x512xf32>
      %48 = arith.addf %46, %47 : vector<8x512xf32>
      %c16_i32 = arith.constant 16 : i32
      %49 = tpu.dynamic_rotate %48 by %c16_i32 dim 1 : vector<8x512xf32>, i32 -> vector<8x512xf32>
      %50 = arith.addf %48, %49 : vector<8x512xf32>
      %c32_i32 = arith.constant 32 : i32
      %51 = tpu.dynamic_rotate %50 by %c32_i32 dim 1 : vector<8x512xf32>, i32 -> vector<8x512xf32>
      %52 = arith.addf %50, %51 : vector<8x512xf32>
      %c64_i32 = arith.constant 64 : i32
      %53 = tpu.dynamic_rotate %52 by %c64_i32 dim 1 : vector<8x512xf32>, i32 -> vector<8x512xf32>
      %54 = arith.addf %52, %53 : vector<8x512xf32>
      %c128_i32 = arith.constant 128 : i32
      %55 = tpu.dynamic_rotate %54 by %c128_i32 dim 1 : vector<8x512xf32>, i32 -> vector<8x512xf32>
      %56 = arith.addf %54, %55 : vector<8x512xf32>
      %c256_i32 = arith.constant 256 : i32
      %57 = tpu.dynamic_rotate %56 by %c256_i32 dim 1 : vector<8x512xf32>, i32 -> vector<8x512xf32>
      %58 = arith.addf %56, %57 : vector<8x512xf32>
      %cst_24 = arith.constant dense<0.000000e+00> : vector<512xf32>
      %59 = vector.multi_reduction <add>, %58, %cst_24 [0] : vector<8x512xf32> to vector<512xf32>
      %60 = vector.shape_cast %59 : vector<512xf32> to vector<1x512xf32>
      %cst_25 = arith.constant 0.001953125 : f32
      %61 = vector.broadcast %cst_25 : f32 to vector<1x512xf32>
      %62 = arith.mulf %60, %61 : vector<1x512xf32>
      %63 = vector.broadcast %62 : vector<1x512xf32> to vector<8x512xf32>
      %64 = arith.subf %46, %63 : vector<8x512xf32>
      %65 = arith.mulf %64, %64 : vector<8x512xf32>
      %c8_i32_26 = arith.constant 8 : i32
      %66 = tpu.dynamic_rotate %65 by %c8_i32_26 dim 1 : vector<8x512xf32>, i32 -> vector<8x512xf32>
      %67 = arith.addf %65, %66 : vector<8x512xf32>
      %c16_i32_27 = arith.constant 16 : i32
      %68 = tpu.dynamic_rotate %67 by %c16_i32_27 dim 1 : vector<8x512xf32>, i32 -> vector<8x512xf32>
      %69 = arith.addf %67, %68 : vector<8x512xf32>
      %c32_i32_28 = arith.constant 32 : i32
      %70 = tpu.dynamic_rotate %69 by %c32_i32_28 dim 1 : vector<8x512xf32>, i32 -> vector<8x512xf32>
      %71 = arith.addf %69, %70 : vector<8x512xf32>
      %c64_i32_29 = arith.constant 64 : i32
      %72 = tpu.dynamic_rotate %71 by %c64_i32_29 dim 1 : vector<8x512xf32>, i32 -> vector<8x512xf32>
      %73 = arith.addf %71, %72 : vector<8x512xf32>
      %c128_i32_30 = arith.constant 128 : i32
      %74 = tpu.dynamic_rotate %73 by %c128_i32_30 dim 1 : vector<8x512xf32>, i32 -> vector<8x512xf32>
      %75 = arith.addf %73, %74 : vector<8x512xf32>
      %c256_i32_31 = arith.constant 256 : i32
      %76 = tpu.dynamic_rotate %75 by %c256_i32_31 dim 1 : vector<8x512xf32>, i32 -> vector<8x512xf32>
      %77 = arith.addf %75, %76 : vector<8x512xf32>
      %cst_32 = arith.constant dense<0.000000e+00> : vector<512xf32>
      %78 = vector.multi_reduction <add>, %77, %cst_32 [0] : vector<8x512xf32> to vector<512xf32>
      %79 = vector.shape_cast %78 : vector<512xf32> to vector<1x512xf32>
      %cst_33 = arith.constant 0.001953125 : f32
      %80 = vector.broadcast %cst_33 : f32 to vector<1x512xf32>
      %81 = arith.mulf %79, %80 : vector<1x512xf32>
      %cst_34 = arith.constant 9.99999974E-6 : f32
      %82 = vector.broadcast %cst_34 : f32 to vector<1x512xf32>
      %83 = arith.addf %81, %82 : vector<1x512xf32>
      %84 = math.rsqrt %83 : vector<1x512xf32>
      %85 = vector.broadcast %84 : vector<1x512xf32> to vector<8x512xf32>
      %86 = arith.mulf %64, %85 : vector<8x512xf32>
      %cst_35 = arith.constant 0.000000e+00 : f32
      %87 = vector.broadcast %cst_35 : f32 to vector<8x512xf32>
      %88 = arith.maximumf %86, %87 : vector<8x512xf32>
      %c7 = arith.constant 7 : index
      %c0_36 = arith.constant 0 : index
      %89 = vector.load %arg4[%c7, %c0_36] : memref<15x512xf32, #tpu.memory_space<vmem>>, vector<1x512xf32>
      %90 = vector.broadcast %89 : vector<1x512xf32> to vector<8x512xf32>
      %91 = arith.mulf %90, %88 : vector<8x512xf32>
      %c8 = arith.constant 8 : index
      %c0_37 = arith.constant 0 : index
      %92 = vector.load %arg4[%c8, %c0_37] : memref<15x512xf32, #tpu.memory_space<vmem>>, vector<1x512xf32>
      %c1_i32_38 = arith.constant 1 : i32
      %93 = tpu.dynamic_rotate %88 by %c1_i32_38 dim 1 : vector<8x512xf32>, i32 -> vector<8x512xf32>
      %94 = vector.broadcast %92 : vector<1x512xf32> to vector<8x512xf32>
      %95 = arith.mulf %94, %93 : vector<8x512xf32>
      %96 = arith.addf %91, %95 : vector<8x512xf32>
      %c6 = arith.constant 6 : index
      %c0_39 = arith.constant 0 : index
      %97 = vector.load %arg4[%c6, %c0_39] : memref<15x512xf32, #tpu.memory_space<vmem>>, vector<1x512xf32>
      %c511_i32 = arith.constant 511 : i32
      %98 = tpu.dynamic_rotate %88 by %c511_i32 dim 1 : vector<8x512xf32>, i32 -> vector<8x512xf32>
      %99 = vector.broadcast %97 : vector<1x512xf32> to vector<8x512xf32>
      %100 = arith.mulf %99, %98 : vector<8x512xf32>
      %101 = arith.addf %96, %100 : vector<8x512xf32>
      %c9 = arith.constant 9 : index
      %c0_40 = arith.constant 0 : index
      %102 = vector.load %arg4[%c9, %c0_40] : memref<15x512xf32, #tpu.memory_space<vmem>>, vector<1x512xf32>
      %c2_i32_41 = arith.constant 2 : i32
      %103 = tpu.dynamic_rotate %88 by %c2_i32_41 dim 1 : vector<8x512xf32>, i32 -> vector<8x512xf32>
      %104 = vector.broadcast %102 : vector<1x512xf32> to vector<8x512xf32>
      %105 = arith.mulf %104, %103 : vector<8x512xf32>
      %106 = arith.addf %101, %105 : vector<8x512xf32>
      %c5 = arith.constant 5 : index
      %c0_42 = arith.constant 0 : index
      %107 = vector.load %arg4[%c5, %c0_42] : memref<15x512xf32, #tpu.memory_space<vmem>>, vector<1x512xf32>
      %c510_i32 = arith.constant 510 : i32
      %108 = tpu.dynamic_rotate %88 by %c510_i32 dim 1 : vector<8x512xf32>, i32 -> vector<8x512xf32>
      %109 = vector.broadcast %107 : vector<1x512xf32> to vector<8x512xf32>
      %110 = arith.mulf %109, %108 : vector<8x512xf32>
      %111 = arith.addf %106, %110 : vector<8x512xf32>
      %c10 = arith.constant 10 : index
      %c0_43 = arith.constant 0 : index
      %112 = vector.load %arg4[%c10, %c0_43] : memref<15x512xf32, #tpu.memory_space<vmem>>, vector<1x512xf32>
      %c3_i32_44 = arith.constant 3 : i32
      %113 = tpu.dynamic_rotate %88 by %c3_i32_44 dim 1 : vector<8x512xf32>, i32 -> vector<8x512xf32>
      %114 = vector.broadcast %112 : vector<1x512xf32> to vector<8x512xf32>
      %115 = arith.mulf %114, %113 : vector<8x512xf32>
      %116 = arith.addf %111, %115 : vector<8x512xf32>
      %c4 = arith.constant 4 : index
      %c0_45 = arith.constant 0 : index
      %117 = vector.load %arg4[%c4, %c0_45] : memref<15x512xf32, #tpu.memory_space<vmem>>, vector<1x512xf32>
      %c509_i32 = arith.constant 509 : i32
      %118 = tpu.dynamic_rotate %88 by %c509_i32 dim 1 : vector<8x512xf32>, i32 -> vector<8x512xf32>
      %119 = vector.broadcast %117 : vector<1x512xf32> to vector<8x512xf32>
      %120 = arith.mulf %119, %118 : vector<8x512xf32>
      %121 = arith.addf %116, %120 : vector<8x512xf32>
      %c11 = arith.constant 11 : index
      %c0_46 = arith.constant 0 : index
      %122 = vector.load %arg4[%c11, %c0_46] : memref<15x512xf32, #tpu.memory_space<vmem>>, vector<1x512xf32>
      %c4_i32_47 = arith.constant 4 : i32
      %123 = tpu.dynamic_rotate %88 by %c4_i32_47 dim 1 : vector<8x512xf32>, i32 -> vector<8x512xf32>
      %124 = vector.broadcast %122 : vector<1x512xf32> to vector<8x512xf32>
      %125 = arith.mulf %124, %123 : vector<8x512xf32>
      %126 = arith.addf %121, %125 : vector<8x512xf32>
      %c3 = arith.constant 3 : index
      %c0_48 = arith.constant 0 : index
      %127 = vector.load %arg4[%c3, %c0_48] : memref<15x512xf32, #tpu.memory_space<vmem>>, vector<1x512xf32>
      %c508_i32 = arith.constant 508 : i32
      %128 = tpu.dynamic_rotate %88 by %c508_i32 dim 1 : vector<8x512xf32>, i32 -> vector<8x512xf32>
      %129 = vector.broadcast %127 : vector<1x512xf32> to vector<8x512xf32>
      %130 = arith.mulf %129, %128 : vector<8x512xf32>
      %131 = arith.addf %126, %130 : vector<8x512xf32>
      %c12 = arith.constant 12 : index
      %c0_49 = arith.constant 0 : index
      %132 = vector.load %arg4[%c12, %c0_49] : memref<15x512xf32, #tpu.memory_space<vmem>>, vector<1x512xf32>
      %c5_i32 = arith.constant 5 : i32
      %133 = tpu.dynamic_rotate %88 by %c5_i32 dim 1 : vector<8x512xf32>, i32 -> vector<8x512xf32>
      %134 = vector.broadcast %132 : vector<1x512xf32> to vector<8x512xf32>
      %135 = arith.mulf %134, %133 : vector<8x512xf32>
      %136 = arith.addf %131, %135 : vector<8x512xf32>
      %c2 = arith.constant 2 : index
      %c0_50 = arith.constant 0 : index
      %137 = vector.load %arg4[%c2, %c0_50] : memref<15x512xf32, #tpu.memory_space<vmem>>, vector<1x512xf32>
      %c507_i32 = arith.constant 507 : i32
      %138 = tpu.dynamic_rotate %88 by %c507_i32 dim 1 : vector<8x512xf32>, i32 -> vector<8x512xf32>
      %139 = vector.broadcast %137 : vector<1x512xf32> to vector<8x512xf32>
      %140 = arith.mulf %139, %138 : vector<8x512xf32>
      %141 = arith.addf %136, %140 : vector<8x512xf32>
      %c13 = arith.constant 13 : index
      %c0_51 = arith.constant 0 : index
      %142 = vector.load %arg4[%c13, %c0_51] : memref<15x512xf32, #tpu.memory_space<vmem>>, vector<1x512xf32>
      %c6_i32 = arith.constant 6 : i32
      %143 = tpu.dynamic_rotate %88 by %c6_i32 dim 1 : vector<8x512xf32>, i32 -> vector<8x512xf32>
      %144 = vector.broadcast %142 : vector<1x512xf32> to vector<8x512xf32>
      %145 = arith.mulf %144, %143 : vector<8x512xf32>
      %146 = arith.addf %141, %145 : vector<8x512xf32>
      %c1 = arith.constant 1 : index
      %c0_52 = arith.constant 0 : index
      %147 = vector.load %arg4[%c1, %c0_52] : memref<15x512xf32, #tpu.memory_space<vmem>>, vector<1x512xf32>
      %c506_i32 = arith.constant 506 : i32
      %148 = tpu.dynamic_rotate %88 by %c506_i32 dim 1 : vector<8x512xf32>, i32 -> vector<8x512xf32>
      %149 = vector.broadcast %147 : vector<1x512xf32> to vector<8x512xf32>
      %150 = arith.mulf %149, %148 : vector<8x512xf32>
      %151 = arith.addf %146, %150 : vector<8x512xf32>
      %c14 = arith.constant 14 : index
      %c0_53 = arith.constant 0 : index
      %152 = vector.load %arg4[%c14, %c0_53] : memref<15x512xf32, #tpu.memory_space<vmem>>, vector<1x512xf32>
      %c7_i32_54 = arith.constant 7 : i32
      %153 = tpu.dynamic_rotate %88 by %c7_i32_54 dim 1 : vector<8x512xf32>, i32 -> vector<8x512xf32>
      %154 = vector.broadcast %152 : vector<1x512xf32> to vector<8x512xf32>
      %155 = arith.mulf %154, %153 : vector<8x512xf32>
      %156 = arith.addf %151, %155 : vector<8x512xf32>
      %c0_55 = arith.constant 0 : index
      %c0_56 = arith.constant 0 : index
      %157 = vector.load %arg4[%c0_55, %c0_56] : memref<15x512xf32, #tpu.memory_space<vmem>>, vector<1x512xf32>
      %c505_i32 = arith.constant 505 : i32
      %158 = tpu.dynamic_rotate %88 by %c505_i32 dim 1 : vector<8x512xf32>, i32 -> vector<8x512xf32>
      %159 = vector.broadcast %157 : vector<1x512xf32> to vector<8x512xf32>
      %160 = arith.mulf %159, %158 : vector<8x512xf32>
      %161 = arith.addf %156, %160 : vector<8x512xf32>
      %c0_57 = arith.constant 0 : index
      %c0_58 = arith.constant 0 : index
      %162 = vector.load %arg6[%c0_57, %c0_58] : memref<1x512xf32, #tpu.memory_space<vmem>>, vector<1x512xf32>
      %163 = vector.broadcast %162 : vector<1x512xf32> to vector<8x512xf32>
      %164 = arith.addf %161, %163 : vector<8x512xf32>
      %c8_i32_59 = arith.constant 8 : i32
      %165 = tpu.dynamic_rotate %164 by %c8_i32_59 dim 1 : vector<8x512xf32>, i32 -> vector<8x512xf32>
      %166 = arith.addf %164, %165 : vector<8x512xf32>
      %c16_i32_60 = arith.constant 16 : i32
      %167 = tpu.dynamic_rotate %166 by %c16_i32_60 dim 1 : vector<8x512xf32>, i32 -> vector<8x512xf32>
      %168 = arith.addf %166, %167 : vector<8x512xf32>
      %c32_i32_61 = arith.constant 32 : i32
      %169 = tpu.dynamic_rotate %168 by %c32_i32_61 dim 1 : vector<8x512xf32>, i32 -> vector<8x512xf32>
      %170 = arith.addf %168, %169 : vector<8x512xf32>
      %c64_i32_62 = arith.constant 64 : i32
      %171 = tpu.dynamic_rotate %170 by %c64_i32_62 dim 1 : vector<8x512xf32>, i32 -> vector<8x512xf32>
      %172 = arith.addf %170, %171 : vector<8x512xf32>
      %c128_i32_63 = arith.constant 128 : i32
      %173 = tpu.dynamic_rotate %172 by %c128_i32_63 dim 1 : vector<8x512xf32>, i32 -> vector<8x512xf32>
      %174 = arith.addf %172, %173 : vector<8x512xf32>
      %c256_i32_64 = arith.constant 256 : i32
      %175 = tpu.dynamic_rotate %174 by %c256_i32_64 dim 1 : vector<8x512xf32>, i32 -> vector<8x512xf32>
      %176 = arith.addf %174, %175 : vector<8x512xf32>
      %cst_65 = arith.constant dense<0.000000e+00> : vector<512xf32>
      %177 = vector.multi_reduction <add>, %176, %cst_65 [0] : vector<8x512xf32> to vector<512xf32>
      %178 = vector.shape_cast %177 : vector<512xf32> to vector<1x512xf32>
      %cst_66 = arith.constant 0.001953125 : f32
      %179 = vector.broadcast %cst_66 : f32 to vector<1x512xf32>
      %180 = arith.mulf %178, %179 : vector<1x512xf32>
      %181 = vector.broadcast %180 : vector<1x512xf32> to vector<8x512xf32>
      %182 = arith.subf %164, %181 : vector<8x512xf32>
      %183 = arith.mulf %182, %182 : vector<8x512xf32>
      %c8_i32_67 = arith.constant 8 : i32
      %184 = tpu.dynamic_rotate %183 by %c8_i32_67 dim 1 : vector<8x512xf32>, i32 -> vector<8x512xf32>
      %185 = arith.addf %183, %184 : vector<8x512xf32>
      %c16_i32_68 = arith.constant 16 : i32
      %186 = tpu.dynamic_rotate %185 by %c16_i32_68 dim 1 : vector<8x512xf32>, i32 -> vector<8x512xf32>
      %187 = arith.addf %185, %186 : vector<8x512xf32>
      %c32_i32_69 = arith.constant 32 : i32
      %188 = tpu.dynamic_rotate %187 by %c32_i32_69 dim 1 : vector<8x512xf32>, i32 -> vector<8x512xf32>
      %189 = arith.addf %187, %188 : vector<8x512xf32>
      %c64_i32_70 = arith.constant 64 : i32
      %190 = tpu.dynamic_rotate %189 by %c64_i32_70 dim 1 : vector<8x512xf32>, i32 -> vector<8x512xf32>
      %191 = arith.addf %189, %190 : vector<8x512xf32>
      %c128_i32_71 = arith.constant 128 : i32
      %192 = tpu.dynamic_rotate %191 by %c128_i32_71 dim 1 : vector<8x512xf32>, i32 -> vector<8x512xf32>
      %193 = arith.addf %191, %192 : vector<8x512xf32>
      %c256_i32_72 = arith.constant 256 : i32
      %194 = tpu.dynamic_rotate %193 by %c256_i32_72 dim 1 : vector<8x512xf32>, i32 -> vector<8x512xf32>
      %195 = arith.addf %193, %194 : vector<8x512xf32>
      %cst_73 = arith.constant dense<0.000000e+00> : vector<512xf32>
      %196 = vector.multi_reduction <add>, %195, %cst_73 [0] : vector<8x512xf32> to vector<512xf32>
      %197 = vector.shape_cast %196 : vector<512xf32> to vector<1x512xf32>
      %cst_74 = arith.constant 0.001953125 : f32
      %198 = vector.broadcast %cst_74 : f32 to vector<1x512xf32>
      %199 = arith.mulf %197, %198 : vector<1x512xf32>
      %cst_75 = arith.constant 9.99999974E-6 : f32
      %200 = vector.broadcast %cst_75 : f32 to vector<1x512xf32>
      %201 = arith.addf %199, %200 : vector<1x512xf32>
      %202 = math.rsqrt %201 : vector<1x512xf32>
      %203 = vector.broadcast %202 : vector<1x512xf32> to vector<8x512xf32>
      %204 = arith.mulf %182, %203 : vector<8x512xf32>
      %205 = arith.addf %204, %45 : vector<8x512xf32>
      %cst_76 = arith.constant 0.000000e+00 : f32
      %206 = vector.broadcast %cst_76 : f32 to vector<8x512xf32>
      %207 = arith.maximumf %205, %206 : vector<8x512xf32>
      %c0_77 = arith.constant 0 : index
      %c0_78 = arith.constant 0 : index
      %208 = vector.load %arg7[%c0_77, %c0_78] : memref<8x512xf32, #tpu.memory_space<vmem>>, vector<8x512xf32>
      tpu.vector_store %arg7[%c0_77, %c0_78], %207 {strides = array<i32>} : memref<8x512xf32, #tpu.memory_space<vmem>>, vector<8x512xf32>,
    } else {
    }
    return
  }
  func.func @transform_0(%arg0: i32) -> (i32, i32) {
    %c0_i32 = arith.constant 0 : i32
    %c0_i32_0 = arith.constant 0 : i32
    %c0_i32_1 = arith.constant 0 : i32
    return %c0_i32, %c0_i32_0 : i32, i32
  }
  func.func @transform_1(%arg0: i32) -> (i32, i32, i32) {
    %c0_i32 = arith.constant 0 : i32
    %c0_i32_0 = arith.constant 0 : i32
    %c0_i32_1 = arith.constant 0 : i32
    return %arg0, %c0_i32, %c0_i32_0 : i32, i32, i32
  }
  func.func @transform_2(%arg0: i32) -> (i32, i32) {
    %c0_i32 = arith.constant 0 : i32
    %c0_i32_0 = arith.constant 0 : i32
    %c0_i32_1 = arith.constant 0 : i32
    return %c0_i32, %c0_i32_0 : i32, i32
  }
  func.func @transform_3(%arg0: i32) -> (i32, i32) {
    %c0_i32 = arith.constant 0 : i32
    %c0_i32_0 = arith.constant 0 : i32
    %c0_i32_1 = arith.constant 0 : i32
    return %c0_i32, %c0_i32_0 : i32, i32
  }
  func.func @transform_4(%arg0: i32) -> (i32, i32) {
    %c0_i32 = arith.constant 0 : i32
    %c0_i32_0 = arith.constant 0 : i32
    %c0_i32_1 = arith.constant 0 : i32
    return %c0_i32, %c0_i32_0 : i32, i32
  }
  func.func @transform_5(%arg0: i32) -> (i32, i32) {
    %c0_i32 = arith.constant 0 : i32
    %c0_i32_0 = arith.constant 0 : i32
    %c0_i32_1 = arith.constant 0 : i32
    return %c0_i32, %c0_i32_0 : i32, i32
  }
  func.func @transform_6(%arg0: i32) -> (i32, i32) {
    %c0_i32 = arith.constant 0 : i32
    %c0_i32_0 = arith.constant 0 : i32
    %c0_i32_1 = arith.constant 0 : i32
    return %c0_i32, %c0_i32_0 : i32, i32
  }
}

</mosaic_0001>

<llo_original>
// kernel: identity_block_forward.1
$region0: #{identity_block_forward.1}
  #allocation0 [shape = 'u32[]', space=smem, size = 0x4, offset = 0x4, fixed_abs, tag = 'smem constant byte address 0x4 - core index']
  #allocation1 [shape = 'u32[144,128]{1,0:T(1,128)}', space=vmem, size = 0x12000, scoped, tag = 'internal scratch']
  #allocation2 [shape = 'f32[8,512]{1,0:T(8,128)}', space=vmem, size = 0x4000, scoped, tag = 'scratch operand']
  #allocation3 [shape = 'f32[8,512]{1,0:T(8,128)}', space=vmem, size = 0x4000, scoped, tag = 'scratch operand']
  %s0 = inlined_call_operand.vmem [shape: f32[8,512], index: 0, kind: input, shape index: {}, may-alias: {0,6}]
  %s1 = inlined_call_operand.hbm [shape: bf16[3,512,512], index: 1, kind: input, shape index: {}]
  %s2 = inlined_call_operand.hbm [shape: f32[15,512], index: 2, kind: input, shape index: {}]
  %s3 = inlined_call_operand.hbm [shape: f32[15,512], index: 3, kind: input, shape index: {}]
  %s4 = inlined_call_operand.hbm [shape: f32[1,512], index: 4, kind: input, shape index: {}]
  %s5 = inlined_call_operand.hbm [shape: f32[1,512], index: 5, kind: input, shape index: {}]
  %s6 = inlined_call_operand.vmem [shape: f32[8,512], index: 6, kind: output, shape index: {}, may-alias: {0,6}]
  %s7 = sld [smem:[#allocation0]]
  $region85: #{identity_block_forward.1} parent=0
    _
  %s9 = ssub.s32 1, %s7
  %s10 = scalar_select 0, %s9, %s7
  $region1: #{identity_block_forward.1} parent=0
    #allocation4 [shape = 'u8[1048576]{0}', space=vmem, size = 0x100000, scoped, tag = 'input window, operand 1']
    #allocation5 [shape = 's32[2]{0}', space=sflag, size = 0x8, scoped, tag = 'scoped memory for identity_block_forward.1']
    #allocation6 [shape = 'u8[32768]{0}', space=vmem, size = 0x8000, scoped, tag = 'input window, operand 2, single buffered']
    #allocation7 [shape = 's32[1]{0}', space=sflag, size = 0x4, scoped, tag = 'scoped memory for identity_block_forward.1']
    #allocation8 [shape = 'u8[32768]{0}', space=vmem, size = 0x8000, scoped, tag = 'input window, operand 3, single buffered']
    #allocation9 [shape = 'u8[2048]{0}', space=vmem, size = 0x800, scoped, tag = 'input window, operand 4, single buffered']
    #allocation10 [shape = 's32[1]{0}', space=sflag, size = 0x4, scoped, tag = 'scoped memory for identity_block_forward.1']
    #allocation11 [shape = 'u8[2048]{0}', space=vmem, size = 0x800, scoped, tag = 'input window, operand 5, single buffered']
    %11 = vsyncpa [#allocation5], 0
    %s12 = scalar_lea.sflag [#allocation5], 1
    %13 = vsyncpa %s12, 0
    %14 = vsyncpa [#allocation7], 0
    %15 = vsyncpa [#allocation10], 0
    loop: start=0, step=1, limit=5
    $region2: #{identity_block_forward.1} parent=1 // loop_pre_header
      _
    $region3: #{identity_block_forward.1} parent=1 // loop_header
      %s17 = sphi 0, %s21
      %p18 = scmp.ge.s32.totalorder %s17, 5
      %s25 = sphi 0, %s25
      %s27 = sphi 0, %s25
      %s28 = sphi 0, %s27
      %s42 = sphi 0, %s28
      %s48 = sphi 0, %s50
      %s51 = sphi 0, %s48
      %s52 = sphi 0, %s51
      %s68 = sphi 0, %s52
      %s72 = sphi 0, %s72
      %s74 = sphi 0, %s72
      %s75 = sphi 0, %s74
      %s89 = sphi 0, %s75
      %s93 = sphi 0, %s93
      %s95 = sphi 0, %s93
      %s96 = sphi 0, %s95
      %s110 = sphi 0, %s96
      %s114 = sphi 0, %s114
      %s116 = sphi 0, %s114
      %s117 = sphi 0, %s116
      %s131 = sphi 0, %s117
      %s135 = sphi 0, %s135
      %s137 = sphi 0, %s135
      %s138 = sphi 0, %s137
      %s152 = sphi 0, %s138
      %s156 = sphi 0, %s156
      %s158 = sphi 0, %s156
      %s159 = sphi 0, %s158
      %s173 = sphi 0, %s159
    $region4: #{identity_block_forward.1} parent=1 // loop_header_branch
      %20 = sbr.rel (%p18) target = $region8
    $region5: #{identity_block_forward.1} parent=1 // loop_body
      %s22 = ssub.s32 %s17, 1
      %s23 = ssub.s32 %s17, 2
      %s24 = sadd.s32 %s17, 1
      %s26 = sadd.s32 %s25, 1
      %p29 = scmp.eq.s32.totalorder %s17, 2
      %p30 = scmp.ne.s32.totalorder %s25, %s27
      %p31 = scmp.eq.s32.totalorder %s17, 0
      %p32 = por %p30, %p31
      %p33 = scmp.ne.s32.totalorder %s25, %s27
      %p34 = scmp.eq.s32.totalorder %s22, 2
      %p35 = por %p33, %p34
      %p36 = scmp.ne.s32.totalorder %s27, %s28
      %p37 = scmp.eq.s32.totalorder %s22, 0
      %p38 = por %p36, %p37
      %p39 = scmp.ne.s32.totalorder %s27, %s28
      %p40 = scmp.eq.s32.totalorder %s23, 2
      %p41 = por %p39, %p40
      %p43 = scmp.ne.s32.totalorder %s28, %s42
      %p44 = scmp.eq.s32.totalorder %s23, 0
      %p45 = por %p43, %p44
      %s46 = ssub.s32 %s17, %s24
      %p47 = scmp.eq.s32.totalorder %s46, 0
      %s49 = sadd.s32 %s48, 1
      %s50 = scalar_select %p47, %s48, %s49
      %p53 = pneg %p47
      %p54 = scmp.eq.s32.totalorder %s17, 2
      %p55 = por %p53, %p54
      %p56 = scmp.ne.s32.totalorder %s48, %s51
      %p57 = scmp.eq.s32.totalorder %s17, 0
      %p58 = por %p56, %p57
      %p59 = scmp.ne.s32.totalorder %s48, %s51
      %p60 = scmp.eq.s32.totalorder %s22, 2
      %p61 = por %p59, %p60
      %p62 = scmp.ne.s32.totalorder %s51, %s52
      %p63 = scmp.eq.s32.totalorder %s22, 0
      %p64 = por %p62, %p63
      %p65 = scmp.ne.s32.totalorder %s51, %s52
      %p66 = scmp.eq.s32.totalorder %s23, 2
      %p67 = por %p65, %p66
      %p69 = scmp.ne.s32.totalorder %s52, %s68
      %p70 = scmp.eq.s32.totalorder %s23, 0
      %p71 = por %p69, %p70
      %s73 = sadd.s32 %s72, 1
      %p76 = scmp.eq.s32.totalorder %s17, 2
      %p77 = scmp.ne.s32.totalorder %s72, %s74
      %p78 = scmp.eq.s32.totalorder %s17, 0
      %p79 = por %p77, %p78
      %p80 = scmp.ne.s32.totalorder %s72, %s74
      %p81 = scmp.eq.s32.totalorder %s22, 2
      %p82 = por %p80, %p81
      %p83 = scmp.ne.s32.totalorder %s74, %s75
      %p84 = scmp.eq.s32.totalorder %s22, 0
      %p85 = por %p83, %p84
      %p86 = scmp.ne.s32.totalorder %s74, %s75
      %p87 = scmp.eq.s32.totalorder %s23, 2
      %p88 = por %p86, %p87
      %p90 = scmp.ne.s32.totalorder %s75, %s89
      %p91 = scmp.eq.s32.totalorder %s23, 0
      %p92 = por %p90, %p91
      %s94 = sadd.s32 %s93, 1
      %p97 = scmp.eq.s32.totalorder %s17, 2
      %p98 = scmp.ne.s32.totalorder %s93, %s95
      %p99 = scmp.eq.s32.totalorder %s17, 0
      %p100 = por %p98, %p99
      %p101 = scmp.ne.s32.totalorder %s93, %s95
      %p102 = scmp.eq.s32.totalorder %s22, 2
      %p103 = por %p101, %p102
      %p104 = scmp.ne.s32.totalorder %s95, %s96
      %p105 = scmp.eq.s32.totalorder %s22, 0
      %p106 = por %p104, %p105
      %p107 = scmp.ne.s32.totalorder %s95, %s96
      %p108 = scmp.eq.s32.totalorder %s23, 2
      %p109 = por %p107, %p108
      %p111 = scmp.ne.s32.totalorder %s96, %s110
      %p112 = scmp.eq.s32.totalorder %s23, 0
      %p113 = por %p111, %p112
      %s115 = sadd.s32 %s114, 1
      %p118 = scmp.eq.s32.totalorder %s17, 2
      %p119 = scmp.ne.s32.totalorder %s114, %s116
      %p120 = scmp.eq.s32.totalorder %s17, 0
      %p121 = por %p119, %p120
      %p122 = scmp.ne.s32.totalorder %s114, %s116
      %p123 = scmp.eq.s32.totalorder %s22, 2
      %p124 = por %p122, %p123
      %p125 = scmp.ne.s32.totalorder %s116, %s117
      %p126 = scmp.eq.s32.totalorder %s22, 0
      %p127 = por %p125, %p126
      %p128 = scmp.ne.s32.totalorder %s116, %s117
      %p129 = scmp.eq.s32.totalorder %s23, 2
      %p130 = por %p128, %p129
      %p132 = scmp.ne.s32.totalorder %s117, %s131
      %p133 = scmp.eq.s32.totalorder %s23, 0
      %p134 = por %p132, %p133
      %s136 = sadd.s32 %s135, 1
      %p139 = scmp.eq.s32.totalorder %s17, 2
      %p140 = scmp.ne.s32.totalorder %s135, %s137
      %p141 = scmp.eq.s32.totalorder %s17, 0
      %p142 = por %p140, %p141
      %p143 = scmp.ne.s32.totalorder %s135, %s137
      %p144 = scmp.eq.s32.totalorder %s22, 2
      %p145 = por %p143, %p144
      %p146 = scmp.ne.s32.totalorder %s137, %s138
      %p147 = scmp.eq.s32.totalorder %s22, 0
      %p148 = por %p146, %p147
      %p149 = scmp.ne.s32.totalorder %s137, %s138
      %p150 = scmp.eq.s32.totalorder %s23, 2
      %p151 = por %p149, %p150
      %p153 = scmp.ne.s32.totalorder %s138, %s152
      %p154 = scmp.eq.s32.totalorder %s23, 0
      %p155 = por %p153, %p154
      %s157 = sadd.s32 %s156, 1
      %p160 = scmp.eq.s32.totalorder %s17, 2
      %p161 = scmp.ne.s32.totalorder %s156, %s158
      %p162 = scmp.eq.s32.totalorder %s17, 0
      %p163 = por %p161, %p162
      %p164 = scmp.ne.s32.totalorder %s156, %s158
      %p165 = scmp.eq.s32.totalorder %s22, 2
      %p166 = por %p164, %p165
      %p167 = scmp.ne.s32.totalorder %s158, %s159
      %p168 = scmp.eq.s32.totalorder %s22, 0
      %p169 = por %p167, %p168
      %p170 = scmp.ne.s32.totalorder %s158, %s159
      %p171 = scmp.eq.s32.totalorder %s23, 2
      %p172 = por %p170, %p171
      %p174 = scmp.ne.s32.totalorder %s159, %s173
      %p175 = scmp.eq.s32.totalorder %s23, 0
      %p176 = por %p174, %p175
      %p177 = scmp.le.s32.totalorder 1, %s17
      %p178 = scmp.lt.s32.totalorder %s17, 4
      %p179 = pnand %p177, %p178
      %p180 = pneg %p179
      // Predicated region
      $region9: #{identity_block_forward.1} parent=5 // pred_check
        _
      $region10: #{identity_block_forward.1} parent=5 // pred_check_branch
        %182 = sbr.rel (%p179) target = $region12
      $region11: #{identity_block_forward.1} parent=5 // pred_region
        %s183 = ssub.s32 %s17, 1
        // Predicated region
        $region13: #{identity_block_forward.1} parent=11 // pred_check
          %p184 = pneg %p38
        $region14: #{identity_block_forward.1} parent=11 // pred_check_branch
          %186 = sbr.rel (%p184) target = $region16
        $region15: #{identity_block_forward.1} parent=11 // pred_region
          _
        $region16: #{identity_block_forward.1} parent=11 // pred_fallthru
          _
        // Predicated region
        $region17: #{identity_block_forward.1} parent=11 // pred_check
          %p187 = pneg %p85
        $region18: #{identity_block_forward.1} parent=11 // pred_check_branch
          %189 = sbr.rel (%p187) target = $region20
        $region19: #{identity_block_forward.1} parent=11 // pred_region
          %s191 = ssub.s32 1024, 1024
          %192 = vsyncadd [#allocation7], %s191
          %s193 = sshll.u32 [#allocation6], 4
          %s194 = int_to_ptr.vmem [resolvable:$true] %s193
          %199 = dma.hbm_to_vmem [thread:$0]  %s2, 1024, %s194, [#allocation7], 512, 512, 32
        $region20: #{identity_block_forward.1} parent=11 // pred_fallthru
          _
        // Predicated region
        $region21: #{identity_block_forward.1} parent=11 // pred_check
          %p200 = pneg %p106
        $region22: #{identity_block_forward.1} parent=11 // pred_check_branch
          %202 = sbr.rel (%p200) target = $region24
        $region23: #{identity_block_forward.1} parent=11 // pred_region
          %s204 = ssub.s32 1024, 1024
          %205 = vsyncadd [#allocation7], %s204
          %s206 = sshll.u32 [#allocation8], 4
          %s207 = int_to_ptr.vmem [resolvable:$true] %s206
          %212 = dma.hbm_to_vmem [thread:$0]  %s3, 1024, %s207, [#allocation7], 512, 512, 32
        $region24: #{identity_block_forward.1} parent=11 // pred_fallthru
          _
        // Predicated region
        $region25: #{identity_block_forward.1} parent=11 // pred_check
          %p213 = pneg %p127
        $region26: #{identity_block_forward.1} parent=11 // pred_check_branch
          %215 = sbr.rel (%p213) target = $region28
        $region27: #{identity_block_forward.1} parent=11 // pred_region
          %s217 = ssub.s32 64, 64
          %218 = vsyncadd [#allocation10], %s217
          %s220 = sshll.u32 [#allocation9], 4
          %s221 = int_to_ptr.vmem [resolvable:$true] %s220
          %223 = dma.hbm_to_vmem [thread:$0]  %s4, 64, %s221, [#allocation10]
        $region28: #{identity_block_forward.1} parent=11 // pred_fallthru
          _
        // Predicated region
        $region29: #{identity_block_forward.1} parent=11 // pred_check
          %p224 = pneg %p148
        $region30: #{identity_block_forward.1} parent=11 // pred_check_branch
          %226 = sbr.rel (%p224) target = $region32
        $region31: #{identity_block_forward.1} parent=11 // pred_region
          %s228 = ssub.s32 64, 64
          %229 = vsyncadd [#allocation10], %s228
          %s231 = sshll.u32 [#allocation11], 4
          %s232 = int_to_ptr.vmem [resolvable:$true] %s231
          %234 = dma.hbm_to_vmem [thread:$0]  %s5, 64, %s232, [#allocation10]
        $region32: #{identity_block_forward.1} parent=11 // pred_fallthru
          _
      $region12: #{identity_block_forward.1} parent=5 // pred_fallthru
        _
      %p235 = scmp.lt.s32.totalorder %s17, 3
      // Predicated region
      $region33: #{identity_block_forward.1} parent=5 // pred_check
        %p236 = pneg %p235
      $region34: #{identity_block_forward.1} parent=5 // pred_check_branch
        %238 = sbr.rel (%p236) target = $region36
      $region35: #{identity_block_forward.1} parent=5 // pred_region
        // Predicated region
        $region37: #{identity_block_forward.1} parent=35 // pred_check
          %p239 = pneg %p58
        $region38: #{identity_block_forward.1} parent=35 // pred_check_branch
          %241 = sbr.rel (%p239) target = $region40
        $region39: #{identity_block_forward.1} parent=35 // pred_region
          %s242 = sand.u32 %s48, 1
          %s243 = scalar_lea.sflag [#allocation5], %s242
          %s244 = sand.u32 %s48, 1
          %s245 = smul.addr %s244, 1024
          %s246 = scalar_lea.vmem [#allocation4], %s245
          %s248 = ssub.s32 16384, 16384
          %249 = vsyncadd %s243, %s248
          %s250 = smul.addr %s17, 256
          %s251 = smul.addr %s250, 64
          %s252 = scalar_lea.hbm %s1, %s251
          %s253 = sshll.u32 %s246, 4
          %s254 = int_to_ptr.vmem [resolvable:$true] %s253
          %259 = dma.hbm_to_vmem [thread:$0]  %s252, 16384, %s254, %s243, 256, 256, 16
        $region40: #{identity_block_forward.1} parent=35 // pred_fallthru
          _
      $region36: #{identity_block_forward.1} parent=5 // pred_fallthru
        _
      %p260 = scmp.le.s32.totalorder 1, %s17
      %p261 = scmp.lt.s32.totalorder %s17, 4
      %p262 = pnand %p260, %p261
      %p263 = pneg %p262
      // Predicated region
      $region41: #{identity_block_forward.1} parent=5 // pred_check
        _
      $region42: #{identity_block_forward.1} parent=5 // pred_check_branch
        %265 = sbr.rel (%p262) target = $region44
      $region43: #{identity_block_forward.1} parent=5 // pred_region
        %s266 = ssub.s32 %s17, 1
        %s267 = sand.u32 %s51, 1
        %s268 = scalar_lea.sflag [#allocation5], %s267
        %s269 = sand.u32 %s51, 1
        %s270 = smul.addr %s269, 1024
        %s271 = scalar_lea.vmem [#allocation4], %s270
        // Predicated region
        $region45: #{identity_block_forward.1} parent=43 // pred_check
          %p272 = pneg %p64
        $region46: #{identity_block_forward.1} parent=43 // pred_check_branch
          %274 = sbr.rel (%p272) target = $region48
        $region47: #{identity_block_forward.1} parent=43 // pred_region
          %275 = dma.done %s268, 16384
        $region48: #{identity_block_forward.1} parent=43 // pred_fallthru
          _
        // Predicated region
        $region49: #{identity_block_forward.1} parent=43 // pred_check
          %p276 = pneg %p85
        $region50: #{identity_block_forward.1} parent=43 // pred_check_branch
          %278 = sbr.rel (%p276) target = $region52
        $region51: #{identity_block_forward.1} parent=43 // pred_region
          %279 = dma.done [#allocation7], 1024
        $region52: #{identity_block_forward.1} parent=43 // pred_fallthru
          _
        // Predicated region
        $region53: #{identity_block_forward.1} parent=43 // pred_check
          %p280 = pneg %p106
        $region54: #{identity_block_forward.1} parent=43 // pred_check_branch
          %282 = sbr.rel (%p280) target = $region56
        $region55: #{identity_block_forward.1} parent=43 // pred_region
          %283 = dma.done [#allocation7], 1024
        $region56: #{identity_block_forward.1} parent=43 // pred_fallthru
          _
        // Predicated region
        $region57: #{identity_block_forward.1} parent=43 // pred_check
          %p284 = pneg %p127
        $region58: #{identity_block_forward.1} parent=43 // pred_check_branch
          %286 = sbr.rel (%p284) target = $region60
        $region59: #{identity_block_forward.1} parent=43 // pred_region
          %287 = dma.done [#allocation10], 64
        $region60: #{identity_block_forward.1} parent=43 // pred_fallthru
          _
        // Predicated region
        $region61: #{identity_block_forward.1} parent=43 // pred_check
          %p288 = pneg %p148
        $region62: #{identity_block_forward.1} parent=43 // pred_check_branch
          %290 = sbr.rel (%p288) target = $region64
        $region63: #{identity_block_forward.1} parent=43 // pred_region
          %291 = dma.done [#allocation10], 64
        $region64: #{identity_block_forward.1} parent=43 // pred_fallthru
          _
        %p292 = pneg %p38
        %p293 = pneg %p35
        %s294 = sand.u32 %s51, 1
        %s295 = scalar_lea.sflag [#allocation5], %s294
        %s296 = sand.u32 %s51, 1
        %s297 = smul.addr %s296, 1024
        %s298 = scalar_lea.vmem [#allocation4], %s297
        %p299 = pneg %p64
        %p300 = pneg %p61
        %p301 = pneg %p85
        %p302 = pneg %p82
        %p303 = pneg %p106
        %p304 = pneg %p103
        %p305 = pneg %p127
        %p306 = pneg %p124
        %p307 = pneg %p148
        %p308 = pneg %p145
        %p309 = pneg %p169
        %p310 = pneg %p166
        %p311 = scmp.eq.s32.totalorder %s22, 0
        // Predicated region
        $region65: #{identity_block_forward.1} parent=43 // pred_check
          %p312 = pneg %p311
        $region66: #{identity_block_forward.1} parent=43 // pred_check_branch
          %314 = sbr.rel (%p312) target = $region68
        $region67: #{identity_block_forward.1} parent=43 // pred_region
          %v315 = vld [vmem:[%s0] sm:$0xff]
          %v316 = vld [vmem:[%s0 + $0x8] sm:$0xff]
          %v317 = vld [vmem:[%s0 + $0x10] sm:$0xff]
          %v318 = vld [vmem:[%s0 + $0x18] sm:$0xff]
          %s319 = scalar_lea.vmem [#allocation6], 7
          %v320 = vld [vmem:[%s319] ss:$8 sm:$0xf]
          %v322 = vlaneseq
          %v323 = vshrl.u32 %v322, 7
          %v324 = vsub.s32 0, %v323
          %v325 = vrot.slane %v320, %v324
          %v326 = vlaneseq
          %v327 = vshrl.u32 %v326, 7
          %v328 = vsub.s32 1, %v327
          %v329 = vrot.slane %v320, %v328
          %v330 = vlaneseq
          %v331 = vshrl.u32 %v330, 7
          %v332 = vsub.s32 2, %v331
          %v333 = vrot.slane %v320, %v332
          %v334 = vlaneseq
          %v335 = vshrl.u32 %v334, 7
          %v336 = vsub.s32 3, %v335
          %v337 = vrot.slane %v320, %v336
          %v342 = vmul.f32 %v325, %v315
          %v343 = vmul.f32 %v329, %v316
          %v344 = vmul.f32 %v333, %v317
          %v345 = vmul.f32 %v337, %v318
          %s346 = scalar_lea.vmem [#allocation6], 32
          %v347 = vld [vmem:[%s346] ss:$8 sm:$0xf]
          %348 = vrot.lane.b32.xlu0 %v315, 1
          %v349 = vpop.permute.xlu0 %348
          %350 = vrot.lane.b32.xlu0 %v316, 1
          %v351 = vpop.permute.xlu0 %350
          %352 = vrot.lane.b32.xlu0 %v317, 1
          %v353 = vpop.permute.xlu0 %352
          %354 = vrot.lane.b32.xlu0 %v318, 1
          %v355 = vpop.permute.xlu0 %354
          %v356 = vlaneseq
          %v357 = vand.u32 %v356, 127
          %vm358 = vcmp.lt.s32.totalorder %v357, 1
          %v359 = vsel %vm358, %v353, %v355
          %v360 = vsel %vm358, %v351, %v353
          %v361 = vsel %vm358, %v349, %v351
          %v362 = vsel %vm358, %v355, %v349
          %v364 = vlaneseq
          %v365 = vshrl.u32 %v364, 7
          %v366 = vsub.s32 0, %v365
          %v367 = vrot.slane %v347, %v366
          %v368 = vlaneseq
          %v369 = vshrl.u32 %v368, 7
          %v370 = vsub.s32 1, %v369
          %v371 = vrot.slane %v347, %v370
          %v372 = vlaneseq
          %v373 = vshrl.u32 %v372, 7
          %v374 = vsub.s32 2, %v373
          %v375 = vrot.slane %v347, %v374
          %v376 = vlaneseq
          %v377 = vshrl.u32 %v376, 7
          %v378 = vsub.s32 3, %v377
          %v379 = vrot.slane %v347, %v378
          %v384 = vmul.f32 %v367, %v362
          %v385 = vmul.f32 %v371, %v361
          %v386 = vmul.f32 %v375, %v360
          %v387 = vmul.f32 %v379, %v359
          %v388 = vadd.f32 %v342, %v384
          %v389 = vadd.f32 %v343, %v385
          %v390 = vadd.f32 %v344, %v386
          %v391 = vadd.f32 %v345, %v387
          %s392 = scalar_lea.vmem [#allocation6], 6
          %v393 = vld [vmem:[%s392] ss:$8 sm:$0xf]
          %394 = vrot.lane.b32.xlu0 %v315, 127
          %v395 = vpop.permute.xlu0 %394
          %396 = vrot.lane.b32.xlu0 %v316, 127
          %v397 = vpop.permute.xlu0 %396
          %398 = vrot.lane.b32.xlu0 %v317, 127
          %v399 = vpop.permute.xlu0 %398
          %400 = vrot.lane.b32.xlu0 %v318, 127
          %v401 = vpop.permute.xlu0 %400
          %vm402 = vcmp.lt.s32.totalorder %v357, 127
          %v403 = vsel %vm402, %v399, %v401
          %v404 = vsel %vm402, %v397, %v399
          %v405 = vsel %vm402, %v395, %v397
          %v406 = vsel %vm402, %v401, %v395
          %v408 = vlaneseq
          %v409 = vshrl.u32 %v408, 7
          %v410 = vsub.s32 0, %v409
          %v411 = vrot.slane %v393, %v410
          %v412 = vlaneseq
          %v413 = vshrl.u32 %v412, 7
          %v414 = vsub.s32 1, %v413
          %v415 = vrot.slane %v393, %v414
          %v416 = vlaneseq
          %v417 = vshrl.u32 %v416, 7
          %v418 = vsub.s32 2, %v417
          %v419 = vrot.slane %v393, %v418
          %v420 = vlaneseq
          %v421 = vshrl.u32 %v420, 7
          %v422 = vsub.s32 3, %v421
          %v423 = vrot.slane %v393, %v422
          %v428 = vmul.f32 %v411, %v405
          %v429 = vmul.f32 %v415, %v404
          %v430 = vmul.f32 %v419, %v403
          %v431 = vmul.f32 %v423, %v406
          %v432 = vadd.f32 %v388, %v428
          %v433 = vadd.f32 %v389, %v429
          %v434 = vadd.f32 %v390, %v430
          %v435 = vadd.f32 %v391, %v431
          %s436 = scalar_lea.vmem [#allocation6], 33
          %v437 = vld [vmem:[%s436] ss:$8 sm:$0xf]
          %438 = vrot.lane.b32.xlu0 %v315, 2
          %v439 = vpop.permute.xlu0 %438
          %440 = vrot.lane.b32.xlu0 %v316, 2
          %v441 = vpop.permute.xlu0 %440
          %442 = vrot.lane.b32.xlu0 %v317, 2
          %v443 = vpop.permute.xlu0 %442
          %444 = vrot.lane.b32.xlu0 %v318, 2
          %v445 = vpop.permute.xlu0 %444
          %vm446 = vcmp.lt.s32.totalorder %v357, 2
          %v447 = vsel %vm446, %v443, %v445
          %v448 = vsel %vm446, %v441, %v443
          %v449 = vsel %vm446, %v439, %v441
          %v450 = vsel %vm446, %v445, %v439
          %v452 = vlaneseq
          %v453 = vshrl.u32 %v452, 7
          %v454 = vsub.s32 0, %v453
          %v455 = vrot.slane %v437, %v454
          %v456 = vlaneseq
          %v457 = vshrl.u32 %v456, 7
          %v458 = vsub.s32 1, %v457
          %v459 = vrot.slane %v437, %v458
          %v460 = vlaneseq
          %v461 = vshrl.u32 %v460, 7
          %v462 = vsub.s32 2, %v461
          %v463 = vrot.slane %v437, %v462
          %v464 = vlaneseq
          %v465 = vshrl.u32 %v464, 7
          %v466 = vsub.s32 3, %v465
          %v467 = vrot.slane %v437, %v466
          %v472 = vmul.f32 %v455, %v450
          %v473 = vmul.f32 %v459, %v449
          %v474 = vmul.f32 %v463, %v448
          %v475 = vmul.f32 %v467, %v447
          %v476 = vadd.f32 %v432, %v472
          %v477 = vadd.f32 %v433, %v473
          %v478 = vadd.f32 %v434, %v474
          %v479 = vadd.f32 %v435, %v475
          %s480 = scalar_lea.vmem [#allocation6], 5
          %v481 = vld [vmem:[%s480] ss:$8 sm:$0xf]
          %482 = vrot.lane.b32.xlu0 %v315, 126
          %v483 = vpop.permute.xlu0 %482
          %484 = vrot.lane.b32.xlu0 %v316, 126
          %v485 = vpop.permute.xlu0 %484
          %486 = vrot.lane.b32.xlu0 %v317, 126
          %v487 = vpop.permute.xlu0 %486
          %488 = vrot.lane.b32.xlu0 %v318, 126
          %v489 = vpop.permute.xlu0 %488
          %vm490 = vcmp.lt.s32.totalorder %v357, 126
          %v491 = vsel %vm490, %v487, %v489
          %v492 = vsel %vm490, %v485, %v487
          %v493 = vsel %vm490, %v483, %v485
          %v494 = vsel %vm490, %v489, %v483
          %v496 = vlaneseq
          %v497 = vshrl.u32 %v496, 7
          %v498 = vsub.s32 0, %v497
          %v499 = vrot.slane %v481, %v498
          %v500 = vlaneseq
          %v501 = vshrl.u32 %v500, 7
          %v502 = vsub.s32 1, %v501
          %v503 = vrot.slane %v481, %v502
          %v504 = vlaneseq
          %v505 = vshrl.u32 %v504, 7
          %v506 = vsub.s32 2, %v505
          %v507 = vrot.slane %v481, %v506
          %v508 = vlaneseq
          %v509 = vshrl.u32 %v508, 7
          %v510 = vsub.s32 3, %v509
          %v511 = vrot.slane %v481, %v510
          %v516 = vmul.f32 %v499, %v493
          %v517 = vmul.f32 %v503, %v492
          %v518 = vmul.f32 %v507, %v491
          %v519 = vmul.f32 %v511, %v494
          %v520 = vadd.f32 %v476, %v516
          %v521 = vadd.f32 %v477, %v517
          %v522 = vadd.f32 %v478, %v518
          %v523 = vadd.f32 %v479, %v519
          %s524 = scalar_lea.vmem [#allocation6], 34
          %v525 = vld [vmem:[%s524] ss:$8 sm:$0xf]
          %526 = vrot.lane.b32.xlu0 %v315, 3
          %v527 = vpop.permute.xlu0 %526
          %528 = vrot.lane.b32.xlu0 %v316, 3
          %v529 = vpop.permute.xlu0 %528
          %530 = vrot.lane.b32.xlu0 %v317, 3
          %v531 = vpop.permute.xlu0 %530
          %532 = vrot.lane.b32.xlu0 %v318, 3
          %v533 = vpop.permute.xlu0 %532
          %vm534 = vcmp.lt.s32.totalorder %v357, 3
          %v535 = vsel %vm534, %v531, %v533
          %v536 = vsel %vm534, %v529, %v531
          %v537 = vsel %vm534, %v527, %v529
          %v538 = vsel %vm534, %v533, %v527
          %v540 = vlaneseq
          %v541 = vshrl.u32 %v540, 7
          %v542 = vsub.s32 0, %v541
          %v543 = vrot.slane %v525, %v542
          %v544 = vlaneseq
          %v545 = vshrl.u32 %v544, 7
          %v546 = vsub.s32 1, %v545
          %v547 = vrot.slane %v525, %v546
          %v548 = vlaneseq
          %v549 = vshrl.u32 %v548, 7
          %v550 = vsub.s32 2, %v549
          %v551 = vrot.slane %v525, %v550
          %v552 = vlaneseq
          %v553 = vshrl.u32 %v552, 7
          %v554 = vsub.s32 3, %v553
          %v555 = vrot.slane %v525, %v554
          %v560 = vmul.f32 %v543, %v538
          %v561 = vmul.f32 %v547, %v537
          %v562 = vmul.f32 %v551, %v536
          %v563 = vmul.f32 %v555, %v535
          %v564 = vadd.f32 %v520, %v560
          %v565 = vadd.f32 %v521, %v561
          %v566 = vadd.f32 %v522, %v562
          %v567 = vadd.f32 %v523, %v563
          %s568 = scalar_lea.vmem [#allocation6], 4
          %v569 = vld [vmem:[%s568] ss:$8 sm:$0xf]
          %570 = vrot.lane.b32.xlu0 %v315, 125
          %v571 = vpop.permute.xlu0 %570
          %572 = vrot.lane.b32.xlu0 %v316, 125
          %v573 = vpop.permute.xlu0 %572
          %574 = vrot.lane.b32.xlu0 %v317, 125
          %v575 = vpop.permute.xlu0 %574
          %576 = vrot.lane.b32.xlu0 %v318, 125
          %v577 = vpop.permute.xlu0 %576
          %vm578 = vcmp.lt.s32.totalorder %v357, 125
          %v579 = vsel %vm578, %v575, %v577
          %v580 = vsel %vm578, %v573, %v575
          %v581 = vsel %vm578, %v571, %v573
          %v582 = vsel %vm578, %v577, %v571
          %v584 = vlaneseq
          %v585 = vshrl.u32 %v584, 7
          %v586 = vsub.s32 0, %v585
          %v587 = vrot.slane %v569, %v586
          %v588 = vlaneseq
          %v589 = vshrl.u32 %v588, 7
          %v590 = vsub.s32 1, %v589
          %v591 = vrot.slane %v569, %v590
          %v592 = vlaneseq
          %v593 = vshrl.u32 %v592, 7
          %v594 = vsub.s32 2, %v593
          %v595 = vrot.slane %v569, %v594
          %v596 = vlaneseq
          %v597 = vshrl.u32 %v596, 7
          %v598 = vsub.s32 3, %v597
          %v599 = vrot.slane %v569, %v598
          %v604 = vmul.f32 %v587, %v581
          %v605 = vmul.f32 %v591, %v580
          %v606 = vmul.f32 %v595, %v579
          %v607 = vmul.f32 %v599, %v582
          %v608 = vadd.f32 %v564, %v604
          %v609 = vadd.f32 %v565, %v605
          %v610 = vadd.f32 %v566, %v606
          %v611 = vadd.f32 %v567, %v607
          %s612 = scalar_lea.vmem [#allocation6], 35
          %v613 = vld [vmem:[%s612] ss:$8 sm:$0xf]
          %614 = vrot.lane.b32.xlu0 %v315, 4
          %v615 = vpop.permute.xlu0 %614
          %616 = vrot.lane.b32.xlu0 %v316, 4
          %v617 = vpop.permute.xlu0 %616
          %618 = vrot.lane.b32.xlu0 %v317, 4
          %v619 = vpop.permute.xlu0 %618
          %620 = vrot.lane.b32.xlu0 %v318, 4
          %v621 = vpop.permute.xlu0 %620
          %vm622 = vcmp.lt.s32.totalorder %v357, 4
          %v623 = vsel %vm622, %v619, %v621
          %v624 = vsel %vm622, %v617, %v619
          %v625 = vsel %vm622, %v615, %v617
          %v626 = vsel %vm622, %v621, %v615
          %v628 = vlaneseq
          %v629 = vshrl.u32 %v628, 7
          %v630 = vsub.s32 0, %v629
          %v631 = vrot.slane %v613, %v630
          %v632 = vlaneseq
          %v633 = vshrl.u32 %v632, 7
          %v634 = vsub.s32 1, %v633
          %v635 = vrot.slane %v613, %v634
          %v636 = vlaneseq
          %v637 = vshrl.u32 %v636, 7
          %v638 = vsub.s32 2, %v637
          %v639 = vrot.slane %v613, %v638
          %v640 = vlaneseq
          %v641 = vshrl.u32 %v640, 7
          %v642 = vsub.s32 3, %v641
          %v643 = vrot.slane %v613, %v642
          %v648 = vmul.f32 %v631, %v626
          %v649 = vmul.f32 %v635, %v625
          %v650 = vmul.f32 %v639, %v624
          %v651 = vmul.f32 %v643, %v623
          %v652 = vadd.f32 %v608, %v648
          %v653 = vadd.f32 %v609, %v649
          %v654 = vadd.f32 %v610, %v650
          %v655 = vadd.f32 %v611, %v651
          %s656 = scalar_lea.vmem [#allocation6], 3
          %v657 = vld [vmem:[%s656] ss:$8 sm:$0xf]
          %658 = vrot.lane.b32.xlu0 %v315, 124
          %v659 = vpop.permute.xlu0 %658
          %660 = vrot.lane.b32.xlu0 %v316, 124
          %v661 = vpop.permute.xlu0 %660
          %662 = vrot.lane.b32.xlu0 %v317, 124
          %v663 = vpop.permute.xlu0 %662
          %664 = vrot.lane.b32.xlu0 %v318, 124
          %v665 = vpop.permute.xlu0 %664
          %vm666 = vcmp.lt.s32.totalorder %v357, 124
          %v667 = vsel %vm666, %v663, %v665
          %v668 = vsel %vm666, %v661, %v663
          %v669 = vsel %vm666, %v659, %v661
          %v670 = vsel %vm666, %v665, %v659
          %v672 = vlaneseq
          %v673 = vshrl.u32 %v672, 7
          %v674 = vsub.s32 0, %v673
          %v675 = vrot.slane %v657, %v674
          %v676 = vlaneseq
          %v677 = vshrl.u32 %v676, 7
          %v678 = vsub.s32 1, %v677
          %v679 = vrot.slane %v657, %v678
          %v680 = vlaneseq
          %v681 = vshrl.u32 %v680, 7
          %v682 = vsub.s32 2, %v681
          %v683 = vrot.slane %v657, %v682
          %v684 = vlaneseq
          %v685 = vshrl.u32 %v684, 7
          %v686 = vsub.s32 3, %v685
          %v687 = vrot.slane %v657, %v686
          %v692 = vmul.f32 %v675, %v669
          %v693 = vmul.f32 %v679, %v668
          %v694 = vmul.f32 %v683, %v667
          %v695 = vmul.f32 %v687, %v670
          %v696 = vadd.f32 %v652, %v692
          %v697 = vadd.f32 %v653, %v693
          %v698 = vadd.f32 %v654, %v694
          %v699 = vadd.f32 %v655, %v695
          %s700 = scalar_lea.vmem [#allocation6], 36
          %v701 = vld [vmem:[%s700] ss:$8 sm:$0xf]
          %702 = vrot.lane.b32.xlu0 %v315, 5
          %v703 = vpop.permute.xlu0 %702
          %704 = vrot.lane.b32.xlu0 %v316, 5
          %v705 = vpop.permute.xlu0 %704
          %706 = vrot.lane.b32.xlu0 %v317, 5
          %v707 = vpop.permute.xlu0 %706
          %708 = vrot.lane.b32.xlu0 %v318, 5
          %v709 = vpop.permute.xlu0 %708
          %vm710 = vcmp.lt.s32.totalorder %v357, 5
          %v711 = vsel %vm710, %v707, %v709
          %v712 = vsel %vm710, %v705, %v707
          %v713 = vsel %vm710, %v703, %v705
          %v714 = vsel %vm710, %v709, %v703
          %v716 = vlaneseq
          %v717 = vshrl.u32 %v716, 7
          %v718 = vsub.s32 0, %v717
          %v719 = vrot.slane %v701, %v718
          %v720 = vlaneseq
          %v721 = vshrl.u32 %v720, 7
          %v722 = vsub.s32 1, %v721
          %v723 = vrot.slane %v701, %v722
          %v724 = vlaneseq
          %v725 = vshrl.u32 %v724, 7
          %v726 = vsub.s32 2, %v725
          %v727 = vrot.slane %v701, %v726
          %v728 = vlaneseq
          %v729 = vshrl.u32 %v728, 7
          %v730 = vsub.s32 3, %v729
          %v731 = vrot.slane %v701, %v730
          %v736 = vmul.f32 %v719, %v714
          %v737 = vmul.f32 %v723, %v713
          %v738 = vmul.f32 %v727, %v712
          %v739 = vmul.f32 %v731, %v711
          %v740 = vadd.f32 %v696, %v736
          %v741 = vadd.f32 %v697, %v737
          %v742 = vadd.f32 %v698, %v738
          %v743 = vadd.f32 %v699, %v739
          %s744 = scalar_lea.vmem [#allocation6], 2
          %v745 = vld [vmem:[%s744] ss:$8 sm:$0xf]
          %746 = vrot.lane.b32.xlu0 %v315, 123
          %v747 = vpop.permute.xlu0 %746
          %748 = vrot.lane.b32.xlu0 %v316, 123
          %v749 = vpop.permute.xlu0 %748
          %750 = vrot.lane.b32.xlu0 %v317, 123
          %v751 = vpop.permute.xlu0 %750
          %752 = vrot.lane.b32.xlu0 %v318, 123
          %v753 = vpop.permute.xlu0 %752
          %vm754 = vcmp.lt.s32.totalorder %v357, 123
          %v755 = vsel %vm754, %v751, %v753
          %v756 = vsel %vm754, %v749, %v751
          %v757 = vsel %vm754, %v747, %v749
          %v758 = vsel %vm754, %v753, %v747
          %v760 = vlaneseq
          %v761 = vshrl.u32 %v760, 7
          %v762 = vsub.s32 0, %v761
          %v763 = vrot.slane %v745, %v762
          %v764 = vlaneseq
          %v765 = vshrl.u32 %v764, 7
          %v766 = vsub.s32 1, %v765
          %v767 = vrot.slane %v745, %v766
          %v768 = vlaneseq
          %v769 = vshrl.u32 %v768, 7
          %v770 = vsub.s32 2, %v769
          %v771 = vrot.slane %v745, %v770
          %v772 = vlaneseq
          %v773 = vshrl.u32 %v772, 7
          %v774 = vsub.s32 3, %v773
          %v775 = vrot.slane %v745, %v774
          %v780 = vmul.f32 %v763, %v757
          %v781 = vmul.f32 %v767, %v756
          %v782 = vmul.f32 %v771, %v755
          %v783 = vmul.f32 %v775, %v758
          %v784 = vadd.f32 %v740, %v780
          %v785 = vadd.f32 %v741, %v781
          %v786 = vadd.f32 %v742, %v782
          %v787 = vadd.f32 %v743, %v783
          %s788 = scalar_lea.vmem [#allocation6], 37
          %v789 = vld [vmem:[%s788] ss:$8 sm:$0xf]
          %790 = vrot.lane.b32.xlu0 %v315, 6
          %v791 = vpop.permute.xlu0 %790
          %792 = vrot.lane.b32.xlu0 %v316, 6
          %v793 = vpop.permute.xlu0 %792
          %794 = vrot.lane.b32.xlu0 %v317, 6
          %v795 = vpop.permute.xlu0 %794
          %796 = vrot.lane.b32.xlu0 %v318, 6
          %v797 = vpop.permute.xlu0 %796
          %vm798 = vcmp.lt.s32.totalorder %v357, 6
          %v799 = vsel %vm798, %v795, %v797
          %v800 = vsel %vm798, %v793, %v795
          %v801 = vsel %vm798, %v791, %v793
          %v802 = vsel %vm798, %v797, %v791
          %v804 = vlaneseq
          %v805 = vshrl.u32 %v804, 7
          %v806 = vsub.s32 0, %v805
          %v807 = vrot.slane %v789, %v806
          %v808 = vlaneseq
          %v809 = vshrl.u32 %v808, 7
          %v810 = vsub.s32 1, %v809
          %v811 = vrot.slane %v789, %v810
          %v812 = vlaneseq
          %v813 = vshrl.u32 %v812, 7
          %v814 = vsub.s32 2, %v813
          %v815 = vrot.slane %v789, %v814
          %v816 = vlaneseq
          %v817 = vshrl.u32 %v816, 7
          %v818 = vsub.s32 3, %v817
          %v819 = vrot.slane %v789, %v818
          %v824 = vmul.f32 %v807, %v802
          %v825 = vmul.f32 %v811, %v801
          %v826 = vmul.f32 %v815, %v800
          %v827 = vmul.f32 %v819, %v799
          %v828 = vadd.f32 %v784, %v824
          %v829 = vadd.f32 %v785, %v825
          %v830 = vadd.f32 %v786, %v826
          %v831 = vadd.f32 %v787, %v827
          %s832 = scalar_lea.vmem [#allocation6], 1
          %v833 = vld [vmem:[%s832] ss:$8 sm:$0xf]
          %834 = vrot.lane.b32.xlu0 %v315, 122
          %v835 = vpop.permute.xlu0 %834
          %836 = vrot.lane.b32.xlu0 %v316, 122
          %v837 = vpop.permute.xlu0 %836
          %838 = vrot.lane.b32.xlu0 %v317, 122
          %v839 = vpop.permute.xlu0 %838
          %840 = vrot.lane.b32.xlu0 %v318, 122
          %v841 = vpop.permute.xlu0 %840
          %vm842 = vcmp.lt.s32.totalorder %v357, 122
          %v843 = vsel %vm842, %v839, %v841
          %v844 = vsel %vm842, %v837, %v839
          %v845 = vsel %vm842, %v835, %v837
          %v846 = vsel %vm842, %v841, %v835
          %v848 = vlaneseq
          %v849 = vshrl.u32 %v848, 7
          %v850 = vsub.s32 0, %v849
          %v851 = vrot.slane %v833, %v850
          %v852 = vlaneseq
          %v853 = vshrl.u32 %v852, 7
          %v854 = vsub.s32 1, %v853
          %v855 = vrot.slane %v833, %v854
          %v856 = vlaneseq
          %v857 = vshrl.u32 %v856, 7
          %v858 = vsub.s32 2, %v857
          %v859 = vrot.slane %v833, %v858
          %v860 = vlaneseq
          %v861 = vshrl.u32 %v860, 7
          %v862 = vsub.s32 3, %v861
          %v863 = vrot.slane %v833, %v862
          %v868 = vmul.f32 %v851, %v845
          %v869 = vmul.f32 %v855, %v844
          %v870 = vmul.f32 %v859, %v843
          %v871 = vmul.f32 %v863, %v846
          %v872 = vadd.f32 %v828, %v868
          %v873 = vadd.f32 %v829, %v869
          %v874 = vadd.f32 %v830, %v870
          %v875 = vadd.f32 %v831, %v871
          %s876 = scalar_lea.vmem [#allocation6], 38
          %v877 = vld [vmem:[%s876] ss:$8 sm:$0xf]
          %878 = vrot.lane.b32.xlu0 %v315, 7
          %v879 = vpop.permute.xlu0 %878
          %880 = vrot.lane.b32.xlu0 %v316, 7
          %v881 = vpop.permute.xlu0 %880
          %882 = vrot.lane.b32.xlu0 %v317, 7
          %v883 = vpop.permute.xlu0 %882
          %884 = vrot.lane.b32.xlu0 %v318, 7
          %v885 = vpop.permute.xlu0 %884
          %vm886 = vcmp.lt.s32.totalorder %v357, 7
          %v887 = vsel %vm886, %v883, %v885
          %v888 = vsel %vm886, %v881, %v883
          %v889 = vsel %vm886, %v879, %v881
          %v890 = vsel %vm886, %v885, %v879
          %v892 = vlaneseq
          %v893 = vshrl.u32 %v892, 7
          %v894 = vsub.s32 0, %v893
          %v895 = vrot.slane %v877, %v894
          %v896 = vlaneseq
          %v897 = vshrl.u32 %v896, 7
          %v898 = vsub.s32 1, %v897
          %v899 = vrot.slane %v877, %v898
          %v900 = vlaneseq
          %v901 = vshrl.u32 %v900, 7
          %v902 = vsub.s32 2, %v901
          %v903 = vrot.slane %v877, %v902
          %v904 = vlaneseq
          %v905 = vshrl.u32 %v904, 7
          %v906 = vsub.s32 3, %v905
          %v907 = vrot.slane %v877, %v906
          %v912 = vmul.f32 %v895, %v890
          %v913 = vmul.f32 %v899, %v889
          %v914 = vmul.f32 %v903, %v888
          %v915 = vmul.f32 %v907, %v887
          %v916 = vadd.f32 %v872, %v912
          %v917 = vadd.f32 %v873, %v913
          %v918 = vadd.f32 %v874, %v914
          %v919 = vadd.f32 %v875, %v915
          %v920 = vld [vmem:[#allocation6] ss:$8 sm:$0xf]
          %921 = vrot.lane.b32.xlu0 %v315, 121
          %v922 = vpop.permute.xlu0 %921
          %923 = vrot.lane.b32.xlu0 %v316, 121
          %v924 = vpop.permute.xlu0 %923
          %925 = vrot.lane.b32.xlu0 %v317, 121
          %v926 = vpop.permute.xlu0 %925
          %927 = vrot.lane.b32.xlu0 %v318, 121
          %v928 = vpop.permute.xlu0 %927
          %vm929 = vcmp.lt.s32.totalorder %v357, 121
          %v930 = vsel %vm929, %v926, %v928
          %v931 = vsel %vm929, %v924, %v926
          %v932 = vsel %vm929, %v922, %v924
          %v933 = vsel %vm929, %v928, %v922
          %v935 = vlaneseq
          %v936 = vshrl.u32 %v935, 7
          %v937 = vsub.s32 0, %v936
          %v938 = vrot.slane %v920, %v937
          %v939 = vlaneseq
          %v940 = vshrl.u32 %v939, 7
          %v941 = vsub.s32 1, %v940
          %v942 = vrot.slane %v920, %v941
          %v943 = vlaneseq
          %v944 = vshrl.u32 %v943, 7
          %v945 = vsub.s32 2, %v944
          %v946 = vrot.slane %v920, %v945
          %v947 = vlaneseq
          %v948 = vshrl.u32 %v947, 7
          %v949 = vsub.s32 3, %v948
          %v950 = vrot.slane %v920, %v949
          %v955 = vmul.f32 %v938, %v932
          %v956 = vmul.f32 %v942, %v931
          %v957 = vmul.f32 %v946, %v930
          %v958 = vmul.f32 %v950, %v933
          %v959 = vadd.f32 %v916, %v955
          %v960 = vadd.f32 %v917, %v956
          %v961 = vadd.f32 %v918, %v957
          %v962 = vadd.f32 %v919, %v958
          %963 = vrot.lane.b32.xlu0 %v959, 8
          %v964 = vpop.permute.xlu0 %963
          %965 = vrot.lane.b32.xlu0 %v960, 8
          %v966 = vpop.permute.xlu0 %965
          %967 = vrot.lane.b32.xlu0 %v961, 8
          %v968 = vpop.permute.xlu0 %967
          %969 = vrot.lane.b32.xlu0 %v962, 8
          %v970 = vpop.permute.xlu0 %969
          %vm971 = vcmp.lt.s32.totalorder %v357, 8
          %v972 = vsel %vm971, %v968, %v970
          %v973 = vsel %vm971, %v966, %v968
          %v974 = vsel %vm971, %v964, %v966
          %v975 = vsel %vm971, %v970, %v964
          %v976 = vadd.f32 %v959, %v975
          %v977 = vadd.f32 %v960, %v974
          %v978 = vadd.f32 %v961, %v973
          %v979 = vadd.f32 %v962, %v972
          %980 = vrot.lane.b32.xlu0 %v976, 16
          %v981 = vpop.permute.xlu0 %980
          %982 = vrot.lane.b32.xlu0 %v977, 16
          %v983 = vpop.permute.xlu0 %982
          %984 = vrot.lane.b32.xlu0 %v978, 16
          %v985 = vpop.permute.xlu0 %984
          %986 = vrot.lane.b32.xlu0 %v979, 16
          %v987 = vpop.permute.xlu0 %986
          %vm988 = vcmp.lt.s32.totalorder %v357, 16
          %v989 = vsel %vm988, %v985, %v987
          %v990 = vsel %vm988, %v983, %v985
          %v991 = vsel %vm988, %v981, %v983
          %v992 = vsel %vm988, %v987, %v981
          %v993 = vadd.f32 %v976, %v992
          %v994 = vadd.f32 %v977, %v991
          %v995 = vadd.f32 %v978, %v990
          %v996 = vadd.f32 %v979, %v989
          %997 = vrot.lane.b32.xlu0 %v993, 32
          %v998 = vpop.permute.xlu0 %997
          %999 = vrot.lane.b32.xlu0 %v994, 32
          %v1000 = vpop.permute.xlu0 %999
          %1001 = vrot.lane.b32.xlu0 %v995, 32
          %v1002 = vpop.permute.xlu0 %1001
          %1003 = vrot.lane.b32.xlu0 %v996, 32
          %v1004 = vpop.permute.xlu0 %1003
          %vm1005 = vcmp.lt.s32.totalorder %v357, 32
          %v1006 = vsel %vm1005, %v1002, %v1004
          %v1007 = vsel %vm1005, %v1000, %v1002
          %v1008 = vsel %vm1005, %v998, %v1000
          %v1009 = vsel %vm1005, %v1004, %v998
          %v1010 = vadd.f32 %v993, %v1009
          %v1011 = vadd.f32 %v994, %v1008
          %v1012 = vadd.f32 %v995, %v1007
          %v1013 = vadd.f32 %v996, %v1006
          %1014 = vrot.lane.b32.xlu0 %v1010, 64
          %v1015 = vpop.permute.xlu0 %1014
          %1016 = vrot.lane.b32.xlu0 %v1011, 64
          %v1017 = vpop.permute.xlu0 %1016
          %1018 = vrot.lane.b32.xlu0 %v1012, 64
          %v1019 = vpop.permute.xlu0 %1018
          %1020 = vrot.lane.b32.xlu0 %v1013, 64
          %v1021 = vpop.permute.xlu0 %1020
          %vm1022 = vcmp.lt.s32.totalorder %v357, 64
          %v1023 = vsel %vm1022, %v1019, %v1021
          %v1024 = vsel %vm1022, %v1017, %v1019
          %v1025 = vsel %vm1022, %v1015, %v1017
          %v1026 = vsel %vm1022, %v1021, %v1015
          %v1027 = vadd.f32 %v1010, %v1026
          %v1028 = vadd.f32 %v1011, %v1025
          %v1029 = vadd.f32 %v1012, %v1024
          %v1030 = vadd.f32 %v1013, %v1023
          %v1031 = vadd.f32 %v1027, %v1030
          %v1032 = vadd.f32 %v1028, %v1027
          %v1033 = vadd.f32 %v1029, %v1028
          %v1034 = vadd.f32 %v1030, %v1029
          %v1035 = vadd.f32 %v1031, %v1033
          %v1036 = vadd.f32 %v1032, %v1034
          %v1037 = vrot.slane %v1035, 4
          %v1038 = vadd.f32 %v1035, %v1037
          %v1039 = vrot.slane %v1038, 2
          %v1040 = vadd.f32 %v1038, %v1039
          %v1041 = vrot.slane %v1040, 1
          %v1042 = vadd.f32 %v1040, %v1041
          %v1043 = vrot.slane %v1036, 4
          %v1044 = vadd.f32 %v1036, %v1043
          %v1045 = vrot.slane %v1044, 2
          %v1046 = vadd.f32 %v1044, %v1045
          %v1047 = vrot.slane %v1046, 1
          %v1048 = vadd.f32 %v1046, %v1047
          %v1049 = vmul.f32 %v1042, 0.001953125
          %v1050 = vmul.f32 %v1048, 0.001953125
          %v1051 = vsub.f32 %v959, %v1049
          %v1052 = vsub.f32 %v960, %v1050
          %v1053 = vsub.f32 %v961, %v1049
          %v1054 = vsub.f32 %v962, %v1050
          %v1055 = vmul.f32 %v1051, %v1051
          %v1056 = vmul.f32 %v1052, %v1052
          %v1057 = vmul.f32 %v1053, %v1053
          %v1058 = vmul.f32 %v1054, %v1054
          %1059 = vrot.lane.b32.xlu0 %v1055, 8
          %v1060 = vpop.permute.xlu0 %1059
          %1061 = vrot.lane.b32.xlu0 %v1056, 8
          %v1062 = vpop.permute.xlu0 %1061
          %1063 = vrot.lane.b32.xlu0 %v1057, 8
          %v1064 = vpop.permute.xlu0 %1063
          %1065 = vrot.lane.b32.xlu0 %v1058, 8
          %v1066 = vpop.permute.xlu0 %1065
          %v1067 = vsel %vm971, %v1064, %v1066
          %v1068 = vsel %vm971, %v1062, %v1064
          %v1069 = vsel %vm971, %v1060, %v1062
          %v1070 = vsel %vm971, %v1066, %v1060
          %v1071 = vadd.f32 %v1055, %v1070
          %v1072 = vadd.f32 %v1056, %v1069
          %v1073 = vadd.f32 %v1057, %v1068
          %v1074 = vadd.f32 %v1058, %v1067
          %1075 = vrot.lane.b32.xlu0 %v1071, 16
          %v1076 = vpop.permute.xlu0 %1075
          %1077 = vrot.lane.b32.xlu0 %v1072, 16
          %v1078 = vpop.permute.xlu0 %1077
          %1079 = vrot.lane.b32.xlu0 %v1073, 16
          %v1080 = vpop.permute.xlu0 %1079
          %1081 = vrot.lane.b32.xlu0 %v1074, 16
          %v1082 = vpop.permute.xlu0 %1081
          %v1083 = vsel %vm988, %v1080, %v1082
          %v1084 = vsel %vm988, %v1078, %v1080
          %v1085 = vsel %vm988, %v1076, %v1078
          %v1086 = vsel %vm988, %v1082, %v1076
          %v1087 = vadd.f32 %v1071, %v1086
          %v1088 = vadd.f32 %v1072, %v1085
          %v1089 = vadd.f32 %v1073, %v1084
          %v1090 = vadd.f32 %v1074, %v1083
          %1091 = vrot.lane.b32.xlu0 %v1087, 32
          %v1092 = vpop.permute.xlu0 %1091
          %1093 = vrot.lane.b32.xlu0 %v1088, 32
          %v1094 = vpop.permute.xlu0 %1093
          %1095 = vrot.lane.b32.xlu0 %v1089, 32
          %v1096 = vpop.permute.xlu0 %1095
          %1097 = vrot.lane.b32.xlu0 %v1090, 32
          %v1098 = vpop.permute.xlu0 %1097
          %v1099 = vsel %vm1005, %v1096, %v1098
          %v1100 = vsel %vm1005, %v1094, %v1096
          %v1101 = vsel %vm1005, %v1092, %v1094
          %v1102 = vsel %vm1005, %v1098, %v1092
          %v1103 = vadd.f32 %v1087, %v1102
          %v1104 = vadd.f32 %v1088, %v1101
          %v1105 = vadd.f32 %v1089, %v1100
          %v1106 = vadd.f32 %v1090, %v1099
          %1107 = vrot.lane.b32.xlu0 %v1103, 64
          %v1108 = vpop.permute.xlu0 %1107
          %1109 = vrot.lane.b32.xlu0 %v1104, 64
          %v1110 = vpop.permute.xlu0 %1109
          %1111 = vrot.lane.b32.xlu0 %v1105, 64
          %v1112 = vpop.permute.xlu0 %1111
          %1113 = vrot.lane.b32.xlu0 %v1106, 64
          %v1114 = vpop.permute.xlu0 %1113
          %v1115 = vsel %vm1022, %v1112, %v1114
          %v1116 = vsel %vm1022, %v1110, %v1112
          %v1117 = vsel %vm1022, %v1108, %v1110
          %v1118 = vsel %vm1022, %v1114, %v1108
          %v1119 = vadd.f32 %v1103, %v1118
          %v1120 = vadd.f32 %v1104, %v1117
          %v1121 = vadd.f32 %v1105, %v1116
          %v1122 = vadd.f32 %v1106, %v1115
          %v1123 = vadd.f32 %v1119, %v1122
          %v1124 = vadd.f32 %v1120, %v1119
          %v1125 = vadd.f32 %v1121, %v1120
          %v1126 = vadd.f32 %v1122, %v1121
          %v1127 = vadd.f32 %v1123, %v1125
          %v1128 = vadd.f32 %v1124, %v1126
          %v1129 = vrot.slane %v1127, 4
          %v1130 = vadd.f32 %v1127, %v1129
          %v1131 = vrot.slane %v1130, 2
          %v1132 = vadd.f32 %v1130, %v1131
          %v1133 = vrot.slane %v1132, 1
          %v1134 = vadd.f32 %v1132, %v1133
          %v1135 = vrot.slane %v1128, 4
          %v1136 = vadd.f32 %v1128, %v1135
          %v1137 = vrot.slane %v1136, 2
          %v1138 = vadd.f32 %v1136, %v1137
          %v1139 = vrot.slane %v1138, 1
          %v1140 = vadd.f32 %v1138, %v1139
          %v1141 = vmul.f32 %v1134, 0.001953125
          %v1142 = vmul.f32 %v1140, 0.001953125
          %v1143 = vadd.f32 %v1141, 1e-05
          %v1144 = vadd.f32 %v1142, 1e-05
          %v1145 = vrsqrt.pop %v1143
          %v1146 = vrsqrt.pop %v1144
          %v1147 = vmul.f32 %v1051, %v1145
          %v1148 = vmul.f32 %v1052, %v1146
          %v1149 = vmul.f32 %v1053, %v1145
          %v1150 = vmul.f32 %v1054, %v1146
          %v1151 = vmax.f32 %v1147, 0.0
          %v1152 = vmax.f32 %v1148, 0.0
          %v1153 = vmax.f32 %v1149, 0.0
          %v1154 = vmax.f32 %v1150, 0.0
          %1155 = vst [vmem:[#allocation2] sm:$0xff] %v1151
          %1156 = vst [vmem:[#allocation2 + $0x8] sm:$0xff] %v1152
          %1157 = vst [vmem:[#allocation2 + $0x10] sm:$0xff] %v1153
          %1158 = vst [vmem:[#allocation2 + $0x18] sm:$0xff] %v1154
          %v1159 = vld [vmem:[#allocation9] sm:$0xf]
          %v1161 = vlaneseq
          %v1162 = vshrl.u32 %v1161, 7
          %v1163 = vsub.s32 0, %v1162
          %v1164 = vrot.slane %v1159, %v1163
          %v1165 = vlaneseq
          %v1166 = vshrl.u32 %v1165, 7
          %v1167 = vsub.s32 1, %v1166
          %v1168 = vrot.slane %v1159, %v1167
          %v1169 = vlaneseq
          %v1170 = vshrl.u32 %v1169, 7
          %v1171 = vsub.s32 2, %v1170
          %v1172 = vrot.slane %v1159, %v1171
          %v1173 = vlaneseq
          %v1174 = vshrl.u32 %v1173, 7
          %v1175 = vsub.s32 3, %v1174
          %v1176 = vrot.slane %v1159, %v1175
          %1181 = vst [vmem:[#allocation3] sm:$0xff] %v1164
          %1182 = vst [vmem:[#allocation3 + $0x8] sm:$0xff] %v1168
          %1183 = vst [vmem:[#allocation3 + $0x10] sm:$0xff] %v1172
          %1184 = vst [vmem:[#allocation3 + $0x18] sm:$0xff] %v1176
        $region68: #{identity_block_forward.1} parent=43 // pred_fallthru
          _
        %v1185 = vld [vmem:[#allocation2] sm:$0xff]
        %v1186 = vld [vmem:[#allocation2 + $0x8] sm:$0xff]
        %v1187 = vld [vmem:[#allocation2 + $0x10] sm:$0xff]
        %v1188 = vld [vmem:[#allocation2 + $0x18] sm:$0xff]
        %v1189 = vlaneseq
        %v1190 = vshrl.u32 %v1189, 7
        %vm1191 = vcmp.lt.s32.totalorder %v1190, 0
        %v1192 = vsub.s32 0, %v1190
        %v1193 = vsel %vm1191, %v1192, %v1190
        %v1194 = vshrl.u32 %v1193, 2
        %v1195 = vand.u32 %v1193, 3
        %v1196 = vsub.s32 0, %v1195
        %v1197 = vsel %vm1191, %v1196, %v1195
        %vm1198 = vcmp.ne.s32.totalorder %v1197, 0
        %vm1199 = vcmp.lt.s32.totalorder %v1197, 0
        %vm1200 = vmand %vm1199, %vm1198
        %v1201 = vadd.s32 %v1197, 4
        %v1202 = vsel %vm1200, %v1201, %v1197
        %vm1203 = vcmp.eq.s32.totalorder %v1202, 0
        %v1204 = vrot.slane %v1185, 7
        %v1205 = vrot.slane %v1186, 7
        %v1206 = vrot.slane %v1187, 7
        %v1207 = vrot.slane %v1188, 7
        %v1208 = vsel %vm1203, 0.0, %v1204
        %v1209 = vsel %vm1203, 0.0, %v1205
        %v1210 = vsel %vm1203, 0.0, %v1206
        %v1211 = vsel %vm1203, 0.0, %v1207
        %vm1212 = vcmp.eq.s32.totalorder %v1202, 3
        %v1213 = vrot.slane %v1185, 1
        %v1214 = vrot.slane %v1186, 1
        %v1215 = vrot.slane %v1187, 1
        %v1216 = vrot.slane %v1188, 1
        %v1217 = vsel %vm1212, 0.0, %v1213
        %v1218 = vsel %vm1212, 0.0, %v1214
        %v1219 = vsel %vm1212, 0.0, %v1215
        %v1220 = vsel %vm1212, 0.0, %v1216
        %p1221 = scmp.eq.s32.totalorder %s22, 1
        %s1222 = scalar_select %p1221, 1, 0
        %v1223 = vstv %s1222
        %vm1224 = vcmp.eq.s32.totalorder %v1223, 1
        %v1225 = vsel %vm1224, %v1185, %v1217
        %v1226 = vsel %vm1224, %v1186, %v1218
        %v1227 = vsel %vm1224, %v1187, %v1219
        %v1228 = vsel %vm1224, %v1188, %v1220
        %s1229 = scalar_select %p311, 1, 0
        %v1230 = vstv %s1229
        %vm1231 = vcmp.eq.s32.totalorder %v1230, 1
        %v1232 = vsel %vm1231, %v1208, %v1225
        %v1233 = vsel %vm1231, %v1209, %v1226
        %v1234 = vsel %vm1231, %v1210, %v1227
        %v1235 = vsel %vm1231, %v1211, %v1228
        %v1236 = vld [vmem:[#allocation3] sm:$0xff]
        %v1237 = vld [vmem:[#allocation3 + $0x8] sm:$0xff]
        %v1238 = vld [vmem:[#allocation3 + $0x10] sm:$0xff]
        %v1239 = vld [vmem:[#allocation3 + $0x18] sm:$0xff]
        %v1240 = vpack.c.bf16 %v1232, %v1232
        %v1241 = vpack.c.bf16 %v1233, %v1233
        %v1242 = vpack.c.bf16 %v1234, %v1234
        %v1243 = vpack.c.bf16 %v1235, %v1235
        %v1244 = vld [vmem:[%s271] sm:$0xff]
        %v1245 = vld [vmem:[%s271 + $0x8] sm:$0xff]
        %v1246 = vld [vmem:[%s271 + $0x10] sm:$0xff]
        %v1247 = vld [vmem:[%s271 + $0x18] sm:$0xff]
        %v1248 = vld [vmem:[%s271 + $0x20] sm:$0xff]
        %v1249 = vld [vmem:[%s271 + $0x28] sm:$0xff]
        %v1250 = vld [vmem:[%s271 + $0x30] sm:$0xff]
        %v1251 = vld [vmem:[%s271 + $0x38] sm:$0xff]
        %v1252 = vld [vmem:[%s271 + $0x40] sm:$0xff]
        %v1253 = vld [vmem:[%s271 + $0x48] sm:$0xff]
        %v1254 = vld [vmem:[%s271 + $0x50] sm:$0xff]
        %v1255 = vld [vmem:[%s271 + $0x58] sm:$0xff]
        %v1256 = vld [vmem:[%s271 + $0x60] sm:$0xff]
        %v1257 = vld [vmem:[%s271 + $0x68] sm:$0xff]
        %v1258 = vld [vmem:[%s271 + $0x70] sm:$0xff]
        %v1259 = vld [vmem:[%s271 + $0x78] sm:$0xff]
        %v1260 = vld [vmem:[%s271 + $0x80] sm:$0xff]
        %v1261 = vld [vmem:[%s271 + $0x88] sm:$0xff]
        %v1262 = vld [vmem:[%s271 + $0x90] sm:$0xff]
        %v1263 = vld [vmem:[%s271 + $0x98] sm:$0xff]
        %v1264 = vld [vmem:[%s271 + $0xa0] sm:$0xff]
        %v1265 = vld [vmem:[%s271 + $0xa8] sm:$0xff]
        %v1266 = vld [vmem:[%s271 + $0xb0] sm:$0xff]
        %v1267 = vld [vmem:[%s271 + $0xb8] sm:$0xff]
        %v1268 = vld [vmem:[%s271 + $0xc0] sm:$0xff]
        %v1269 = vld [vmem:[%s271 + $0xc8] sm:$0xff]
        %v1270 = vld [vmem:[%s271 + $0xd0] sm:$0xff]
        %v1271 = vld [vmem:[%s271 + $0xd8] sm:$0xff]
        %v1272 = vld [vmem:[%s271 + $0xe0] sm:$0xff]
        %v1273 = vld [vmem:[%s271 + $0xe8] sm:$0xff]
        %v1274 = vld [vmem:[%s271 + $0xf0] sm:$0xff]
        %v1275 = vld [vmem:[%s271 + $0xf8] sm:$0xff]
        %v1276 = vld [vmem:[%s271 + $0x100] sm:$0xff]
        %v1277 = vld [vmem:[%s271 + $0x108] sm:$0xff]
        %v1278 = vld [vmem:[%s271 + $0x110] sm:$0xff]
        %v1279 = vld [vmem:[%s271 + $0x118] sm:$0xff]
        %v1280 = vld [vmem:[%s271 + $0x120] sm:$0xff]
        %v1281 = vld [vmem:[%s271 + $0x128] sm:$0xff]
        %v1282 = vld [vmem:[%s271 + $0x130] sm:$0xff]
        %v1283 = vld [vmem:[%s271 + $0x138] sm:$0xff]
        %v1284 = vld [vmem:[%s271 + $0x140] sm:$0xff]
        %v1285 = vld [vmem:[%s271 + $0x148] sm:$0xff]
        %v1286 = vld [vmem:[%s271 + $0x150] sm:$0xff]
        %v1287 = vld [vmem:[%s271 + $0x158] sm:$0xff]
        %v1288 = vld [vmem:[%s271 + $0x160] sm:$0xff]
        %v1289 = vld [vmem:[%s271 + $0x168] sm:$0xff]
        %v1290 = vld [vmem:[%s271 + $0x170] sm:$0xff]
        %v1291 = vld [vmem:[%s271 + $0x178] sm:$0xff]
        %v1292 = vld [vmem:[%s271 + $0x180] sm:$0xff]
        %v1293 = vld [vmem:[%s271 + $0x188] sm:$0xff]
        %v1294 = vld [vmem:[%s271 + $0x190] sm:$0xff]
        %v1295 = vld [vmem:[%s271 + $0x198] sm:$0xff]
        %v1296 = vld [vmem:[%s271 + $0x1a0] sm:$0xff]
        %v1297 = vld [vmem:[%s271 + $0x1a8] sm:$0xff]
        %v1298 = vld [vmem:[%s271 + $0x1b0] sm:$0xff]
        %v1299 = vld [vmem:[%s271 + $0x1b8] sm:$0xff]
        %v1300 = vld [vmem:[%s271 + $0x1c0] sm:$0xff]
        %v1301 = vld [vmem:[%s271 + $0x1c8] sm:$0xff]
        %v1302 = vld [vmem:[%s271 + $0x1d0] sm:$0xff]
        %v1303 = vld [vmem:[%s271 + $0x1d8] sm:$0xff]
        %v1304 = vld [vmem:[%s271 + $0x1e0] sm:$0xff]
        %v1305 = vld [vmem:[%s271 + $0x1e8] sm:$0xff]
        %v1306 = vld [vmem:[%s271 + $0x1f0] sm:$0xff]
        %v1307 = vld [vmem:[%s271 + $0x1f8] sm:$0xff]
        %v1308 = vld [vmem:[%s271 + $0x200] sm:$0xff]
        %v1309 = vld [vmem:[%s271 + $0x208] sm:$0xff]
        %v1310 = vld [vmem:[%s271 + $0x210] sm:$0xff]
        %v1311 = vld [vmem:[%s271 + $0x218] sm:$0xff]
        %v1312 = vld [vmem:[%s271 + $0x220] sm:$0xff]
        %v1313 = vld [vmem:[%s271 + $0x228] sm:$0xff]
        %v1314 = vld [vmem:[%s271 + $0x230] sm:$0xff]
        %v1315 = vld [vmem:[%s271 + $0x238] sm:$0xff]
        %v1316 = vld [vmem:[%s271 + $0x240] sm:$0xff]
        %v1317 = vld [vmem:[%s271 + $0x248] sm:$0xff]
        %v1318 = vld [vmem:[%s271 + $0x250] sm:$0xff]
        %v1319 = vld [vmem:[%s271 + $0x258] sm:$0xff]
        %v1320 = vld [vmem:[%s271 + $0x260] sm:$0xff]
        %v1321 = vld [vmem:[%s271 + $0x268] sm:$0xff]
        %v1322 = vld [vmem:[%s271 + $0x270] sm:$0xff]
        %v1323 = vld [vmem:[%s271 + $0x278] sm:$0xff]
        %v1324 = vld [vmem:[%s271 + $0x280] sm:$0xff]
        %v1325 = vld [vmem:[%s271 + $0x288] sm:$0xff]
        %v1326 = vld [vmem:[%s271 + $0x290] sm:$0xff]
        %v1327 = vld [vmem:[%s271 + $0x298] sm:$0xff]
        %v1328 = vld [vmem:[%s271 + $0x2a0] sm:$0xff]
        %v1329 = vld [vmem:[%s271 + $0x2a8] sm:$0xff]
        %v1330 = vld [vmem:[%s271 + $0x2b0] sm:$0xff]
        %v1331 = vld [vmem:[%s271 + $0x2b8] sm:$0xff]
        %v1332 = vld [vmem:[%s271 + $0x2c0] sm:$0xff]
        %v1333 = vld [vmem:[%s271 + $0x2c8] sm:$0xff]
        %v1334 = vld [vmem:[%s271 + $0x2d0] sm:$0xff]
        %v1335 = vld [vmem:[%s271 + $0x2d8] sm:$0xff]
        %v1336 = vld [vmem:[%s271 + $0x2e0] sm:$0xff]
        %v1337 = vld [vmem:[%s271 + $0x2e8] sm:$0xff]
        %v1338 = vld [vmem:[%s271 + $0x2f0] sm:$0xff]
        %v1339 = vld [vmem:[%s271 + $0x2f8] sm:$0xff]
        %v1340 = vld [vmem:[%s271 + $0x300] sm:$0xff]
        %v1341 = vld [vmem:[%s271 + $0x308] sm:$0xff]
        %v1342 = vld [vmem:[%s271 + $0x310] sm:$0xff]
        %v1343 = vld [vmem:[%s271 + $0x318] sm:$0xff]
        %v1344 = vld [vmem:[%s271 + $0x320] sm:$0xff]
        %v1345 = vld [vmem:[%s271 + $0x328] sm:$0xff]
        %v1346 = vld [vmem:[%s271 + $0x330] sm:$0xff]
        %v1347 = vld [vmem:[%s271 + $0x338] sm:$0xff]
        %v1348 = vld [vmem:[%s271 + $0x340] sm:$0xff]
        %v1349 = vld [vmem:[%s271 + $0x348] sm:$0xff]
        %v1350 = vld [vmem:[%s271 + $0x350] sm:$0xff]
        %v1351 = vld [vmem:[%s271 + $0x358] sm:$0xff]
        %v1352 = vld [vmem:[%s271 + $0x360] sm:$0xff]
        %v1353 = vld [vmem:[%s271 + $0x368] sm:$0xff]
        %v1354 = vld [vmem:[%s271 + $0x370] sm:$0xff]
        %v1355 = vld [vmem:[%s271 + $0x378] sm:$0xff]
        %v1356 = vld [vmem:[%s271 + $0x380] sm:$0xff]
        %v1357 = vld [vmem:[%s271 + $0x388] sm:$0xff]
        %v1358 = vld [vmem:[%s271 + $0x390] sm:$0xff]
        %v1359 = vld [vmem:[%s271 + $0x398] sm:$0xff]
        %v1360 = vld [vmem:[%s271 + $0x3a0] sm:$0xff]
        %v1361 = vld [vmem:[%s271 + $0x3a8] sm:$0xff]
        %v1362 = vld [vmem:[%s271 + $0x3b0] sm:$0xff]
        %v1363 = vld [vmem:[%s271 + $0x3b8] sm:$0xff]
        %v1364 = vld [vmem:[%s271 + $0x3c0] sm:$0xff]
        %v1365 = vld [vmem:[%s271 + $0x3c8] sm:$0xff]
        %v1366 = vld [vmem:[%s271 + $0x3d0] sm:$0xff]
        %v1367 = vld [vmem:[%s271 + $0x3d8] sm:$0xff]
        %v1368 = vld [vmem:[%s271 + $0x3e0] sm:$0xff]
        %v1369 = vld [vmem:[%s271 + $0x3e8] sm:$0xff]
        %v1370 = vld [vmem:[%s271 + $0x3f0] sm:$0xff]
        %v1371 = vld [vmem:[%s271 + $0x3f8] sm:$0xff]
        %v1500 = vunpack.c.l.b16 %v1244
        %v1501 = vunpack.c.h.b16 %v1244
        %v1502 = vunpack.c.l.b16 %v1245
        %v1503 = vunpack.c.h.b16 %v1245
        %v1504 = vunpack.c.l.b16 %v1246
        %v1505 = vunpack.c.h.b16 %v1246
        %v1506 = vunpack.c.l.b16 %v1247
        %v1507 = vunpack.c.h.b16 %v1247
        %v1508 = vunpack.c.l.b16 %v1248
        %v1509 = vunpack.c.h.b16 %v1248
        %v1510 = vunpack.c.l.b16 %v1249
        %v1511 = vunpack.c.h.b16 %v1249
        %v1512 = vunpack.c.l.b16 %v1250
        %v1513 = vunpack.c.h.b16 %v1250
        %v1514 = vunpack.c.l.b16 %v1251
        %v1515 = vunpack.c.h.b16 %v1251
        %v1516 = vunpack.c.l.b16 %v1252
        %v1517 = vunpack.c.h.b16 %v1252
        %v1518 = vunpack.c.l.b16 %v1253
        %v1519 = vunpack.c.h.b16 %v1253
        %v1520 = vunpack.c.l.b16 %v1254
        %v1521 = vunpack.c.h.b16 %v1254
        %v1522 = vunpack.c.l.b16 %v1255
        %v1523 = vunpack.c.h.b16 %v1255
        %v1524 = vunpack.c.l.b16 %v1256
        %v1525 = vunpack.c.h.b16 %v1256
        %v1526 = vunpack.c.l.b16 %v1257
        %v1527 = vunpack.c.h.b16 %v1257
        %v1528 = vunpack.c.l.b16 %v1258
        %v1529 = vunpack.c.h.b16 %v1258
        %v1530 = vunpack.c.l.b16 %v1259
        %v1531 = vunpack.c.h.b16 %v1259
        %v1532 = vunpack.c.l.b16 %v1260
        %v1533 = vunpack.c.h.b16 %v1260
        %v1534 = vunpack.c.l.b16 %v1261
        %v1535 = vunpack.c.h.b16 %v1261
        %v1536 = vunpack.c.l.b16 %v1262
        %v1537 = vunpack.c.h.b16 %v1262
        %v1538 = vunpack.c.l.b16 %v1263
        %v1539 = vunpack.c.h.b16 %v1263
        %v1540 = vunpack.c.l.b16 %v1264
        %v1541 = vunpack.c.h.b16 %v1264
        %v1542 = vunpack.c.l.b16 %v1265
        %v1543 = vunpack.c.h.b16 %v1265
        %v1544 = vunpack.c.l.b16 %v1266
        %v1545 = vunpack.c.h.b16 %v1266
        %v1546 = vunpack.c.l.b16 %v1267
        %v1547 = vunpack.c.h.b16 %v1267
        %v1548 = vunpack.c.l.b16 %v1268
        %v1549 = vunpack.c.h.b16 %v1268
        %v1550 = vunpack.c.l.b16 %v1269
        %v1551 = vunpack.c.h.b16 %v1269
        %v1552 = vunpack.c.l.b16 %v1270
        %v1553 = vunpack.c.h.b16 %v1270
        %v1554 = vunpack.c.l.b16 %v1271
        %v1555 = vunpack.c.h.b16 %v1271
        %v1556 = vunpack.c.l.b16 %v1272
        %v1557 = vunpack.c.h.b16 %v1272
        %v1558 = vunpack.c.l.b16 %v1273
        %v1559 = vunpack.c.h.b16 %v1273
        %v1560 = vunpack.c.l.b16 %v1274
        %v1561 = vunpack.c.h.b16 %v1274
        %v1562 = vunpack.c.l.b16 %v1275
        %v1563 = vunpack.c.h.b16 %v1275
        %v1564 = vunpack.c.l.b16 %v1276
        %v1565 = vunpack.c.h.b16 %v1276
        %v1566 = vunpack.c.l.b16 %v1277
        %v1567 = vunpack.c.h.b16 %v1277
        %v1568 = vunpack.c.l.b16 %v1278
        %v1569 = vunpack.c.h.b16 %v1278
        %v1570 = vunpack.c.l.b16 %v1279
        %v1571 = vunpack.c.h.b16 %v1279
        %v1572 = vunpack.c.l.b16 %v1280
        %v1573 = vunpack.c.h.b16 %v1280
        %v1574 = vunpack.c.l.b16 %v1281
        %v1575 = vunpack.c.h.b16 %v1281
        %v1576 = vunpack.c.l.b16 %v1282
        %v1577 = vunpack.c.h.b16 %v1282
        %v1578 = vunpack.c.l.b16 %v1283
        %v1579 = vunpack.c.h.b16 %v1283
        %v1580 = vunpack.c.l.b16 %v1284
        %v1581 = vunpack.c.h.b16 %v1284
        %v1582 = vunpack.c.l.b16 %v1285
        %v1583 = vunpack.c.h.b16 %v1285
        %v1584 = vunpack.c.l.b16 %v1286
        %v1585 = vunpack.c.h.b16 %v1286
        %v1586 = vunpack.c.l.b16 %v1287
        %v1587 = vunpack.c.h.b16 %v1287
        %v1588 = vunpack.c.l.b16 %v1288
        %v1589 = vunpack.c.h.b16 %v1288
        %v1590 = vunpack.c.l.b16 %v1289
        %v1591 = vunpack.c.h.b16 %v1289
        %v1592 = vunpack.c.l.b16 %v1290
        %v1593 = vunpack.c.h.b16 %v1290
        %v1594 = vunpack.c.l.b16 %v1291
        %v1595 = vunpack.c.h.b16 %v1291
        %v1596 = vunpack.c.l.b16 %v1292
        %v1597 = vunpack.c.h.b16 %v1292
        %v1598 = vunpack.c.l.b16 %v1293
        %v1599 = vunpack.c.h.b16 %v1293
        %v1600 = vunpack.c.l.b16 %v1294
        %v1601 = vunpack.c.h.b16 %v1294
        %v1602 = vunpack.c.l.b16 %v1295
        %v1603 = vunpack.c.h.b16 %v1295
        %v1604 = vunpack.c.l.b16 %v1296
        %v1605 = vunpack.c.h.b16 %v1296
        %v1606 = vunpack.c.l.b16 %v1297
        %v1607 = vunpack.c.h.b16 %v1297
        %v1608 = vunpack.c.l.b16 %v1298
        %v1609 = vunpack.c.h.b16 %v1298
        %v1610 = vunpack.c.l.b16 %v1299
        %v1611 = vunpack.c.h.b16 %v1299
        %v1612 = vunpack.c.l.b16 %v1300
        %v1613 = vunpack.c.h.b16 %v1300
        %v1614 = vunpack.c.l.b16 %v1301
        %v1615 = vunpack.c.h.b16 %v1301
        %v1616 = vunpack.c.l.b16 %v1302
        %v1617 = vunpack.c.h.b16 %v1302
        %v1618 = vunpack.c.l.b16 %v1303
        %v1619 = vunpack.c.h.b16 %v1303
        %v1620 = vunpack.c.l.b16 %v1304
        %v1621 = vunpack.c.h.b16 %v1304
        %v1622 = vunpack.c.l.b16 %v1305
        %v1623 = vunpack.c.h.b16 %v1305
        %v1624 = vunpack.c.l.b16 %v1306
        %v1625 = vunpack.c.h.b16 %v1306
        %v1626 = vunpack.c.l.b16 %v1307
        %v1627 = vunpack.c.h.b16 %v1307
        %v1628 = vunpack.c.l.b16 %v1308
        %v1629 = vunpack.c.h.b16 %v1308
        %v1630 = vunpack.c.l.b16 %v1309
        %v1631 = vunpack.c.h.b16 %v1309
        %v1632 = vunpack.c.l.b16 %v1310
        %v1633 = vunpack.c.h.b16 %v1310
        %v1634 = vunpack.c.l.b16 %v1311
        %v1635 = vunpack.c.h.b16 %v1311
        %v1636 = vunpack.c.l.b16 %v1312
        %v1637 = vunpack.c.h.b16 %v1312
        %v1638 = vunpack.c.l.b16 %v1313
        %v1639 = vunpack.c.h.b16 %v1313
        %v1640 = vunpack.c.l.b16 %v1314
        %v1641 = vunpack.c.h.b16 %v1314
        %v1642 = vunpack.c.l.b16 %v1315
        %v1643 = vunpack.c.h.b16 %v1315
        %v1644 = vunpack.c.l.b16 %v1316
        %v1645 = vunpack.c.h.b16 %v1316
        %v1646 = vunpack.c.l.b16 %v1317
        %v1647 = vunpack.c.h.b16 %v1317
        %v1648 = vunpack.c.l.b16 %v1318
        %v1649 = vunpack.c.h.b16 %v1318
        %v1650 = vunpack.c.l.b16 %v1319
        %v1651 = vunpack.c.h.b16 %v1319
        %v1652 = vunpack.c.l.b16 %v1320
        %v1653 = vunpack.c.h.b16 %v1320
        %v1654 = vunpack.c.l.b16 %v1321
        %v1655 = vunpack.c.h.b16 %v1321
        %v1656 = vunpack.c.l.b16 %v1322
        %v1657 = vunpack.c.h.b16 %v1322
        %v1658 = vunpack.c.l.b16 %v1323
        %v1659 = vunpack.c.h.b16 %v1323
        %v1660 = vunpack.c.l.b16 %v1324
        %v1661 = vunpack.c.h.b16 %v1324
        %v1662 = vunpack.c.l.b16 %v1325
        %v1663 = vunpack.c.h.b16 %v1325
        %v1664 = vunpack.c.l.b16 %v1326
        %v1665 = vunpack.c.h.b16 %v1326
        %v1666 = vunpack.c.l.b16 %v1327
        %v1667 = vunpack.c.h.b16 %v1327
        %v1668 = vunpack.c.l.b16 %v1328
        %v1669 = vunpack.c.h.b16 %v1328
        %v1670 = vunpack.c.l.b16 %v1329
        %v1671 = vunpack.c.h.b16 %v1329
        %v1672 = vunpack.c.l.b16 %v1330
        %v1673 = vunpack.c.h.b16 %v1330
        %v1674 = vunpack.c.l.b16 %v1331
        %v1675 = vunpack.c.h.b16 %v1331
        %v1676 = vunpack.c.l.b16 %v1332
        %v1677 = vunpack.c.h.b16 %v1332
        %v1678 = vunpack.c.l.b16 %v1333
        %v1679 = vunpack.c.h.b16 %v1333
        %v1680 = vunpack.c.l.b16 %v1334
        %v1681 = vunpack.c.h.b16 %v1334
        %v1682 = vunpack.c.l.b16 %v1335
        %v1683 = vunpack.c.h.b16 %v1335
        %v1684 = vunpack.c.l.b16 %v1336
        %v1685 = vunpack.c.h.b16 %v1336
        %v1686 = vunpack.c.l.b16 %v1337
        %v1687 = vunpack.c.h.b16 %v1337
        %v1688 = vunpack.c.l.b16 %v1338
        %v1689 = vunpack.c.h.b16 %v1338
        %v1690 = vunpack.c.l.b16 %v1339
        %v1691 = vunpack.c.h.b16 %v1339
        %v1692 = vunpack.c.l.b16 %v1340
        %v1693 = vunpack.c.h.b16 %v1340
        %v1694 = vunpack.c.l.b16 %v1341
        %v1695 = vunpack.c.h.b16 %v1341
        %v1696 = vunpack.c.l.b16 %v1342
        %v1697 = vunpack.c.h.b16 %v1342
        %v1698 = vunpack.c.l.b16 %v1343
        %v1699 = vunpack.c.h.b16 %v1343
        %v1700 = vunpack.c.l.b16 %v1344
        %v1701 = vunpack.c.h.b16 %v1344
        %v1702 = vunpack.c.l.b16 %v1345
        %v1703 = vunpack.c.h.b16 %v1345
        %v1704 = vunpack.c.l.b16 %v1346
        %v1705 = vunpack.c.h.b16 %v1346
        %v1706 = vunpack.c.l.b16 %v1347
        %v1707 = vunpack.c.h.b16 %v1347
        %v1708 = vunpack.c.l.b16 %v1348
        %v1709 = vunpack.c.h.b16 %v1348
        %v1710 = vunpack.c.l.b16 %v1349
        %v1711 = vunpack.c.h.b16 %v1349
        %v1712 = vunpack.c.l.b16 %v1350
        %v1713 = vunpack.c.h.b16 %v1350
        %v1714 = vunpack.c.l.b16 %v1351
        %v1715 = vunpack.c.h.b16 %v1351
        %v1716 = vunpack.c.l.b16 %v1352
        %v1717 = vunpack.c.h.b16 %v1352
        %v1718 = vunpack.c.l.b16 %v1353
        %v1719 = vunpack.c.h.b16 %v1353
        %v1720 = vunpack.c.l.b16 %v1354
        %v1721 = vunpack.c.h.b16 %v1354
        %v1722 = vunpack.c.l.b16 %v1355
        %v1723 = vunpack.c.h.b16 %v1355
        %v1724 = vunpack.c.l.b16 %v1356
        %v1725 = vunpack.c.h.b16 %v1356
        %v1726 = vunpack.c.l.b16 %v1357
        %v1727 = vunpack.c.h.b16 %v1357
        %v1728 = vunpack.c.l.b16 %v1358
        %v1729 = vunpack.c.h.b16 %v1358
        %v1730 = vunpack.c.l.b16 %v1359
        %v1731 = vunpack.c.h.b16 %v1359
        %v1732 = vunpack.c.l.b16 %v1360
        %v1733 = vunpack.c.h.b16 %v1360
        %v1734 = vunpack.c.l.b16 %v1361
        %v1735 = vunpack.c.h.b16 %v1361
        %v1736 = vunpack.c.l.b16 %v1362
        %v1737 = vunpack.c.h.b16 %v1362
        %v1738 = vunpack.c.l.b16 %v1363
        %v1739 = vunpack.c.h.b16 %v1363
        %v1740 = vunpack.c.l.b16 %v1364
        %v1741 = vunpack.c.h.b16 %v1364
        %v1742 = vunpack.c.l.b16 %v1365
        %v1743 = vunpack.c.h.b16 %v1365
        %v1744 = vunpack.c.l.b16 %v1366
        %v1745 = vunpack.c.h.b16 %v1366
        %v1746 = vunpack.c.l.b16 %v1367
        %v1747 = vunpack.c.h.b16 %v1367
        %v1748 = vunpack.c.l.b16 %v1368
        %v1749 = vunpack.c.h.b16 %v1368
        %v1750 = vunpack.c.l.b16 %v1369
        %v1751 = vunpack.c.h.b16 %v1369
        %v1752 = vunpack.c.l.b16 %v1370
        %v1753 = vunpack.c.h.b16 %v1370
        %v1754 = vunpack.c.l.b16 %v1371
        %v1755 = vunpack.c.h.b16 %v1371
        %v1756 = vpack.c.b16 %v1504, %v1500
        %v1757 = vpack.c.b16 %v1505, %v1501
        %v1758 = vpack.c.b16 %v1506, %v1502
        %v1759 = vpack.c.b16 %v1507, %v1503
        %v1760 = vpack.c.b16 %v1512, %v1508
        %v1761 = vpack.c.b16 %v1513, %v1509
        %v1762 = vpack.c.b16 %v1514, %v1510
        %v1763 = vpack.c.b16 %v1515, %v1511
        %v1764 = vpack.c.b16 %v1520, %v1516
        %v1765 = vpack.c.b16 %v1521, %v1517
        %v1766 = vpack.c.b16 %v1522, %v1518
        %v1767 = vpack.c.b16 %v1523, %v1519
        %v1768 = vpack.c.b16 %v1528, %v1524
        %v1769 = vpack.c.b16 %v1529, %v1525
        %v1770 = vpack.c.b16 %v1530, %v1526
        %v1771 = vpack.c.b16 %v1531, %v1527
        %v1772 = vpack.c.b16 %v1536, %v1532
        %v1773 = vpack.c.b16 %v1537, %v1533
        %v1774 = vpack.c.b16 %v1538, %v1534
        %v1775 = vpack.c.b16 %v1539, %v1535
        %v1776 = vpack.c.b16 %v1544, %v1540
        %v1777 = vpack.c.b16 %v1545, %v1541
        %v1778 = vpack.c.b16 %v1546, %v1542
        %v1779 = vpack.c.b16 %v1547, %v1543
        %v1780 = vpack.c.b16 %v1552, %v1548
        %v1781 = vpack.c.b16 %v1553, %v1549
        %v1782 = vpack.c.b16 %v1554, %v1550
        %v1783 = vpack.c.b16 %v1555, %v1551
        %v1784 = vpack.c.b16 %v1560, %v1556
        %v1785 = vpack.c.b16 %v1561, %v1557
        %v1786 = vpack.c.b16 %v1562, %v1558
        %v1787 = vpack.c.b16 %v1563, %v1559
        %v1788 = vpack.c.b16 %v1568, %v1564
        %v1789 = vpack.c.b16 %v1569, %v1565
        %v1790 = vpack.c.b16 %v1570, %v1566
        %v1791 = vpack.c.b16 %v1571, %v1567
        %v1792 = vpack.c.b16 %v1576, %v1572
        %v1793 = vpack.c.b16 %v1577, %v1573
        %v1794 = vpack.c.b16 %v1578, %v1574
        %v1795 = vpack.c.b16 %v1579, %v1575
        %v1796 = vpack.c.b16 %v1584, %v1580
        %v1797 = vpack.c.b16 %v1585, %v1581
        %v1798 = vpack.c.b16 %v1586, %v1582
        %v1799 = vpack.c.b16 %v1587, %v1583
        %v1800 = vpack.c.b16 %v1592, %v1588
        %v1801 = vpack.c.b16 %v1593, %v1589
        %v1802 = vpack.c.b16 %v1594, %v1590
        %v1803 = vpack.c.b16 %v1595, %v1591
        %v1804 = vpack.c.b16 %v1600, %v1596
        %v1805 = vpack.c.b16 %v1601, %v1597
        %v1806 = vpack.c.b16 %v1602, %v1598
        %v1807 = vpack.c.b16 %v1603, %v1599
        %v1808 = vpack.c.b16 %v1608, %v1604
        %v1809 = vpack.c.b16 %v1609, %v1605
        %v1810 = vpack.c.b16 %v1610, %v1606
        %v1811 = vpack.c.b16 %v1611, %v1607
        %v1812 = vpack.c.b16 %v1616, %v1612
        %v1813 = vpack.c.b16 %v1617, %v1613
        %v1814 = vpack.c.b16 %v1618, %v1614
        %v1815 = vpack.c.b16 %v1619, %v1615
        %v1816 = vpack.c.b16 %v1624, %v1620
        %v1817 = vpack.c.b16 %v1625, %v1621
        %v1818 = vpack.c.b16 %v1626, %v1622
        %v1819 = vpack.c.b16 %v1627, %v1623
        %v1820 = vpack.c.b16 %v1632, %v1628
        %v1821 = vpack.c.b16 %v1633, %v1629
        %v1822 = vpack.c.b16 %v1634, %v1630
        %v1823 = vpack.c.b16 %v1635, %v1631
        %v1824 = vpack.c.b16 %v1640, %v1636
        %v1825 = vpack.c.b16 %v1641, %v1637
        %v1826 = vpack.c.b16 %v1642, %v1638
        %v1827 = vpack.c.b16 %v1643, %v1639
        %v1828 = vpack.c.b16 %v1648, %v1644
        %v1829 = vpack.c.b16 %v1649, %v1645
        %v1830 = vpack.c.b16 %v1650, %v1646
        %v1831 = vpack.c.b16 %v1651, %v1647
        %v1832 = vpack.c.b16 %v1656, %v1652
        %v1833 = vpack.c.b16 %v1657, %v1653
        %v1834 = vpack.c.b16 %v1658, %v1654
        %v1835 = vpack.c.b16 %v1659, %v1655
        %v1836 = vpack.c.b16 %v1664, %v1660
        %v1837 = vpack.c.b16 %v1665, %v1661
        %v1838 = vpack.c.b16 %v1666, %v1662
        %v1839 = vpack.c.b16 %v1667, %v1663
        %v1840 = vpack.c.b16 %v1672, %v1668
        %v1841 = vpack.c.b16 %v1673, %v1669
        %v1842 = vpack.c.b16 %v1674, %v1670
        %v1843 = vpack.c.b16 %v1675, %v1671
        %v1844 = vpack.c.b16 %v1680, %v1676
        %v1845 = vpack.c.b16 %v1681, %v1677
        %v1846 = vpack.c.b16 %v1682, %v1678
        %v1847 = vpack.c.b16 %v1683, %v1679
        %v1848 = vpack.c.b16 %v1688, %v1684
        %v1849 = vpack.c.b16 %v1689, %v1685
        %v1850 = vpack.c.b16 %v1690, %v1686
        %v1851 = vpack.c.b16 %v1691, %v1687
        %v1852 = vpack.c.b16 %v1696, %v1692
        %v1853 = vpack.c.b16 %v1697, %v1693
        %v1854 = vpack.c.b16 %v1698, %v1694
        %v1855 = vpack.c.b16 %v1699, %v1695
        %v1856 = vpack.c.b16 %v1704, %v1700
        %v1857 = vpack.c.b16 %v1705, %v1701
        %v1858 = vpack.c.b16 %v1706, %v1702
        %v1859 = vpack.c.b16 %v1707, %v1703
        %v1860 = vpack.c.b16 %v1712, %v1708
        %v1861 = vpack.c.b16 %v1713, %v1709
        %v1862 = vpack.c.b16 %v1714, %v1710
        %v1863 = vpack.c.b16 %v1715, %v1711
        %v1864 = vpack.c.b16 %v1720, %v1716
        %v1865 = vpack.c.b16 %v1721, %v1717
        %v1866 = vpack.c.b16 %v1722, %v1718
        %v1867 = vpack.c.b16 %v1723, %v1719
        %v1868 = vpack.c.b16 %v1728, %v1724
        %v1869 = vpack.c.b16 %v1729, %v1725
        %v1870 = vpack.c.b16 %v1730, %v1726
        %v1871 = vpack.c.b16 %v1731, %v1727
        %v1872 = vpack.c.b16 %v1736, %v1732
        %v1873 = vpack.c.b16 %v1737, %v1733
        %v1874 = vpack.c.b16 %v1738, %v1734
        %v1875 = vpack.c.b16 %v1739, %v1735
        %v1876 = vpack.c.b16 %v1744, %v1740
        %v1877 = vpack.c.b16 %v1745, %v1741
        %v1878 = vpack.c.b16 %v1746, %v1742
        %v1879 = vpack.c.b16 %v1747, %v1743
        %v1880 = vpack.c.b16 %v1752, %v1748
        %v1881 = vpack.c.b16 %v1753, %v1749
        %v1882 = vpack.c.b16 %v1754, %v1750
        %v1883 = vpack.c.b16 %v1755, %v1751
        %2012 = vmatprep.subr.bf16.mxu0 %v1757
        %2013 = vmatpush1.bf16.msra.mxu0 %v1756
        %2014 = vmatprep.subr.bf16.mxu0 %v1761
        %2015 = vmatpush1.bf16.msra.mxu0 %v1760
        %2016 = vmatprep.subr.bf16.mxu0 %v1765
        %2017 = vmatpush1.bf16.msra.mxu0 %v1764
        %2018 = vmatprep.subr.bf16.mxu0 %v1769
        %2019 = vmatpush1.bf16.msra.mxu0 %v1768
        %2020 = vmatprep.subr.bf16.mxu0 %v1773
        %2021 = vmatpush1.bf16.msra.mxu0 %v1772
        %2022 = vmatprep.subr.bf16.mxu0 %v1777
        %2023 = vmatpush1.bf16.msra.mxu0 %v1776
        %2024 = vmatprep.subr.bf16.mxu0 %v1781
        %2025 = vmatpush1.bf16.msra.mxu0 %v1780
        %2026 = vmatprep.subr.bf16.mxu0 %v1785
        %2027 = vmatpush1.bf16.msra.mxu0 %v1784
        %2028 = vmatprep.subr.bf16.mxu0 %v1789
        %2029 = vmatpush1.bf16.msra.mxu0 %v1788
        %2030 = vmatprep.subr.bf16.mxu0 %v1793
        %2031 = vmatpush1.bf16.msra.mxu0 %v1792
        %2032 = vmatprep.subr.bf16.mxu0 %v1797
        %2033 = vmatpush1.bf16.msra.mxu0 %v1796
        %2034 = vmatprep.subr.bf16.mxu0 %v1801
        %2035 = vmatpush1.bf16.msra.mxu0 %v1800
        %2036 = vmatprep.subr.bf16.mxu0 %v1805
        %2037 = vmatpush1.bf16.msra.mxu0 %v1804
        %2038 = vmatprep.subr.bf16.mxu0 %v1809
        %2039 = vmatpush1.bf16.msra.mxu0 %v1808
        %2040 = vmatprep.subr.bf16.mxu0 %v1813
        %2041 = vmatpush1.bf16.msra.mxu0 %v1812
        %2042 = vmatprep.subr.bf16.mxu0 %v1817
        %2043 = vmatpush1.bf16.msra.mxu0 %v1816
        %2044 = vmatprep.mubr.bf16.mxu0 %v1241
        %2045 = vmatmul.mubr.bf16.gmra.mrb[0].mxu0 %v1240
        %v2046 = vpop.f32.mrb[0].mxu0
        %v2047 = vadd.f32 0.0, %v2046
        %v2048 = vpop.f32.mrb[0].mxu0
        %v2049 = vadd.f32 0.0, %v2048
        %v2050 = vpop.f32.mrb[0].mxu0
        %v2051 = vpop.f32.mrb[0].mxu0
        %2052 = vdwg.mxu0
        %2053 = vmatprep.subr.bf16.mxu0 %v1821
        %2054 = vmatpush1.bf16.msra.mxu0 %v1820
        %2055 = vmatprep.subr.bf16.mxu0 %v1825
        %2056 = vmatpush1.bf16.msra.mxu0 %v1824
        %2057 = vmatprep.subr.bf16.mxu0 %v1829
        %2058 = vmatpush1.bf16.msra.mxu0 %v1828
        %2059 = vmatprep.subr.bf16.mxu0 %v1833
        %2060 = vmatpush1.bf16.msra.mxu0 %v1832
        %2061 = vmatprep.subr.bf16.mxu0 %v1837
        %2062 = vmatpush1.bf16.msra.mxu0 %v1836
        %2063 = vmatprep.subr.bf16.mxu0 %v1841
        %2064 = vmatpush1.bf16.msra.mxu0 %v1840
        %2065 = vmatprep.subr.bf16.mxu0 %v1845
        %2066 = vmatpush1.bf16.msra.mxu0 %v1844
        %2067 = vmatprep.subr.bf16.mxu0 %v1849
        %2068 = vmatpush1.bf16.msra.mxu0 %v1848
        %2069 = vmatprep.subr.bf16.mxu0 %v1853
        %2070 = vmatpush1.bf16.msra.mxu0 %v1852
        %2071 = vmatprep.subr.bf16.mxu0 %v1857
        %2072 = vmatpush1.bf16.msra.mxu0 %v1856
        %2073 = vmatprep.subr.bf16.mxu0 %v1861
        %2074 = vmatpush1.bf16.msra.mxu0 %v1860
        %2075 = vmatprep.subr.bf16.mxu0 %v1865
        %2076 = vmatpush1.bf16.msra.mxu0 %v1864
        %2077 = vmatprep.subr.bf16.mxu0 %v1869
        %2078 = vmatpush1.bf16.msra.mxu0 %v1868
        %2079 = vmatprep.subr.bf16.mxu0 %v1873
        %2080 = vmatpush1.bf16.msra.mxu0 %v1872
        %2081 = vmatprep.subr.bf16.mxu0 %v1877
        %2082 = vmatpush1.bf16.msra.mxu0 %v1876
        %2083 = vmatprep.subr.bf16.mxu0 %v1881
        %2084 = vmatpush1.bf16.msra.mxu0 %v1880
        %2085 = vmatprep.mubr.bf16.mxu0 %v1243
        %2086 = vmatmul.mubr.bf16.gmra.mrb[0].mxu0 %v1242
        %v2087 = vpop.f32.mrb[0].mxu0
        %v2088 = vadd.f32 %v2047, %v2087
        %v2089 = vpop.f32.mrb[0].mxu0
        %v2090 = vadd.f32 %v2049, %v2089
        %v2091 = vpop.f32.mrb[0].mxu0
        %v2092 = vpop.f32.mrb[0].mxu0
        %2093 = vdwg.mxu0
        %2094 = vmatprep.subr.bf16.mxu0 %v1759
        %2095 = vmatpush1.bf16.msra.mxu0 %v1758
        %2096 = vmatprep.subr.bf16.mxu0 %v1763
        %2097 = vmatpush1.bf16.msra.mxu0 %v1762
        %2098 = vmatprep.subr.bf16.mxu0 %v1767
        %2099 = vmatpush1.bf16.msra.mxu0 %v1766
        %2100 = vmatprep.subr.bf16.mxu0 %v1771
        %2101 = vmatpush1.bf16.msra.mxu0 %v1770
        %2102 = vmatprep.subr.bf16.mxu0 %v1775
        %2103 = vmatpush1.bf16.msra.mxu0 %v1774
        %2104 = vmatprep.subr.bf16.mxu0 %v1779
        %2105 = vmatpush1.bf16.msra.mxu0 %v1778
        %2106 = vmatprep.subr.bf16.mxu0 %v1783
        %2107 = vmatpush1.bf16.msra.mxu0 %v1782
        %2108 = vmatprep.subr.bf16.mxu0 %v1787
        %2109 = vmatpush1.bf16.msra.mxu0 %v1786
        %2110 = vmatprep.subr.bf16.mxu0 %v1791
        %2111 = vmatpush1.bf16.msra.mxu0 %v1790
        %2112 = vmatprep.subr.bf16.mxu0 %v1795
        %2113 = vmatpush1.bf16.msra.mxu0 %v1794
        %2114 = vmatprep.subr.bf16.mxu0 %v1799
        %2115 = vmatpush1.bf16.msra.mxu0 %v1798
        %2116 = vmatprep.subr.bf16.mxu0 %v1803
        %2117 = vmatpush1.bf16.msra.mxu0 %v1802
        %2118 = vmatprep.subr.bf16.mxu0 %v1807
        %2119 = vmatpush1.bf16.msra.mxu0 %v1806
        %2120 = vmatprep.subr.bf16.mxu0 %v1811
        %2121 = vmatpush1.bf16.msra.mxu0 %v1810
        %2122 = vmatprep.subr.bf16.mxu0 %v1815
        %2123 = vmatpush1.bf16.msra.mxu0 %v1814
        %2124 = vmatprep.subr.bf16.mxu0 %v1819
        %2125 = vmatpush1.bf16.msra.mxu0 %v1818
        %2126 = vmatprep.mubr.bf16.mxu0 %v1241
        %2127 = vmatmul.mubr.bf16.gmra.mrb[0].mxu0 %v1240
        %v2128 = vpop.f32.mrb[0].mxu0
        %v2129 = vadd.f32 0.0, %v2128
        %v2130 = vpop.f32.mrb[0].mxu0
        %v2131 = vadd.f32 0.0, %v2130
        %v2132 = vpop.f32.mrb[0].mxu0
        %v2133 = vpop.f32.mrb[0].mxu0
        %2134 = vdwg.mxu0
        %2135 = vmatprep.subr.bf16.mxu0 %v1823
        %2136 = vmatpush1.bf16.msra.mxu0 %v1822
        %2137 = vmatprep.subr.bf16.mxu0 %v1827
        %2138 = vmatpush1.bf16.msra.mxu0 %v1826
        %2139 = vmatprep.subr.bf16.mxu0 %v1831
        %2140 = vmatpush1.bf16.msra.mxu0 %v1830
        %2141 = vmatprep.subr.bf16.mxu0 %v1835
        %2142 = vmatpush1.bf16.msra.mxu0 %v1834
        %2143 = vmatprep.subr.bf16.mxu0 %v1839
        %2144 = vmatpush1.bf16.msra.mxu0 %v1838
        %2145 = vmatprep.subr.bf16.mxu0 %v1843
        %2146 = vmatpush1.bf16.msra.mxu0 %v1842
        %2147 = vmatprep.subr.bf16.mxu0 %v1847
        %2148 = vmatpush1.bf16.msra.mxu0 %v1846
        %2149 = vmatprep.subr.bf16.mxu0 %v1851
        %2150 = vmatpush1.bf16.msra.mxu0 %v1850
        %2151 = vmatprep.subr.bf16.mxu0 %v1855
        %2152 = vmatpush1.bf16.msra.mxu0 %v1854
        %2153 = vmatprep.subr.bf16.mxu0 %v1859
        %2154 = vmatpush1.bf16.msra.mxu0 %v1858
        %2155 = vmatprep.subr.bf16.mxu0 %v1863
        %2156 = vmatpush1.bf16.msra.mxu0 %v1862
        %2157 = vmatprep.subr.bf16.mxu0 %v1867
        %2158 = vmatpush1.bf16.msra.mxu0 %v1866
        %2159 = vmatprep.subr.bf16.mxu0 %v1871
        %2160 = vmatpush1.bf16.msra.mxu0 %v1870
        %2161 = vmatprep.subr.bf16.mxu0 %v1875
        %2162 = vmatpush1.bf16.msra.mxu0 %v1874
        %2163 = vmatprep.subr.bf16.mxu0 %v1879
        %2164 = vmatpush1.bf16.msra.mxu0 %v1878
        %2165 = vmatprep.subr.bf16.mxu0 %v1883
        %2166 = vmatpush1.bf16.msra.mxu0 %v1882
        %2167 = vmatprep.mubr.bf16.mxu0 %v1243
        %2168 = vmatmul.mubr.bf16.gmra.mrb[0].mxu0 %v1242
        %v2169 = vpop.f32.mrb[0].mxu0
        %v2170 = vadd.f32 %v2129, %v2169
        %v2171 = vpop.f32.mrb[0].mxu0
        %v2172 = vadd.f32 %v2131, %v2171
        %v2173 = vpop.f32.mrb[0].mxu0
        %v2174 = vpop.f32.mrb[0].mxu0
        %2175 = vdwg.mxu0
        %v2176 = vadd.f32 %v1236, %v2088
        %v2177 = vadd.f32 %v1237, %v2090
        %v2178 = vadd.f32 %v1238, %v2170
        %v2179 = vadd.f32 %v1239, %v2172
        %2180 = vst [vmem:[#allocation3] sm:$0xff] %v2176
        %2181 = vst [vmem:[#allocation3 + $0x8] sm:$0xff] %v2177
        %2182 = vst [vmem:[#allocation3 + $0x10] sm:$0xff] %v2178
        %2183 = vst [vmem:[#allocation3 + $0x18] sm:$0xff] %v2179
        %p2184 = scmp.eq.s32.totalorder %s22, 2
        // Predicated region
        $region69: #{identity_block_forward.1} parent=43 // pred_check
          %p2185 = pneg %p2184
        $region70: #{identity_block_forward.1} parent=43 // pred_check_branch
          %2187 = sbr.rel (%p2185) target = $region72
        $region71: #{identity_block_forward.1} parent=43 // pred_region
          %v2188 = vld [vmem:[%s0] sm:$0xff]
          %v2189 = vld [vmem:[%s0 + $0x8] sm:$0xff]
          %v2190 = vld [vmem:[%s0 + $0x10] sm:$0xff]
          %v2191 = vld [vmem:[%s0 + $0x18] sm:$0xff]
          %v2192 = vld [vmem:[#allocation3] sm:$0xff]
          %v2193 = vld [vmem:[#allocation3 + $0x8] sm:$0xff]
          %v2194 = vld [vmem:[#allocation3 + $0x10] sm:$0xff]
          %v2195 = vld [vmem:[#allocation3 + $0x18] sm:$0xff]
          %2196 = vrot.lane.b32.xlu0 %v2192, 8
          %v2197 = vpop.permute.xlu0 %2196
          %2198 = vrot.lane.b32.xlu0 %v2193, 8
          %v2199 = vpop.permute.xlu0 %2198
          %2200 = vrot.lane.b32.xlu0 %v2194, 8
          %v2201 = vpop.permute.xlu0 %2200
          %2202 = vrot.lane.b32.xlu0 %v2195, 8
          %v2203 = vpop.permute.xlu0 %2202
          %v2204 = vlaneseq
          %v2205 = vand.u32 %v2204, 127
          %vm2206 = vcmp.lt.s32.totalorder %v2205, 8
          %v2207 = vsel %vm2206, %v2201, %v2203
          %v2208 = vsel %vm2206, %v2199, %v2201
          %v2209 = vsel %vm2206, %v2197, %v2199
          %v2210 = vsel %vm2206, %v2203, %v2197
          %v2211 = vadd.f32 %v2192, %v2210
          %v2212 = vadd.f32 %v2193, %v2209
          %v2213 = vadd.f32 %v2194, %v2208
          %v2214 = vadd.f32 %v2195, %v2207
          %2215 = vrot.lane.b32.xlu0 %v2211, 16
          %v2216 = vpop.permute.xlu0 %2215
          %2217 = vrot.lane.b32.xlu0 %v2212, 16
          %v2218 = vpop.permute.xlu0 %2217
          %2219 = vrot.lane.b32.xlu0 %v2213, 16
          %v2220 = vpop.permute.xlu0 %2219
          %2221 = vrot.lane.b32.xlu0 %v2214, 16
          %v2222 = vpop.permute.xlu0 %2221
          %vm2223 = vcmp.lt.s32.totalorder %v2205, 16
          %v2224 = vsel %vm2223, %v2220, %v2222
          %v2225 = vsel %vm2223, %v2218, %v2220
          %v2226 = vsel %vm2223, %v2216, %v2218
          %v2227 = vsel %vm2223, %v2222, %v2216
          %v2228 = vadd.f32 %v2211, %v2227
          %v2229 = vadd.f32 %v2212, %v2226
          %v2230 = vadd.f32 %v2213, %v2225
          %v2231 = vadd.f32 %v2214, %v2224
          %2232 = vrot.lane.b32.xlu0 %v2228, 32
          %v2233 = vpop.permute.xlu0 %2232
          %2234 = vrot.lane.b32.xlu0 %v2229, 32
          %v2235 = vpop.permute.xlu0 %2234
          %2236 = vrot.lane.b32.xlu0 %v2230, 32
          %v2237 = vpop.permute.xlu0 %2236
          %2238 = vrot.lane.b32.xlu0 %v2231, 32
          %v2239 = vpop.permute.xlu0 %2238
          %vm2240 = vcmp.lt.s32.totalorder %v2205, 32
          %v2241 = vsel %vm2240, %v2237, %v2239
          %v2242 = vsel %vm2240, %v2235, %v2237
          %v2243 = vsel %vm2240, %v2233, %v2235
          %v2244 = vsel %vm2240, %v2239, %v2233
          %v2245 = vadd.f32 %v2228, %v2244
          %v2246 = vadd.f32 %v2229, %v2243
          %v2247 = vadd.f32 %v2230, %v2242
          %v2248 = vadd.f32 %v2231, %v2241
          %2249 = vrot.lane.b32.xlu0 %v2245, 64
          %v2250 = vpop.permute.xlu0 %2249
          %2251 = vrot.lane.b32.xlu0 %v2246, 64
          %v2252 = vpop.permute.xlu0 %2251
          %2253 = vrot.lane.b32.xlu0 %v2247, 64
          %v2254 = vpop.permute.xlu0 %2253
          %2255 = vrot.lane.b32.xlu0 %v2248, 64
          %v2256 = vpop.permute.xlu0 %2255
          %vm2257 = vcmp.lt.s32.totalorder %v2205, 64
          %v2258 = vsel %vm2257, %v2254, %v2256
          %v2259 = vsel %vm2257, %v2252, %v2254
          %v2260 = vsel %vm2257, %v2250, %v2252
          %v2261 = vsel %vm2257, %v2256, %v2250
          %v2262 = vadd.f32 %v2245, %v2261
          %v2263 = vadd.f32 %v2246, %v2260
          %v2264 = vadd.f32 %v2247, %v2259
          %v2265 = vadd.f32 %v2248, %v2258
          %v2266 = vadd.f32 %v2262, %v2265
          %v2267 = vadd.f32 %v2263, %v2262
          %v2268 = vadd.f32 %v2264, %v2263
          %v2269 = vadd.f32 %v2265, %v2264
          %v2270 = vadd.f32 %v2266, %v2268
          %v2271 = vadd.f32 %v2267, %v2269
          %v2272 = vrot.slane %v2270, 4
          %v2273 = vadd.f32 %v2270, %v2272
          %v2274 = vrot.slane %v2273, 2
          %v2275 = vadd.f32 %v2273, %v2274
          %v2276 = vrot.slane %v2275, 1
          %v2277 = vadd.f32 %v2275, %v2276
          %v2278 = vrot.slane %v2271, 4
          %v2279 = vadd.f32 %v2271, %v2278
          %v2280 = vrot.slane %v2279, 2
          %v2281 = vadd.f32 %v2279, %v2280
          %v2282 = vrot.slane %v2281, 1
          %v2283 = vadd.f32 %v2281, %v2282
          %v2284 = vmul.f32 %v2277, 0.001953125
          %v2285 = vmul.f32 %v2283, 0.001953125
          %v2286 = vsub.f32 %v2192, %v2284
          %v2287 = vsub.f32 %v2193, %v2285
          %v2288 = vsub.f32 %v2194, %v2284
          %v2289 = vsub.f32 %v2195, %v2285
          %v2290 = vmul.f32 %v2286, %v2286
          %v2291 = vmul.f32 %v2287, %v2287
          %v2292 = vmul.f32 %v2288, %v2288
          %v2293 = vmul.f32 %v2289, %v2289
          %2294 = vrot.lane.b32.xlu0 %v2290, 8
          %v2295 = vpop.permute.xlu0 %2294
          %2296 = vrot.lane.b32.xlu0 %v2291, 8
          %v2297 = vpop.permute.xlu0 %2296
          %2298 = vrot.lane.b32.xlu0 %v2292, 8
          %v2299 = vpop.permute.xlu0 %2298
          %2300 = vrot.lane.b32.xlu0 %v2293, 8
          %v2301 = vpop.permute.xlu0 %2300
          %v2302 = vsel %vm2206, %v2299, %v2301
          %v2303 = vsel %vm2206, %v2297, %v2299
          %v2304 = vsel %vm2206, %v2295, %v2297
          %v2305 = vsel %vm2206, %v2301, %v2295
          %v2306 = vadd.f32 %v2290, %v2305
          %v2307 = vadd.f32 %v2291, %v2304
          %v2308 = vadd.f32 %v2292, %v2303
          %v2309 = vadd.f32 %v2293, %v2302
          %2310 = vrot.lane.b32.xlu0 %v2306, 16
          %v2311 = vpop.permute.xlu0 %2310
          %2312 = vrot.lane.b32.xlu0 %v2307, 16
          %v2313 = vpop.permute.xlu0 %2312
          %2314 = vrot.lane.b32.xlu0 %v2308, 16
          %v2315 = vpop.permute.xlu0 %2314
          %2316 = vrot.lane.b32.xlu0 %v2309, 16
          %v2317 = vpop.permute.xlu0 %2316
          %v2318 = vsel %vm2223, %v2315, %v2317
          %v2319 = vsel %vm2223, %v2313, %v2315
          %v2320 = vsel %vm2223, %v2311, %v2313
          %v2321 = vsel %vm2223, %v2317, %v2311
          %v2322 = vadd.f32 %v2306, %v2321
          %v2323 = vadd.f32 %v2307, %v2320
          %v2324 = vadd.f32 %v2308, %v2319
          %v2325 = vadd.f32 %v2309, %v2318
          %2326 = vrot.lane.b32.xlu0 %v2322, 32
          %v2327 = vpop.permute.xlu0 %2326
          %2328 = vrot.lane.b32.xlu0 %v2323, 32
          %v2329 = vpop.permute.xlu0 %2328
          %2330 = vrot.lane.b32.xlu0 %v2324, 32
          %v2331 = vpop.permute.xlu0 %2330
          %2332 = vrot.lane.b32.xlu0 %v2325, 32
          %v2333 = vpop.permute.xlu0 %2332
          %v2334 = vsel %vm2240, %v2331, %v2333
          %v2335 = vsel %vm2240, %v2329, %v2331
          %v2336 = vsel %vm2240, %v2327, %v2329
          %v2337 = vsel %vm2240, %v2333, %v2327
          %v2338 = vadd.f32 %v2322, %v2337
          %v2339 = vadd.f32 %v2323, %v2336
          %v2340 = vadd.f32 %v2324, %v2335
          %v2341 = vadd.f32 %v2325, %v2334
          %2342 = vrot.lane.b32.xlu0 %v2338, 64
          %v2343 = vpop.permute.xlu0 %2342
          %2344 = vrot.lane.b32.xlu0 %v2339, 64
          %v2345 = vpop.permute.xlu0 %2344
          %2346 = vrot.lane.b32.xlu0 %v2340, 64
          %v2347 = vpop.permute.xlu0 %2346
          %2348 = vrot.lane.b32.xlu0 %v2341, 64
          %v2349 = vpop.permute.xlu0 %2348
          %v2350 = vsel %vm2257, %v2347, %v2349
          %v2351 = vsel %vm2257, %v2345, %v2347
          %v2352 = vsel %vm2257, %v2343, %v2345
          %v2353 = vsel %vm2257, %v2349, %v2343
          %v2354 = vadd.f32 %v2338, %v2353
          %v2355 = vadd.f32 %v2339, %v2352
          %v2356 = vadd.f32 %v2340, %v2351
          %v2357 = vadd.f32 %v2341, %v2350
          %v2358 = vadd.f32 %v2354, %v2357
          %v2359 = vadd.f32 %v2355, %v2354
          %v2360 = vadd.f32 %v2356, %v2355
          %v2361 = vadd.f32 %v2357, %v2356
          %v2362 = vadd.f32 %v2358, %v2360
          %v2363 = vadd.f32 %v2359, %v2361
          %v2364 = vrot.slane %v2362, 4
          %v2365 = vadd.f32 %v2362, %v2364
          %v2366 = vrot.slane %v2365, 2
          %v2367 = vadd.f32 %v2365, %v2366
          %v2368 = vrot.slane %v2367, 1
          %v2369 = vadd.f32 %v2367, %v2368
          %v2370 = vrot.slane %v2363, 4
          %v2371 = vadd.f32 %v2363, %v2370
          %v2372 = vrot.slane %v2371, 2
          %v2373 = vadd.f32 %v2371, %v2372
          %v2374 = vrot.slane %v2373, 1
          %v2375 = vadd.f32 %v2373, %v2374
          %v2376 = vmul.f32 %v2369, 0.001953125
          %v2377 = vmul.f32 %v2375, 0.001953125
          %v2378 = vadd.f32 %v2376, 1e-05
          %v2379 = vadd.f32 %v2377, 1e-05
          %v2380 = vrsqrt.pop %v2378
          %v2381 = vrsqrt.pop %v2379
          %v2382 = vmul.f32 %v2286, %v2380
          %v2383 = vmul.f32 %v2287, %v2381
          %v2384 = vmul.f32 %v2288, %v2380
          %v2385 = vmul.f32 %v2289, %v2381
          %v2386 = vmax.f32 %v2382, 0.0
          %v2387 = vmax.f32 %v2383, 0.0
          %v2388 = vmax.f32 %v2384, 0.0
          %v2389 = vmax.f32 %v2385, 0.0
          %s2390 = scalar_lea.vmem [#allocation8], 7
          %v2391 = vld [vmem:[%s2390] ss:$8 sm:$0xf]
          %v2393 = vlaneseq
          %v2394 = vshrl.u32 %v2393, 7
          %v2395 = vsub.s32 0, %v2394
          %v2396 = vrot.slane %v2391, %v2395
          %v2397 = vlaneseq
          %v2398 = vshrl.u32 %v2397, 7
          %v2399 = vsub.s32 1, %v2398
          %v2400 = vrot.slane %v2391, %v2399
          %v2401 = vlaneseq
          %v2402 = vshrl.u32 %v2401, 7
          %v2403 = vsub.s32 2, %v2402
          %v2404 = vrot.slane %v2391, %v2403
          %v2405 = vlaneseq
          %v2406 = vshrl.u32 %v2405, 7
          %v2407 = vsub.s32 3, %v2406
          %v2408 = vrot.slane %v2391, %v2407
          %v2413 = vmul.f32 %v2396, %v2386
          %v2414 = vmul.f32 %v2400, %v2387
          %v2415 = vmul.f32 %v2404, %v2388
          %v2416 = vmul.f32 %v2408, %v2389
          %s2417 = scalar_lea.vmem [#allocation8], 32
          %v2418 = vld [vmem:[%s2417] ss:$8 sm:$0xf]
          %2419 = vrot.lane.b32.xlu0 %v2386, 1
          %v2420 = vpop.permute.xlu0 %2419
          %2421 = vrot.lane.b32.xlu0 %v2387, 1
          %v2422 = vpop.permute.xlu0 %2421
          %2423 = vrot.lane.b32.xlu0 %v2388, 1
          %v2424 = vpop.permute.xlu0 %2423
          %2425 = vrot.lane.b32.xlu0 %v2389, 1
          %v2426 = vpop.permute.xlu0 %2425
          %vm2427 = vcmp.lt.s32.totalorder %v2205, 1
          %v2428 = vsel %vm2427, %v2424, %v2426
          %v2429 = vsel %vm2427, %v2422, %v2424
          %v2430 = vsel %vm2427, %v2420, %v2422
          %v2431 = vsel %vm2427, %v2426, %v2420
          %v2433 = vlaneseq
          %v2434 = vshrl.u32 %v2433, 7
          %v2435 = vsub.s32 0, %v2434
          %v2436 = vrot.slane %v2418, %v2435
          %v2437 = vlaneseq
          %v2438 = vshrl.u32 %v2437, 7
          %v2439 = vsub.s32 1, %v2438
          %v2440 = vrot.slane %v2418, %v2439
          %v2441 = vlaneseq
          %v2442 = vshrl.u32 %v2441, 7
          %v2443 = vsub.s32 2, %v2442
          %v2444 = vrot.slane %v2418, %v2443
          %v2445 = vlaneseq
          %v2446 = vshrl.u32 %v2445, 7
          %v2447 = vsub.s32 3, %v2446
          %v2448 = vrot.slane %v2418, %v2447
          %v2453 = vmul.f32 %v2436, %v2431
          %v2454 = vmul.f32 %v2440, %v2430
          %v2455 = vmul.f32 %v2444, %v2429
          %v2456 = vmul.f32 %v2448, %v2428
          %v2457 = vadd.f32 %v2413, %v2453
          %v2458 = vadd.f32 %v2414, %v2454
          %v2459 = vadd.f32 %v2415, %v2455
          %v2460 = vadd.f32 %v2416, %v2456
          %s2461 = scalar_lea.vmem [#allocation8], 6
          %v2462 = vld [vmem:[%s2461] ss:$8 sm:$0xf]
          %2463 = vrot.lane.b32.xlu0 %v2386, 127
          %v2464 = vpop.permute.xlu0 %2463
          %2465 = vrot.lane.b32.xlu0 %v2387, 127
          %v2466 = vpop.permute.xlu0 %2465
          %2467 = vrot.lane.b32.xlu0 %v2388, 127
          %v2468 = vpop.permute.xlu0 %2467
          %2469 = vrot.lane.b32.xlu0 %v2389, 127
          %v2470 = vpop.permute.xlu0 %2469
          %vm2471 = vcmp.lt.s32.totalorder %v2205, 127
          %v2472 = vsel %vm2471, %v2468, %v2470
          %v2473 = vsel %vm2471, %v2466, %v2468
          %v2474 = vsel %vm2471, %v2464, %v2466
          %v2475 = vsel %vm2471, %v2470, %v2464
          %v2477 = vlaneseq
          %v2478 = vshrl.u32 %v2477, 7
          %v2479 = vsub.s32 0, %v2478
          %v2480 = vrot.slane %v2462, %v2479
          %v2481 = vlaneseq
          %v2482 = vshrl.u32 %v2481, 7
          %v2483 = vsub.s32 1, %v2482
          %v2484 = vrot.slane %v2462, %v2483
          %v2485 = vlaneseq
          %v2486 = vshrl.u32 %v2485, 7
          %v2487 = vsub.s32 2, %v2486
          %v2488 = vrot.slane %v2462, %v2487
          %v2489 = vlaneseq
          %v2490 = vshrl.u32 %v2489, 7
          %v2491 = vsub.s32 3, %v2490
          %v2492 = vrot.slane %v2462, %v2491
          %v2497 = vmul.f32 %v2480, %v2474
          %v2498 = vmul.f32 %v2484, %v2473
          %v2499 = vmul.f32 %v2488, %v2472
          %v2500 = vmul.f32 %v2492, %v2475
          %v2501 = vadd.f32 %v2457, %v2497
          %v2502 = vadd.f32 %v2458, %v2498
          %v2503 = vadd.f32 %v2459, %v2499
          %v2504 = vadd.f32 %v2460, %v2500
          %s2505 = scalar_lea.vmem [#allocation8], 33
          %v2506 = vld [vmem:[%s2505] ss:$8 sm:$0xf]
          %2507 = vrot.lane.b32.xlu0 %v2386, 2
          %v2508 = vpop.permute.xlu0 %2507
          %2509 = vrot.lane.b32.xlu0 %v2387, 2
          %v2510 = vpop.permute.xlu0 %2509
          %2511 = vrot.lane.b32.xlu0 %v2388, 2
          %v2512 = vpop.permute.xlu0 %2511
          %2513 = vrot.lane.b32.xlu0 %v2389, 2
          %v2514 = vpop.permute.xlu0 %2513
          %vm2515 = vcmp.lt.s32.totalorder %v2205, 2
          %v2516 = vsel %vm2515, %v2512, %v2514
          %v2517 = vsel %vm2515, %v2510, %v2512
          %v2518 = vsel %vm2515, %v2508, %v2510
          %v2519 = vsel %vm2515, %v2514, %v2508
          %v2521 = vlaneseq
          %v2522 = vshrl.u32 %v2521, 7
          %v2523 = vsub.s32 0, %v2522
          %v2524 = vrot.slane %v2506, %v2523
          %v2525 = vlaneseq
          %v2526 = vshrl.u32 %v2525, 7
          %v2527 = vsub.s32 1, %v2526
          %v2528 = vrot.slane %v2506, %v2527
          %v2529 = vlaneseq
          %v2530 = vshrl.u32 %v2529, 7
          %v2531 = vsub.s32 2, %v2530
          %v2532 = vrot.slane %v2506, %v2531
          %v2533 = vlaneseq
          %v2534 = vshrl.u32 %v2533, 7
          %v2535 = vsub.s32 3, %v2534
          %v2536 = vrot.slane %v2506, %v2535
          %v2541 = vmul.f32 %v2524, %v2519
          %v2542 = vmul.f32 %v2528, %v2518
          %v2543 = vmul.f32 %v2532, %v2517
          %v2544 = vmul.f32 %v2536, %v2516
          %v2545 = vadd.f32 %v2501, %v2541
          %v2546 = vadd.f32 %v2502, %v2542
          %v2547 = vadd.f32 %v2503, %v2543
          %v2548 = vadd.f32 %v2504, %v2544
          %s2549 = scalar_lea.vmem [#allocation8], 5
          %v2550 = vld [vmem:[%s2549] ss:$8 sm:$0xf]
          %2551 = vrot.lane.b32.xlu0 %v2386, 126
          %v2552 = vpop.permute.xlu0 %2551
          %2553 = vrot.lane.b32.xlu0 %v2387, 126
          %v2554 = vpop.permute.xlu0 %2553
          %2555 = vrot.lane.b32.xlu0 %v2388, 126
          %v2556 = vpop.permute.xlu0 %2555
          %2557 = vrot.lane.b32.xlu0 %v2389, 126
          %v2558 = vpop.permute.xlu0 %2557
          %vm2559 = vcmp.lt.s32.totalorder %v2205, 126
          %v2560 = vsel %vm2559, %v2556, %v2558
          %v2561 = vsel %vm2559, %v2554, %v2556
          %v2562 = vsel %vm2559, %v2552, %v2554
          %v2563 = vsel %vm2559, %v2558, %v2552
          %v2565 = vlaneseq
          %v2566 = vshrl.u32 %v2565, 7
          %v2567 = vsub.s32 0, %v2566
          %v2568 = vrot.slane %v2550, %v2567
          %v2569 = vlaneseq
          %v2570 = vshrl.u32 %v2569, 7
          %v2571 = vsub.s32 1, %v2570
          %v2572 = vrot.slane %v2550, %v2571
          %v2573 = vlaneseq
          %v2574 = vshrl.u32 %v2573, 7
          %v2575 = vsub.s32 2, %v2574
          %v2576 = vrot.slane %v2550, %v2575
          %v2577 = vlaneseq
          %v2578 = vshrl.u32 %v2577, 7
          %v2579 = vsub.s32 3, %v2578
          %v2580 = vrot.slane %v2550, %v2579
          %v2585 = vmul.f32 %v2568, %v2562
          %v2586 = vmul.f32 %v2572, %v2561
          %v2587 = vmul.f32 %v2576, %v2560
          %v2588 = vmul.f32 %v2580, %v2563
          %v2589 = vadd.f32 %v2545, %v2585
          %v2590 = vadd.f32 %v2546, %v2586
          %v2591 = vadd.f32 %v2547, %v2587
          %v2592 = vadd.f32 %v2548, %v2588
          %s2593 = scalar_lea.vmem [#allocation8], 34
          %v2594 = vld [vmem:[%s2593] ss:$8 sm:$0xf]
          %2595 = vrot.lane.b32.xlu0 %v2386, 3
          %v2596 = vpop.permute.xlu0 %2595
          %2597 = vrot.lane.b32.xlu0 %v2387, 3
          %v2598 = vpop.permute.xlu0 %2597
          %2599 = vrot.lane.b32.xlu0 %v2388, 3
          %v2600 = vpop.permute.xlu0 %2599
          %2601 = vrot.lane.b32.xlu0 %v2389, 3
          %v2602 = vpop.permute.xlu0 %2601
          %vm2603 = vcmp.lt.s32.totalorder %v2205, 3
          %v2604 = vsel %vm2603, %v2600, %v2602
          %v2605 = vsel %vm2603, %v2598, %v2600
          %v2606 = vsel %vm2603, %v2596, %v2598
          %v2607 = vsel %vm2603, %v2602, %v2596
          %v2609 = vlaneseq
          %v2610 = vshrl.u32 %v2609, 7
          %v2611 = vsub.s32 0, %v2610
          %v2612 = vrot.slane %v2594, %v2611
          %v2613 = vlaneseq
          %v2614 = vshrl.u32 %v2613, 7
          %v2615 = vsub.s32 1, %v2614
          %v2616 = vrot.slane %v2594, %v2615
          %v2617 = vlaneseq
          %v2618 = vshrl.u32 %v2617, 7
          %v2619 = vsub.s32 2, %v2618
          %v2620 = vrot.slane %v2594, %v2619
          %v2621 = vlaneseq
          %v2622 = vshrl.u32 %v2621, 7
          %v2623 = vsub.s32 3, %v2622
          %v2624 = vrot.slane %v2594, %v2623
          %v2629 = vmul.f32 %v2612, %v2607
          %v2630 = vmul.f32 %v2616, %v2606
          %v2631 = vmul.f32 %v2620, %v2605
          %v2632 = vmul.f32 %v2624, %v2604
          %v2633 = vadd.f32 %v2589, %v2629
          %v2634 = vadd.f32 %v2590, %v2630
          %v2635 = vadd.f32 %v2591, %v2631
          %v2636 = vadd.f32 %v2592, %v2632
          %s2637 = scalar_lea.vmem [#allocation8], 4
          %v2638 = vld [vmem:[%s2637] ss:$8 sm:$0xf]
          %2639 = vrot.lane.b32.xlu0 %v2386, 125
          %v2640 = vpop.permute.xlu0 %2639
          %2641 = vrot.lane.b32.xlu0 %v2387, 125
          %v2642 = vpop.permute.xlu0 %2641
          %2643 = vrot.lane.b32.xlu0 %v2388, 125
          %v2644 = vpop.permute.xlu0 %2643
          %2645 = vrot.lane.b32.xlu0 %v2389, 125
          %v2646 = vpop.permute.xlu0 %2645
          %vm2647 = vcmp.lt.s32.totalorder %v2205, 125
          %v2648 = vsel %vm2647, %v2644, %v2646
          %v2649 = vsel %vm2647, %v2642, %v2644
          %v2650 = vsel %vm2647, %v2640, %v2642
          %v2651 = vsel %vm2647, %v2646, %v2640
          %v2653 = vlaneseq
          %v2654 = vshrl.u32 %v2653, 7
          %v2655 = vsub.s32 0, %v2654
          %v2656 = vrot.slane %v2638, %v2655
          %v2657 = vlaneseq
          %v2658 = vshrl.u32 %v2657, 7
          %v2659 = vsub.s32 1, %v2658
          %v2660 = vrot.slane %v2638, %v2659
          %v2661 = vlaneseq
          %v2662 = vshrl.u32 %v2661, 7
          %v2663 = vsub.s32 2, %v2662
          %v2664 = vrot.slane %v2638, %v2663
          %v2665 = vlaneseq
          %v2666 = vshrl.u32 %v2665, 7
          %v2667 = vsub.s32 3, %v2666
          %v2668 = vrot.slane %v2638, %v2667
          %v2673 = vmul.f32 %v2656, %v2650
          %v2674 = vmul.f32 %v2660, %v2649
          %v2675 = vmul.f32 %v2664, %v2648
          %v2676 = vmul.f32 %v2668, %v2651
          %v2677 = vadd.f32 %v2633, %v2673
          %v2678 = vadd.f32 %v2634, %v2674
          %v2679 = vadd.f32 %v2635, %v2675
          %v2680 = vadd.f32 %v2636, %v2676
          %s2681 = scalar_lea.vmem [#allocation8], 35
          %v2682 = vld [vmem:[%s2681] ss:$8 sm:$0xf]
          %2683 = vrot.lane.b32.xlu0 %v2386, 4
          %v2684 = vpop.permute.xlu0 %2683
          %2685 = vrot.lane.b32.xlu0 %v2387, 4
          %v2686 = vpop.permute.xlu0 %2685
          %2687 = vrot.lane.b32.xlu0 %v2388, 4
          %v2688 = vpop.permute.xlu0 %2687
          %2689 = vrot.lane.b32.xlu0 %v2389, 4
          %v2690 = vpop.permute.xlu0 %2689
          %vm2691 = vcmp.lt.s32.totalorder %v2205, 4
          %v2692 = vsel %vm2691, %v2688, %v2690
          %v2693 = vsel %vm2691, %v2686, %v2688
          %v2694 = vsel %vm2691, %v2684, %v2686
          %v2695 = vsel %vm2691, %v2690, %v2684
          %v2697 = vlaneseq
          %v2698 = vshrl.u32 %v2697, 7
          %v2699 = vsub.s32 0, %v2698
          %v2700 = vrot.slane %v2682, %v2699
          %v2701 = vlaneseq
          %v2702 = vshrl.u32 %v2701, 7
          %v2703 = vsub.s32 1, %v2702
          %v2704 = vrot.slane %v2682, %v2703
          %v2705 = vlaneseq
          %v2706 = vshrl.u32 %v2705, 7
          %v2707 = vsub.s32 2, %v2706
          %v2708 = vrot.slane %v2682, %v2707
          %v2709 = vlaneseq
          %v2710 = vshrl.u32 %v2709, 7
          %v2711 = vsub.s32 3, %v2710
          %v2712 = vrot.slane %v2682, %v2711
          %v2717 = vmul.f32 %v2700, %v2695
          %v2718 = vmul.f32 %v2704, %v2694
          %v2719 = vmul.f32 %v2708, %v2693
          %v2720 = vmul.f32 %v2712, %v2692
          %v2721 = vadd.f32 %v2677, %v2717
          %v2722 = vadd.f32 %v2678, %v2718
          %v2723 = vadd.f32 %v2679, %v2719
          %v2724 = vadd.f32 %v2680, %v2720
          %s2725 = scalar_lea.vmem [#allocation8], 3
          %v2726 = vld [vmem:[%s2725] ss:$8 sm:$0xf]
          %2727 = vrot.lane.b32.xlu0 %v2386, 124
          %v2728 = vpop.permute.xlu0 %2727
          %2729 = vrot.lane.b32.xlu0 %v2387, 124
          %v2730 = vpop.permute.xlu0 %2729
          %2731 = vrot.lane.b32.xlu0 %v2388, 124
          %v2732 = vpop.permute.xlu0 %2731
          %2733 = vrot.lane.b32.xlu0 %v2389, 124
          %v2734 = vpop.permute.xlu0 %2733
          %vm2735 = vcmp.lt.s32.totalorder %v2205, 124
          %v2736 = vsel %vm2735, %v2732, %v2734
          %v2737 = vsel %vm2735, %v2730, %v2732
          %v2738 = vsel %vm2735, %v2728, %v2730
          %v2739 = vsel %vm2735, %v2734, %v2728
          %v2741 = vlaneseq
          %v2742 = vshrl.u32 %v2741, 7
          %v2743 = vsub.s32 0, %v2742
          %v2744 = vrot.slane %v2726, %v2743
          %v2745 = vlaneseq
          %v2746 = vshrl.u32 %v2745, 7
          %v2747 = vsub.s32 1, %v2746
          %v2748 = vrot.slane %v2726, %v2747
          %v2749 = vlaneseq
          %v2750 = vshrl.u32 %v2749, 7
          %v2751 = vsub.s32 2, %v2750
          %v2752 = vrot.slane %v2726, %v2751
          %v2753 = vlaneseq
          %v2754 = vshrl.u32 %v2753, 7
          %v2755 = vsub.s32 3, %v2754
          %v2756 = vrot.slane %v2726, %v2755
          %v2761 = vmul.f32 %v2744, %v2738
          %v2762 = vmul.f32 %v2748, %v2737
          %v2763 = vmul.f32 %v2752, %v2736
          %v2764 = vmul.f32 %v2756, %v2739
          %v2765 = vadd.f32 %v2721, %v2761
          %v2766 = vadd.f32 %v2722, %v2762
          %v2767 = vadd.f32 %v2723, %v2763
          %v2768 = vadd.f32 %v2724, %v2764
          %s2769 = scalar_lea.vmem [#allocation8], 36
          %v2770 = vld [vmem:[%s2769] ss:$8 sm:$0xf]
          %2771 = vrot.lane.b32.xlu0 %v2386, 5
          %v2772 = vpop.permute.xlu0 %2771
          %2773 = vrot.lane.b32.xlu0 %v2387, 5
          %v2774 = vpop.permute.xlu0 %2773
          %2775 = vrot.lane.b32.xlu0 %v2388, 5
          %v2776 = vpop.permute.xlu0 %2775
          %2777 = vrot.lane.b32.xlu0 %v2389, 5
          %v2778 = vpop.permute.xlu0 %2777
          %vm2779 = vcmp.lt.s32.totalorder %v2205, 5
          %v2780 = vsel %vm2779, %v2776, %v2778
          %v2781 = vsel %vm2779, %v2774, %v2776
          %v2782 = vsel %vm2779, %v2772, %v2774
          %v2783 = vsel %vm2779, %v2778, %v2772
          %v2785 = vlaneseq
          %v2786 = vshrl.u32 %v2785, 7
          %v2787 = vsub.s32 0, %v2786
          %v2788 = vrot.slane %v2770, %v2787
          %v2789 = vlaneseq
          %v2790 = vshrl.u32 %v2789, 7
          %v2791 = vsub.s32 1, %v2790
          %v2792 = vrot.slane %v2770, %v2791
          %v2793 = vlaneseq
          %v2794 = vshrl.u32 %v2793, 7
          %v2795 = vsub.s32 2, %v2794
          %v2796 = vrot.slane %v2770, %v2795
          %v2797 = vlaneseq
          %v2798 = vshrl.u32 %v2797, 7
          %v2799 = vsub.s32 3, %v2798
          %v2800 = vrot.slane %v2770, %v2799
          %v2805 = vmul.f32 %v2788, %v2783
          %v2806 = vmul.f32 %v2792, %v2782
          %v2807 = vmul.f32 %v2796, %v2781
          %v2808 = vmul.f32 %v2800, %v2780
          %v2809 = vadd.f32 %v2765, %v2805
          %v2810 = vadd.f32 %v2766, %v2806
          %v2811 = vadd.f32 %v2767, %v2807
          %v2812 = vadd.f32 %v2768, %v2808
          %s2813 = scalar_lea.vmem [#allocation8], 2
          %v2814 = vld [vmem:[%s2813] ss:$8 sm:$0xf]
          %2815 = vrot.lane.b32.xlu0 %v2386, 123
          %v2816 = vpop.permute.xlu0 %2815
          %2817 = vrot.lane.b32.xlu0 %v2387, 123
          %v2818 = vpop.permute.xlu0 %2817
          %2819 = vrot.lane.b32.xlu0 %v2388, 123
          %v2820 = vpop.permute.xlu0 %2819
          %2821 = vrot.lane.b32.xlu0 %v2389, 123
          %v2822 = vpop.permute.xlu0 %2821
          %vm2823 = vcmp.lt.s32.totalorder %v2205, 123
          %v2824 = vsel %vm2823, %v2820, %v2822
          %v2825 = vsel %vm2823, %v2818, %v2820
          %v2826 = vsel %vm2823, %v2816, %v2818
          %v2827 = vsel %vm2823, %v2822, %v2816
          %v2829 = vlaneseq
          %v2830 = vshrl.u32 %v2829, 7
          %v2831 = vsub.s32 0, %v2830
          %v2832 = vrot.slane %v2814, %v2831
          %v2833 = vlaneseq
          %v2834 = vshrl.u32 %v2833, 7
          %v2835 = vsub.s32 1, %v2834
          %v2836 = vrot.slane %v2814, %v2835
          %v2837 = vlaneseq
          %v2838 = vshrl.u32 %v2837, 7
          %v2839 = vsub.s32 2, %v2838
          %v2840 = vrot.slane %v2814, %v2839
          %v2841 = vlaneseq
          %v2842 = vshrl.u32 %v2841, 7
          %v2843 = vsub.s32 3, %v2842
          %v2844 = vrot.slane %v2814, %v2843
          %v2849 = vmul.f32 %v2832, %v2826
          %v2850 = vmul.f32 %v2836, %v2825
          %v2851 = vmul.f32 %v2840, %v2824
          %v2852 = vmul.f32 %v2844, %v2827
          %v2853 = vadd.f32 %v2809, %v2849
          %v2854 = vadd.f32 %v2810, %v2850
          %v2855 = vadd.f32 %v2811, %v2851
          %v2856 = vadd.f32 %v2812, %v2852
          %s2857 = scalar_lea.vmem [#allocation8], 37
          %v2858 = vld [vmem:[%s2857] ss:$8 sm:$0xf]
          %2859 = vrot.lane.b32.xlu0 %v2386, 6
          %v2860 = vpop.permute.xlu0 %2859
          %2861 = vrot.lane.b32.xlu0 %v2387, 6
          %v2862 = vpop.permute.xlu0 %2861
          %2863 = vrot.lane.b32.xlu0 %v2388, 6
          %v2864 = vpop.permute.xlu0 %2863
          %2865 = vrot.lane.b32.xlu0 %v2389, 6
          %v2866 = vpop.permute.xlu0 %2865
          %vm2867 = vcmp.lt.s32.totalorder %v2205, 6
          %v2868 = vsel %vm2867, %v2864, %v2866
          %v2869 = vsel %vm2867, %v2862, %v2864
          %v2870 = vsel %vm2867, %v2860, %v2862
          %v2871 = vsel %vm2867, %v2866, %v2860
          %v2873 = vlaneseq
          %v2874 = vshrl.u32 %v2873, 7
          %v2875 = vsub.s32 0, %v2874
          %v2876 = vrot.slane %v2858, %v2875
          %v2877 = vlaneseq
          %v2878 = vshrl.u32 %v2877, 7
          %v2879 = vsub.s32 1, %v2878
          %v2880 = vrot.slane %v2858, %v2879
          %v2881 = vlaneseq
          %v2882 = vshrl.u32 %v2881, 7
          %v2883 = vsub.s32 2, %v2882
          %v2884 = vrot.slane %v2858, %v2883
          %v2885 = vlaneseq
          %v2886 = vshrl.u32 %v2885, 7
          %v2887 = vsub.s32 3, %v2886
          %v2888 = vrot.slane %v2858, %v2887
          %v2893 = vmul.f32 %v2876, %v2871
          %v2894 = vmul.f32 %v2880, %v2870
          %v2895 = vmul.f32 %v2884, %v2869
          %v2896 = vmul.f32 %v2888, %v2868
          %v2897 = vadd.f32 %v2853, %v2893
          %v2898 = vadd.f32 %v2854, %v2894
          %v2899 = vadd.f32 %v2855, %v2895
          %v2900 = vadd.f32 %v2856, %v2896
          %s2901 = scalar_lea.vmem [#allocation8], 1
          %v2902 = vld [vmem:[%s2901] ss:$8 sm:$0xf]
          %2903 = vrot.lane.b32.xlu0 %v2386, 122
          %v2904 = vpop.permute.xlu0 %2903
          %2905 = vrot.lane.b32.xlu0 %v2387, 122
          %v2906 = vpop.permute.xlu0 %2905
          %2907 = vrot.lane.b32.xlu0 %v2388, 122
          %v2908 = vpop.permute.xlu0 %2907
          %2909 = vrot.lane.b32.xlu0 %v2389, 122
          %v2910 = vpop.permute.xlu0 %2909
          %vm2911 = vcmp.lt.s32.totalorder %v2205, 122
          %v2912 = vsel %vm2911, %v2908, %v2910
          %v2913 = vsel %vm2911, %v2906, %v2908
          %v2914 = vsel %vm2911, %v2904, %v2906
          %v2915 = vsel %vm2911, %v2910, %v2904
          %v2917 = vlaneseq
          %v2918 = vshrl.u32 %v2917, 7
          %v2919 = vsub.s32 0, %v2918
          %v2920 = vrot.slane %v2902, %v2919
          %v2921 = vlaneseq
          %v2922 = vshrl.u32 %v2921, 7
          %v2923 = vsub.s32 1, %v2922
          %v2924 = vrot.slane %v2902, %v2923
          %v2925 = vlaneseq
          %v2926 = vshrl.u32 %v2925, 7
          %v2927 = vsub.s32 2, %v2926
          %v2928 = vrot.slane %v2902, %v2927
          %v2929 = vlaneseq
          %v2930 = vshrl.u32 %v2929, 7
          %v2931 = vsub.s32 3, %v2930
          %v2932 = vrot.slane %v2902, %v2931
          %v2937 = vmul.f32 %v2920, %v2914
          %v2938 = vmul.f32 %v2924, %v2913
          %v2939 = vmul.f32 %v2928, %v2912
          %v2940 = vmul.f32 %v2932, %v2915
          %v2941 = vadd.f32 %v2897, %v2937
          %v2942 = vadd.f32 %v2898, %v2938
          %v2943 = vadd.f32 %v2899, %v2939
          %v2944 = vadd.f32 %v2900, %v2940
          %s2945 = scalar_lea.vmem [#allocation8], 38
          %v2946 = vld [vmem:[%s2945] ss:$8 sm:$0xf]
          %2947 = vrot.lane.b32.xlu0 %v2386, 7
          %v2948 = vpop.permute.xlu0 %2947
          %2949 = vrot.lane.b32.xlu0 %v2387, 7
          %v2950 = vpop.permute.xlu0 %2949
          %2951 = vrot.lane.b32.xlu0 %v2388, 7
          %v2952 = vpop.permute.xlu0 %2951
          %2953 = vrot.lane.b32.xlu0 %v2389, 7
          %v2954 = vpop.permute.xlu0 %2953
          %vm2955 = vcmp.lt.s32.totalorder %v2205, 7
          %v2956 = vsel %vm2955, %v2952, %v2954
          %v2957 = vsel %vm2955, %v2950, %v2952
          %v2958 = vsel %vm2955, %v2948, %v2950
          %v2959 = vsel %vm2955, %v2954, %v2948
          %v2961 = vlaneseq
          %v2962 = vshrl.u32 %v2961, 7
          %v2963 = vsub.s32 0, %v2962
          %v2964 = vrot.slane %v2946, %v2963
          %v2965 = vlaneseq
          %v2966 = vshrl.u32 %v2965, 7
          %v2967 = vsub.s32 1, %v2966
          %v2968 = vrot.slane %v2946, %v2967
          %v2969 = vlaneseq
          %v2970 = vshrl.u32 %v2969, 7
          %v2971 = vsub.s32 2, %v2970
          %v2972 = vrot.slane %v2946, %v2971
          %v2973 = vlaneseq
          %v2974 = vshrl.u32 %v2973, 7
          %v2975 = vsub.s32 3, %v2974
          %v2976 = vrot.slane %v2946, %v2975
          %v2981 = vmul.f32 %v2964, %v2959
          %v2982 = vmul.f32 %v2968, %v2958
          %v2983 = vmul.f32 %v2972, %v2957
          %v2984 = vmul.f32 %v2976, %v2956
          %v2985 = vadd.f32 %v2941, %v2981
          %v2986 = vadd.f32 %v2942, %v2982
          %v2987 = vadd.f32 %v2943, %v2983
          %v2988 = vadd.f32 %v2944, %v2984
          %v2989 = vld [vmem:[#allocation8] ss:$8 sm:$0xf]
          %2990 = vrot.lane.b32.xlu0 %v2386, 121
          %v2991 = vpop.permute.xlu0 %2990
          %2992 = vrot.lane.b32.xlu0 %v2387, 121
          %v2993 = vpop.permute.xlu0 %2992
          %2994 = vrot.lane.b32.xlu0 %v2388, 121
          %v2995 = vpop.permute.xlu0 %2994
          %2996 = vrot.lane.b32.xlu0 %v2389, 121
          %v2997 = vpop.permute.xlu0 %2996
          %vm2998 = vcmp.lt.s32.totalorder %v2205, 121
          %v2999 = vsel %vm2998, %v2995, %v2997
          %v3000 = vsel %vm2998, %v2993, %v2995
          %v3001 = vsel %vm2998, %v2991, %v2993
          %v3002 = vsel %vm2998, %v2997, %v2991
          %v3004 = vlaneseq
          %v3005 = vshrl.u32 %v3004, 7
          %v3006 = vsub.s32 0, %v3005
          %v3007 = vrot.slane %v2989, %v3006
          %v3008 = vlaneseq
          %v3009 = vshrl.u32 %v3008, 7
          %v3010 = vsub.s32 1, %v3009
          %v3011 = vrot.slane %v2989, %v3010
          %v3012 = vlaneseq
          %v3013 = vshrl.u32 %v3012, 7
          %v3014 = vsub.s32 2, %v3013
          %v3015 = vrot.slane %v2989, %v3014
          %v3016 = vlaneseq
          %v3017 = vshrl.u32 %v3016, 7
          %v3018 = vsub.s32 3, %v3017
          %v3019 = vrot.slane %v2989, %v3018
          %v3024 = vmul.f32 %v3007, %v3001
          %v3025 = vmul.f32 %v3011, %v3000
          %v3026 = vmul.f32 %v3015, %v2999
          %v3027 = vmul.f32 %v3019, %v3002
          %v3028 = vadd.f32 %v2985, %v3024
          %v3029 = vadd.f32 %v2986, %v3025
          %v3030 = vadd.f32 %v2987, %v3026
          %v3031 = vadd.f32 %v2988, %v3027
          %v3032 = vld [vmem:[#allocation11] sm:$0xf]
          %v3034 = vlaneseq
          %v3035 = vshrl.u32 %v3034, 7
          %v3036 = vsub.s32 0, %v3035
          %v3037 = vrot.slane %v3032, %v3036
          %v3038 = vlaneseq
          %v3039 = vshrl.u32 %v3038, 7
          %v3040 = vsub.s32 1, %v3039
          %v3041 = vrot.slane %v3032, %v3040
          %v3042 = vlaneseq
          %v3043 = vshrl.u32 %v3042, 7
          %v3044 = vsub.s32 2, %v3043
          %v3045 = vrot.slane %v3032, %v3044
          %v3046 = vlaneseq
          %v3047 = vshrl.u32 %v3046, 7
          %v3048 = vsub.s32 3, %v3047
          %v3049 = vrot.slane %v3032, %v3048
          %v3054 = vadd.f32 %v3028, %v3037
          %v3055 = vadd.f32 %v3029, %v3041
          %v3056 = vadd.f32 %v3030, %v3045
          %v3057 = vadd.f32 %v3031, %v3049
          %3058 = vrot.lane.b32.xlu0 %v3054, 8
          %v3059 = vpop.permute.xlu0 %3058
          %3060 = vrot.lane.b32.xlu0 %v3055, 8
          %v3061 = vpop.permute.xlu0 %3060
          %3062 = vrot.lane.b32.xlu0 %v3056, 8
          %v3063 = vpop.permute.xlu0 %3062
          %3064 = vrot.lane.b32.xlu0 %v3057, 8
          %v3065 = vpop.permute.xlu0 %3064
          %v3066 = vsel %vm2206, %v3063, %v3065
          %v3067 = vsel %vm2206, %v3061, %v3063
          %v3068 = vsel %vm2206, %v3059, %v3061
          %v3069 = vsel %vm2206, %v3065, %v3059
          %v3070 = vadd.f32 %v3054, %v3069
          %v3071 = vadd.f32 %v3055, %v3068
          %v3072 = vadd.f32 %v3056, %v3067
          %v3073 = vadd.f32 %v3057, %v3066
          %3074 = vrot.lane.b32.xlu0 %v3070, 16
          %v3075 = vpop.permute.xlu0 %3074
          %3076 = vrot.lane.b32.xlu0 %v3071, 16
          %v3077 = vpop.permute.xlu0 %3076
          %3078 = vrot.lane.b32.xlu0 %v3072, 16
          %v3079 = vpop.permute.xlu0 %3078
          %3080 = vrot.lane.b32.xlu0 %v3073, 16
          %v3081 = vpop.permute.xlu0 %3080
          %v3082 = vsel %vm2223, %v3079, %v3081
          %v3083 = vsel %vm2223, %v3077, %v3079
          %v3084 = vsel %vm2223, %v3075, %v3077
          %v3085 = vsel %vm2223, %v3081, %v3075
          %v3086 = vadd.f32 %v3070, %v3085
          %v3087 = vadd.f32 %v3071, %v3084
          %v3088 = vadd.f32 %v3072, %v3083
          %v3089 = vadd.f32 %v3073, %v3082
          %3090 = vrot.lane.b32.xlu0 %v3086, 32
          %v3091 = vpop.permute.xlu0 %3090
          %3092 = vrot.lane.b32.xlu0 %v3087, 32
          %v3093 = vpop.permute.xlu0 %3092
          %3094 = vrot.lane.b32.xlu0 %v3088, 32
          %v3095 = vpop.permute.xlu0 %3094
          %3096 = vrot.lane.b32.xlu0 %v3089, 32
          %v3097 = vpop.permute.xlu0 %3096
          %v3098 = vsel %vm2240, %v3095, %v3097
          %v3099 = vsel %vm2240, %v3093, %v3095
          %v3100 = vsel %vm2240, %v3091, %v3093
          %v3101 = vsel %vm2240, %v3097, %v3091
          %v3102 = vadd.f32 %v3086, %v3101
          %v3103 = vadd.f32 %v3087, %v3100
          %v3104 = vadd.f32 %v3088, %v3099
          %v3105 = vadd.f32 %v3089, %v3098
          %3106 = vrot.lane.b32.xlu0 %v3102, 64
          %v3107 = vpop.permute.xlu0 %3106
          %3108 = vrot.lane.b32.xlu0 %v3103, 64
          %v3109 = vpop.permute.xlu0 %3108
          %3110 = vrot.lane.b32.xlu0 %v3104, 64
          %v3111 = vpop.permute.xlu0 %3110
          %3112 = vrot.lane.b32.xlu0 %v3105, 64
          %v3113 = vpop.permute.xlu0 %3112
          %v3114 = vsel %vm2257, %v3111, %v3113
          %v3115 = vsel %vm2257, %v3109, %v3111
          %v3116 = vsel %vm2257, %v3107, %v3109
          %v3117 = vsel %vm2257, %v3113, %v3107
          %v3118 = vadd.f32 %v3102, %v3117
          %v3119 = vadd.f32 %v3103, %v3116
          %v3120 = vadd.f32 %v3104, %v3115
          %v3121 = vadd.f32 %v3105, %v3114
          %v3122 = vadd.f32 %v3118, %v3121
          %v3123 = vadd.f32 %v3119, %v3118
          %v3124 = vadd.f32 %v3120, %v3119
          %v3125 = vadd.f32 %v3121, %v3120
          %v3126 = vadd.f32 %v3122, %v3124
          %v3127 = vadd.f32 %v3123, %v3125
          %v3128 = vrot.slane %v3126, 4
          %v3129 = vadd.f32 %v3126, %v3128
          %v3130 = vrot.slane %v3129, 2
          %v3131 = vadd.f32 %v3129, %v3130
          %v3132 = vrot.slane %v3131, 1
          %v3133 = vadd.f32 %v3131, %v3132
          %v3134 = vrot.slane %v3127, 4
          %v3135 = vadd.f32 %v3127, %v3134
          %v3136 = vrot.slane %v3135, 2
          %v3137 = vadd.f32 %v3135, %v3136
          %v3138 = vrot.slane %v3137, 1
          %v3139 = vadd.f32 %v3137, %v3138
          %v3140 = vmul.f32 %v3133, 0.001953125
          %v3141 = vmul.f32 %v3139, 0.001953125
          %v3142 = vsub.f32 %v3054, %v3140
          %v3143 = vsub.f32 %v3055, %v3141
          %v3144 = vsub.f32 %v3056, %v3140
          %v3145 = vsub.f32 %v3057, %v3141
          %v3146 = vmul.f32 %v3142, %v3142
          %v3147 = vmul.f32 %v3143, %v3143
          %v3148 = vmul.f32 %v3144, %v3144
          %v3149 = vmul.f32 %v3145, %v3145
          %3150 = vrot.lane.b32.xlu0 %v3146, 8
          %v3151 = vpop.permute.xlu0 %3150
          %3152 = vrot.lane.b32.xlu0 %v3147, 8
          %v3153 = vpop.permute.xlu0 %3152
          %3154 = vrot.lane.b32.xlu0 %v3148, 8
          %v3155 = vpop.permute.xlu0 %3154
          %3156 = vrot.lane.b32.xlu0 %v3149, 8
          %v3157 = vpop.permute.xlu0 %3156
          %v3158 = vsel %vm2206, %v3155, %v3157
          %v3159 = vsel %vm2206, %v3153, %v3155
          %v3160 = vsel %vm2206, %v3151, %v3153
          %v3161 = vsel %vm2206, %v3157, %v3151
          %v3162 = vadd.f32 %v3146, %v3161
          %v3163 = vadd.f32 %v3147, %v3160
          %v3164 = vadd.f32 %v3148, %v3159
          %v3165 = vadd.f32 %v3149, %v3158
          %3166 = vrot.lane.b32.xlu0 %v3162, 16
          %v3167 = vpop.permute.xlu0 %3166
          %3168 = vrot.lane.b32.xlu0 %v3163, 16
          %v3169 = vpop.permute.xlu0 %3168
          %3170 = vrot.lane.b32.xlu0 %v3164, 16
          %v3171 = vpop.permute.xlu0 %3170
          %3172 = vrot.lane.b32.xlu0 %v3165, 16
          %v3173 = vpop.permute.xlu0 %3172
          %v3174 = vsel %vm2223, %v3171, %v3173
          %v3175 = vsel %vm2223, %v3169, %v3171
          %v3176 = vsel %vm2223, %v3167, %v3169
          %v3177 = vsel %vm2223, %v3173, %v3167
          %v3178 = vadd.f32 %v3162, %v3177
          %v3179 = vadd.f32 %v3163, %v3176
          %v3180 = vadd.f32 %v3164, %v3175
          %v3181 = vadd.f32 %v3165, %v3174
          %3182 = vrot.lane.b32.xlu0 %v3178, 32
          %v3183 = vpop.permute.xlu0 %3182
          %3184 = vrot.lane.b32.xlu0 %v3179, 32
          %v3185 = vpop.permute.xlu0 %3184
          %3186 = vrot.lane.b32.xlu0 %v3180, 32
          %v3187 = vpop.permute.xlu0 %3186
          %3188 = vrot.lane.b32.xlu0 %v3181, 32
          %v3189 = vpop.permute.xlu0 %3188
          %v3190 = vsel %vm2240, %v3187, %v3189
          %v3191 = vsel %vm2240, %v3185, %v3187
          %v3192 = vsel %vm2240, %v3183, %v3185
          %v3193 = vsel %vm2240, %v3189, %v3183
          %v3194 = vadd.f32 %v3178, %v3193
          %v3195 = vadd.f32 %v3179, %v3192
          %v3196 = vadd.f32 %v3180, %v3191
          %v3197 = vadd.f32 %v3181, %v3190
          %3198 = vrot.lane.b32.xlu0 %v3194, 64
          %v3199 = vpop.permute.xlu0 %3198
          %3200 = vrot.lane.b32.xlu0 %v3195, 64
          %v3201 = vpop.permute.xlu0 %3200
          %3202 = vrot.lane.b32.xlu0 %v3196, 64
          %v3203 = vpop.permute.xlu0 %3202
          %3204 = vrot.lane.b32.xlu0 %v3197, 64
          %v3205 = vpop.permute.xlu0 %3204
          %v3206 = vsel %vm2257, %v3203, %v3205
          %v3207 = vsel %vm2257, %v3201, %v3203
          %v3208 = vsel %vm2257, %v3199, %v3201
          %v3209 = vsel %vm2257, %v3205, %v3199
          %v3210 = vadd.f32 %v3194, %v3209
          %v3211 = vadd.f32 %v3195, %v3208
          %v3212 = vadd.f32 %v3196, %v3207
          %v3213 = vadd.f32 %v3197, %v3206
          %v3214 = vadd.f32 %v3210, %v3213
          %v3215 = vadd.f32 %v3211, %v3210
          %v3216 = vadd.f32 %v3212, %v3211
          %v3217 = vadd.f32 %v3213, %v3212
          %v3218 = vadd.f32 %v3214, %v3216
          %v3219 = vadd.f32 %v3215, %v3217
          %v3220 = vrot.slane %v3218, 4
          %v3221 = vadd.f32 %v3218, %v3220
          %v3222 = vrot.slane %v3221, 2
          %v3223 = vadd.f32 %v3221, %v3222
          %v3224 = vrot.slane %v3223, 1
          %v3225 = vadd.f32 %v3223, %v3224
          %v3226 = vrot.slane %v3219, 4
          %v3227 = vadd.f32 %v3219, %v3226
          %v3228 = vrot.slane %v3227, 2
          %v3229 = vadd.f32 %v3227, %v3228
          %v3230 = vrot.slane %v3229, 1
          %v3231 = vadd.f32 %v3229, %v3230
          %v3232 = vmul.f32 %v3225, 0.001953125
          %v3233 = vmul.f32 %v3231, 0.001953125
          %v3234 = vadd.f32 %v3232, 1e-05
          %v3235 = vadd.f32 %v3233, 1e-05
          %v3236 = vrsqrt.pop %v3234
          %v3237 = vrsqrt.pop %v3235
          %v3238 = vmul.f32 %v3142, %v3236
          %v3239 = vmul.f32 %v3143, %v3237
          %v3240 = vmul.f32 %v3144, %v3236
          %v3241 = vmul.f32 %v3145, %v3237
          %v3242 = vadd.f32 %v3238, %v2188
          %v3243 = vadd.f32 %v3239, %v2189
          %v3244 = vadd.f32 %v3240, %v2190
          %v3245 = vadd.f32 %v3241, %v2191
          %v3246 = vmax.f32 %v3242, 0.0
          %v3247 = vmax.f32 %v3243, 0.0
          %v3248 = vmax.f32 %v3244, 0.0
          %v3249 = vmax.f32 %v3245, 0.0
          %3250 = vst [vmem:[%s6] sm:$0xff] %v3246
          %3251 = vst [vmem:[%s6 + $0x8] sm:$0xff] %v3247
          %3252 = vst [vmem:[%s6 + $0x10] sm:$0xff] %v3248
          %3253 = vst [vmem:[%s6 + $0x18] sm:$0xff] %v3249
        $region72: #{identity_block_forward.1} parent=43 // pred_fallthru
          _
        // Predicated region
        $region73: #{identity_block_forward.1} parent=43 // pred_check
          %p3254 = pneg %p166
        $region74: #{identity_block_forward.1} parent=43 // pred_check_branch
          %3256 = sbr.rel (%p3254) target = $region76
        $region75: #{identity_block_forward.1} parent=43 // pred_region
          _
        $region76: #{identity_block_forward.1} parent=43 // pred_fallthru
          _
        // Predicated region
        $region77: #{identity_block_forward.1} parent=43 // pred_check
          %p3257 = pneg %p166
        $region78: #{identity_block_forward.1} parent=43 // pred_check_branch
          %3259 = sbr.rel (%p3257) target = $region80
        $region79: #{identity_block_forward.1} parent=43 // pred_region
          _
        $region80: #{identity_block_forward.1} parent=43 // pred_fallthru
          _
      $region44: #{identity_block_forward.1} parent=5 // pred_fallthru
        _
      %p3260 = scmp.le.s32.totalorder 2, %s17
      // Predicated region
      $region81: #{identity_block_forward.1} parent=5 // pred_check
        %p3261 = pneg %p3260
      $region82: #{identity_block_forward.1} parent=5 // pred_check_branch
        %3263 = sbr.rel (%p3261) target = $region84
      $region83: #{identity_block_forward.1} parent=5 // pred_region
        %s3264 = ssub.s32 %s17, 2
      $region84: #{identity_block_forward.1} parent=5 // pred_fallthru
        _
    $region6: #{identity_block_forward.1} parent=1 // loop_footer
      %s21 = sadd.s32 1, %s17
    $region7: #{identity_block_forward.1} parent=1 // loop_footer_branch
      %16 = sbr.rel target = $region3
    $region8: #{identity_block_forward.1} parent=1 // loop_exit
      _
    %3265 = vsyncpa [#allocation5], 1
    %s3266 = scalar_lea.sflag [#allocation5], 1
    %3267 = vsyncpa %s3266, 1
    %3268 = vsyncpa [#allocation7], 1
    %3269 = vsyncpa [#allocation10], 1

</llo_original>
